<compile_context>
chip_gen: v7x
topology: tpu7x:2x2x1
jax: 0.10.0
libtpu: 0.0.40
codegen_flags: <defaults>
</compile_context>

<pallas_src>
import math

import jax
import jax.numpy as jnp
from jax.experimental import pallas as pl
from jax.experimental.pallas import tpu as pltpu


def _round_up(x, m):
    return ((x + m - 1) // m) * m


def _make_mlm_kernel(TB, S, mask_prob, replace_prob, mask_token_id, pad_token_id,
                     ignore_ids, max_masked, key_shift):
    # Integer threshold for the bernoulli replace decision (rbits ~ U[0, 2^24)).
    rep_thr = max(0, min(int(replace_prob * (1 << 24)), 1 << 24))

    def kernel(seq_ref, kbits_ref, rbits_ref, masked_ref, labels_ref):
        seq = seq_ref[...]                                   # (TB, S) int32

        # --- mask_with_tokens(seq, mask_ignore_token_ids) ---
        no_mask = jnp.zeros((TB, S), dtype=jnp.bool_)
        for tid in ignore_ids:
            no_mask = jnp.logical_or(no_mask, seq == jnp.int32(tid))
        candidate = jnp.logical_not(no_mask)                 # eligible for masking
        cand_f = candidate.astype(jnp.float32)

        col = jax.lax.broadcasted_iota(jnp.int32, (TB, S), 1)

        # --- excess test hoisted to a per-row scalar num_keep ----------------
        # Inclusive cumsum of candidates along the sequence as an MXU matmul
        # against an upper-triangular 0/1 matrix (keeps the XLU free).
        r = jax.lax.broadcasted_iota(jnp.int32, (S, S), 0)
        c = jax.lax.broadcasted_iota(jnp.int32, (S, S), 1)
        tri = (r <= c).astype(jnp.float32)                   # tri[j, k] = [j <= k]
        cum = jnp.dot(cand_f, tri, preferred_element_type=jnp.float32)   # (TB, S)

        num_tokens = jnp.sum(cand_f, axis=-1, keepdims=True)             # (TB, 1)
        allowed = jnp.ceil(num_tokens * jnp.float32(mask_prob))          # (TB, 1)

        # num_keep = #{k < max_masked : cumsum(candidate)[k] <= allowed}
        keepable = jnp.logical_and(col < max_masked, cum <= allowed)
        num_keep = jnp.sum(keepable.astype(jnp.float32), axis=-1, keepdims=True)

        # --- top-k subset via rank-by-comparison (no serial loop) ------------
        # Integer sort key: random high bits, reversed column index in the low
        # bits (smallest-index tie break).  Non-candidates get distinct
        # negative keys ordered by index — faithful to the reference's
        # rand.masked_fill(~mask, -1e9) + topk quirk.
        key = jnp.where(candidate,
                        (kbits_ref[...] << key_shift) + (S - 1 - col),
                        -(col + 1))                          # (TB, S) int32, distinct per row

        gt = key[:, None, :] > key[:, :, None]               # gt[b,i,j] = key_j > key_i
        rank = jnp.sum(gt.astype(jnp.float32), axis=-1)      # (TB, S)
        mask = rank < num_keep                               # top num_keep per row

        # labels = seq.masked_fill(~mask, pad_token_id)
        labels = jnp.where(mask, seq, jnp.int32(pad_token_id))

        # TODO(synk): random_token_prob > 0 branch (random-token replacement) not
        # implemented; module default random_token_prob=0.0 skips it entirely.

        # masked_seq = seq.masked_fill(mask & bernoulli(replace_prob), mask_token_id)
        replace = rbits_ref[...] < jnp.int32(rep_thr)
        masked_seq = jnp.where(jnp.logical_and(mask, replace),
                               jnp.int32(mask_token_id), seq)

        masked_ref[...] = masked_seq
        labels_ref[...] = labels        # int32 (torch returns int64; JAX x64 off)

    return kernel


def mlm_forward(seq, rng, *, mask_prob=0.15, replace_prob=0.9, mask_token_id=2,
                pad_token_id=0, mask_ignore_token_ids=(), block_batch=None):
    assert seq.ndim == 2
    B, S = seq.shape
    seq = seq.astype(jnp.int32)
    ignore_ids = tuple(sorted({*(int(t) for t in mask_ignore_token_ids),
                               int(pad_token_id)}))

    # max_masked / excess slice use the ORIGINAL sequence length (reference semantics).
    max_masked = math.ceil(mask_prob * S)

    # Lane-dense padding: sequence to a multiple of 128, batch to the batch tile.
    S_pad = _round_up(S, 128)
    key_shift = max(1, (S_pad - 1).bit_length())     # low bits hold the column index
    key_bits = min(24, 31 - key_shift)               # random bits in the sort key

    if block_batch is None:
        # Size the batch tile from the dominant live temporary — the (TB, S, S)
        # all-pairs compare (~5 B/elt incl. the f32 cast) — keep it <= ~8 MiB.
        tb = max(8, (8 * 1024 * 1024) // (S_pad * S_pad * 5))
        tb = min(256, (tb // 8) * 8)
    else:
        tb = block_batch
    tb = max(8, min(tb, _round_up(B, 8)))
    B_pad = _round_up(B, tb)

    # Host-side randomness (torch.rand equivalents); independent per row, so
    # batch tiles never generate correlated bits.
    k_topk, k_rep = jax.random.split(rng)
    kbits = jax.random.randint(k_topk, (B_pad, S_pad), 0, 1 << key_bits, dtype=jnp.int32)
    rbits = jax.random.randint(k_rep, (B_pad, S_pad), 0, 1 << 24, dtype=jnp.int32)

    seq_p = jnp.pad(seq, ((0, B_pad - B), (0, S_pad - S)),
                    constant_values=pad_token_id)

    kernel = _make_mlm_kernel(tb, S_pad, mask_prob, replace_prob, mask_token_id,
                              pad_token_id, ignore_ids, max_masked, key_shift)

    spec = pl.BlockSpec((tb, S_pad), lambda i: (i, 0))
    masked_p, labels_p = pl.pallas_call(
        kernel,
        out_shape=(jax.ShapeDtypeStruct((B_pad, S_pad), jnp.int32),
                   jax.ShapeDtypeStruct((B_pad, S_pad), jnp.int32)),
        grid=(B_pad // tb,),
        in_specs=[spec, spec, spec],
        out_specs=(spec, spec),
        compiler_params=pltpu.CompilerParams(dimension_semantics=("parallel",)),
    )(seq_p, kbits, rbits)
    return masked_p[:B, :S], labels_p[:B, :S]


if __name__ == "__main__":
    key = jax.random.PRNGKey(0)
    k_seq, k_mlm = jax.random.split(key)
    B, S, vocab = 8, 128, 30
    seq = jax.random.randint(k_seq, (B, S), 3, vocab, dtype=jnp.int32)
    # pad the tail of each row with pad_token_id=0 to exercise the ignore-token path
    seq = seq.at[:, -8:].set(0)

    masked_seq, labels = mlm_forward(seq, k_mlm)
    masked_seq, labels = jax.block_until_ready((masked_seq, labels))

    # sanity invariants of the MLM forward
    assert masked_seq.shape == (B, S) and labels.shape == (B, S)
    # labels are either pad (0) or the original token
    assert bool(jnp.all((labels == 0) | (labels == seq)))
    # masked positions never land on pad tokens here (pads are ignore tokens)
    assert bool(jnp.all(jnp.where(labels != 0, seq != 0, True)))
    # masked_seq differs from seq only where mask_token_id was written
    assert bool(jnp.all((masked_seq == seq) | (masked_seq == 2)))
    # per-row masked count is bounded by max_masked and something was masked
    assert bool(jnp.all(jnp.sum(labels != 0, axis=-1) <= math.ceil(0.15 * S)))
    assert int(jnp.sum(labels != 0)) > 0

    print("KERNEL_OK")
</pallas_src>

<mosaic_0001>
module attributes {stable_mosaic.version = 11 : i64} {
  func.func @kernel(%arg0: i32, %arg1: memref<8x128xi32, #tpu.memory_space<vmem>>, %arg2: memref<8x128xi32, #tpu.memory_space<vmem>>, %arg3: memref<8x128xi32, #tpu.memory_space<vmem>>, %arg4: memref<8x128xi32, #tpu.memory_space<vmem>>, %arg5: memref<8x128xi32, #tpu.memory_space<vmem>>) attributes {dimension_semantics = [#tpu.dimension_semantics<parallel>], iteration_bounds = array<i64: 1>, scalar_prefetch = 0 : i64, scratch_operands = 0 : i64, tpu.core_type = #tpu.core_type<tc>, window_params = [{transform_indices = @transform_0, window_bounds = array<i64: 8, 128>}, {transform_indices = @transform_1, window_bounds = array<i64: 8, 128>}, {transform_indices = @transform_2, window_bounds = array<i64: 8, 128>}, {transform_indices = @transform_3, window_bounds = array<i64: 8, 128>}, {transform_indices = @transform_4, window_bounds = array<i64: 8, 128>}]} {
    %c0 = arith.constant 0 : index
    %c0_0 = arith.constant 0 : index
    %0 = vector.load %arg1[%c0, %c0_0] : memref<8x128xi32, #tpu.memory_space<vmem>>, vector<8x128xi32>
    %false = arith.constant false
    %1 = vector.broadcast %false : i1 to vector<8x128xi1>
    %c0_i32 = arith.constant 0 : i32
    %2 = vector.broadcast %c0_i32 : i32 to vector<8x128xi32>
    %3 = arith.cmpi eq, %0, %2 : vector<8x128xi32>
    %4 = arith.ori %1, %3 : vector<8x128xi1>
    %cst = arith.constant dense<true> : vector<8x128xi1>
    %5 = arith.xori %4, %cst : vector<8x128xi1>
    %6 = arith.extui %5 : vector<8x128xi1> to vector<8x128xi32>
    %7 = arith.sitofp %6 : vector<8x128xi32> to vector<8x128xf32>
    %8 = tpu.iota {dimensions = array<i32: 1>} : vector<8x128xi32>
    %9 = tpu.iota {dimensions = array<i32: 0>} : vector<128x128xi32>
    %10 = tpu.iota {dimensions = array<i32: 1>} : vector<128x128xi32>
    %11 = arith.cmpi sle, %9, %10 : vector<128x128xi32>
    %12 = arith.extui %11 : vector<128x128xi1> to vector<128x128xi32>
    %13 = arith.sitofp %12 : vector<128x128xi32> to vector<128x128xf32>
    %cst_1 = arith.constant dense<0.000000e+00> : vector<8x128xf32>
    %14 = tpu.matmul %7, %13, %cst_1 {dimension_numbers = #tpu.dot_dimension_numbers<[1], [0], [0], [1], [0, 0, 1, 1], [], []>} : vector<8x128xf32>, vector<128x128xf32>, vector<8x128xf32> -> vector<8x128xf32>
    %cst_2 = arith.constant dense<0.000000e+00> : vector<8xf32>
    %15 = vector.multi_reduction <add>, %7, %cst_2 [1] : vector<8x128xf32> to vector<8xf32>
    %16 = vector.shape_cast %15 : vector<8xf32> to vector<8x1xf32>
    %cst_3 = arith.constant 1.500000e-01 : f32
    %17 = vector.broadcast %cst_3 : f32 to vector<8x1xf32>
    %18 = arith.mulf %16, %17 : vector<8x1xf32>
    %19 = math.ceil %18 : vector<8x1xf32>
    %c20_i32 = arith.constant 20 : i32
    %20 = vector.broadcast %c20_i32 : i32 to vector<8x128xi32>
    %21 = arith.cmpi slt, %8, %20 : vector<8x128xi32>
    %22 = vector.broadcast %19 : vector<8x1xf32> to vector<8x128xf32>
    %23 = arith.cmpf ole, %14, %22 : vector<8x128xf32>
    %24 = arith.andi %21, %23 : vector<8x128xi1>
    %25 = arith.extui %24 : vector<8x128xi1> to vector<8x128xi32>
    %26 = arith.sitofp %25 : vector<8x128xi32> to vector<8x128xf32>
    %cst_4 = arith.constant dense<0.000000e+00> : vector<8xf32>
    %27 = vector.multi_reduction <add>, %26, %cst_4 [1] : vector<8x128xf32> to vector<8xf32>
    %28 = vector.shape_cast %27 : vector<8xf32> to vector<8x1xf32>
    %c0_5 = arith.constant 0 : index
    %c0_6 = arith.constant 0 : index
    %29 = vector.load %arg2[%c0_5, %c0_6] : memref<8x128xi32, #tpu.memory_space<vmem>>, vector<8x128xi32>
    %c7_i32 = arith.constant 7 : i32
    %30 = vector.broadcast %c7_i32 : i32 to vector<8x128xi32>
    %31 = arith.shli %29, %30 : vector<8x128xi32>
    %c127_i32 = arith.constant 127 : i32
    %32 = vector.broadcast %c127_i32 : i32 to vector<8x128xi32>
    %33 = arith.subi %32, %8 : vector<8x128xi32>
    %34 = arith.addi %31, %33 : vector<8x128xi32>
    %c1_i32 = arith.constant 1 : i32
    %35 = vector.broadcast %c1_i32 : i32 to vector<8x128xi32>
    %36 = arith.addi %8, %35 : vector<8x128xi32>
    %c0_i32_7 = arith.constant 0 : i32
    %37 = vector.broadcast %c0_i32_7 : i32 to vector<8x128xi32>
    %38 = arith.subi %37, %36 : vector<8x128xi32>
    %39 = arith.select %5, %34, %38 : vector<8x128xi1>, vector<8x128xi32>
    %40 = vector.shape_cast %39 : vector<8x128xi32> to vector<8x1x128xi32>
    %41 = vector.shape_cast %39 : vector<8x128xi32> to vector<8x128x1xi32>
    %42 = vector.broadcast %40 : vector<8x1x128xi32> to vector<8x128x128xi32>
    %43 = vector.broadcast %41 : vector<8x128x1xi32> to vector<8x128x128xi32>
    %44 = arith.cmpi sgt, %42, %43 : vector<8x128x128xi32>
    %45 = arith.extui %44 : vector<8x128x128xi1> to vector<8x128x128xi32>
    %46 = arith.sitofp %45 : vector<8x128x128xi32> to vector<8x128x128xf32>
    %cst_8 = arith.constant dense<0.000000e+00> : vector<8x128xf32>
    %47 = vector.multi_reduction <add>, %46, %cst_8 [2] : vector<8x128x128xf32> to vector<8x128xf32>
    %48 = vector.broadcast %28 : vector<8x1xf32> to vector<8x128xf32>
    %49 = arith.cmpf olt, %47, %48 : vector<8x128xf32>
    %c0_i32_9 = arith.constant 0 : i32
    %50 = vector.broadcast %c0_i32_9 : i32 to vector<8x128xi32>
    %51 = arith.select %49, %0, %50 : vector<8x128xi1>, vector<8x128xi32>
    %c0_10 = arith.constant 0 : index
    %c0_11 = arith.constant 0 : index
    %52 = vector.load %arg3[%c0_10, %c0_11] : memref<8x128xi32, #tpu.memory_space<vmem>>, vector<8x128xi32>
    %c15099494_i32 = arith.constant 15099494 : i32
    %53 = vector.broadcast %c15099494_i32 : i32 to vector<8x128xi32>
    %54 = arith.cmpi slt, %52, %53 : vector<8x128xi32>
    %55 = arith.andi %49, %54 : vector<8x128xi1>
    %c2_i32 = arith.constant 2 : i32
    %56 = vector.broadcast %c2_i32 : i32 to vector<8x128xi32>
    %57 = arith.select %55, %56, %0 : vector<8x128xi1>, vector<8x128xi32>
    %c0_12 = arith.constant 0 : index
    %c0_13 = arith.constant 0 : index
    %58 = vector.load %arg4[%c0_12, %c0_13] : memref<8x128xi32, #tpu.memory_space<vmem>>, vector<8x128xi32>
    tpu.vector_store %arg4[%c0_12, %c0_13], %57 {strides = array<i32>} : memref<8x128xi32, #tpu.memory_space<vmem>>, vector<8x128xi32>,
    %c0_14 = arith.constant 0 : index
    %c0_15 = arith.constant 0 : index
    %59 = vector.load %arg5[%c0_14, %c0_15] : memref<8x128xi32, #tpu.memory_space<vmem>>, vector<8x128xi32>
    tpu.vector_store %arg5[%c0_14, %c0_15], %51 {strides = array<i32>} : memref<8x128xi32, #tpu.memory_space<vmem>>, vector<8x128xi32>,
    return
  }
  func.func @transform_0(%arg0: i32) -> (i32, i32) {
    %c0_i32 = arith.constant 0 : i32
    %c0_i32_0 = arith.constant 0 : i32
    return %arg0, %c0_i32 : i32, i32
  }
  func.func @transform_1(%arg0: i32) -> (i32, i32) {
    %c0_i32 = arith.constant 0 : i32
    %c0_i32_0 = arith.constant 0 : i32
    return %arg0, %c0_i32 : i32, i32
  }
  func.func @transform_2(%arg0: i32) -> (i32, i32) {
    %c0_i32 = arith.constant 0 : i32
    %c0_i32_0 = arith.constant 0 : i32
    return %arg0, %c0_i32 : i32, i32
  }
  func.func @transform_3(%arg0: i32) -> (i32, i32) {
    %c0_i32 = arith.constant 0 : i32
    %c0_i32_0 = arith.constant 0 : i32
    return %arg0, %c0_i32 : i32, i32
  }
  func.func @transform_4(%arg0: i32) -> (i32, i32) {
    %c0_i32 = arith.constant 0 : i32
    %c0_i32_0 = arith.constant 0 : i32
    return %arg0, %c0_i32 : i32, i32
  }
}

</mosaic_0001>

<llo_original>
// kernel: tpu_custom_call.1
$region0: #{tpu_custom_call.1}
  #allocation0 [shape = 'u32[]', space=smem, size = 0x4, offset = 0x4, fixed_abs, tag = 'smem constant byte address 0x4 - core index']
  #allocation1 [shape = 'u32[144,128]{1,0:T(1,128)}', space=vmem, size = 0x12000, scoped, tag = 'internal scratch']
  %s0 = inlined_call_operand.hbm [shape: s32[8,128], index: 0, kind: input, shape index: {}]
  %s1 = inlined_call_operand.hbm [shape: s32[8,128], index: 1, kind: input, shape index: {}]
  %s2 = inlined_call_operand.hbm [shape: s32[8,128], index: 2, kind: input, shape index: {}]
  %s3 = inlined_call_operand.hbm [shape: s32[8,128], index: 3, kind: output, shape index: {0}]
  %s4 = inlined_call_operand.hbm [shape: s32[8,128], index: 4, kind: output, shape index: {1}]
  %5 = xla_tuple %s3, %s4
  %s6 = sld [smem:[#allocation0]]
  $region42: #{tpu_custom_call.1} parent=0
    _
  %s8 = ssub.s32 1, %s6
  %s9 = scalar_select 0, %s8, %s6
  $region1: #{tpu_custom_call.1} parent=0
    #allocation2 [shape = 'u8[4096]{0}', space=vmem, size = 0x1000, scoped, tag = 'input window, operand 0, single buffered']
    #allocation3 [shape = 's32[1]{0}', space=sflag, size = 0x4, scoped, tag = 'scoped memory for tpu_custom_call.1']
    #allocation4 [shape = 's32[1]{0}', space=sflag, size = 0x4, scoped, tag = 'scoped memory for tpu_custom_call.1']
    #allocation5 [shape = 'u8[4096]{0}', space=vmem, size = 0x1000, scoped, tag = 'input window, operand 1, single buffered']
    #allocation6 [shape = 's32[1]{0}', space=sflag, size = 0x4, scoped, tag = 'scoped memory for tpu_custom_call.1']
    #allocation7 [shape = 'u8[4096]{0}', space=vmem, size = 0x1000, scoped, tag = 'input window, operand 2, single buffered']
    #allocation8 [shape = 'u8[4096]{0}', space=vmem, size = 0x1000, scoped, tag = 'output window, operand 0, single buffered']
    #allocation9 [shape = 'u8[4096]{0}', space=vmem, size = 0x1000, scoped, tag = 'output window, operand 1, single buffered']
    #allocation10 [shape = 's32[1]{0}', space=sflag, size = 0x4, scoped, tag = 'scoped memory for tpu_custom_call.1']
    %10 = vsyncpa [#allocation3], 0
    %11 = vsyncpa [#allocation6], 0
    %12 = vsyncpa [#allocation4], 0
    %13 = vsyncpa [#allocation10], 0
    // Predicated region
    $region2: #{tpu_custom_call.1} parent=1 // pred_check
      _
    $region3: #{tpu_custom_call.1} parent=1 // pred_check_branch
      %15 = sbr.rel (0) target = $region5
    $region4: #{tpu_custom_call.1} parent=1 // pred_region
      %s17 = ssub.s32 128, 128
      %18 = vsyncadd [#allocation3], %s17
      %s20 = sshll.u32 [#allocation2], 4
      %s21 = int_to_ptr.vmem [resolvable:$true] %s20
      %23 = dma.hbm_to_vmem [thread:$0]  %s0, 128, %s21, [#allocation3]
    $region5: #{tpu_custom_call.1} parent=1 // pred_fallthru
      _
    // Predicated region
    $region6: #{tpu_custom_call.1} parent=1 // pred_check
      _
    $region7: #{tpu_custom_call.1} parent=1 // pred_check_branch
      %25 = sbr.rel (0) target = $region9
    $region8: #{tpu_custom_call.1} parent=1 // pred_region
      %s27 = ssub.s32 128, 128
      %28 = vsyncadd [#allocation6], %s27
      %s30 = sshll.u32 [#allocation5], 4
      %s31 = int_to_ptr.vmem [resolvable:$true] %s30
      %33 = dma.hbm_to_vmem [thread:$0]  %s1, 128, %s31, [#allocation6]
    $region9: #{tpu_custom_call.1} parent=1 // pred_fallthru
      _
    // Predicated region
    $region10: #{tpu_custom_call.1} parent=1 // pred_check
      _
    $region11: #{tpu_custom_call.1} parent=1 // pred_check_branch
      %35 = sbr.rel (0) target = $region13
    $region12: #{tpu_custom_call.1} parent=1 // pred_region
      %s37 = ssub.s32 128, 128
      %38 = vsyncadd [#allocation6], %s37
      %s40 = sshll.u32 [#allocation7], 4
      %s41 = int_to_ptr.vmem [resolvable:$true] %s40
      %43 = dma.hbm_to_vmem [thread:$0]  %s2, 128, %s41, [#allocation6]
    $region13: #{tpu_custom_call.1} parent=1 // pred_fallthru
      _
    // Predicated region
    $region14: #{tpu_custom_call.1} parent=1 // pred_check
      _
    $region15: #{tpu_custom_call.1} parent=1 // pred_check_branch
      %45 = sbr.rel (0) target = $region17
    $region16: #{tpu_custom_call.1} parent=1 // pred_region
      %46 = dma.done [#allocation3], 128
    $region17: #{tpu_custom_call.1} parent=1 // pred_fallthru
      _
    // Predicated region
    $region18: #{tpu_custom_call.1} parent=1 // pred_check
      _
    $region19: #{tpu_custom_call.1} parent=1 // pred_check_branch
      %48 = sbr.rel (0) target = $region21
    $region20: #{tpu_custom_call.1} parent=1 // pred_region
      %49 = dma.done [#allocation6], 128
    $region21: #{tpu_custom_call.1} parent=1 // pred_fallthru
      _
    // Predicated region
    $region22: #{tpu_custom_call.1} parent=1 // pred_check
      _
    $region23: #{tpu_custom_call.1} parent=1 // pred_check_branch
      %51 = sbr.rel (0) target = $region25
    $region24: #{tpu_custom_call.1} parent=1 // pred_region
      %52 = dma.done [#allocation6], 128
    $region25: #{tpu_custom_call.1} parent=1 // pred_fallthru
      _
    %v53 = vld [vmem:[#allocation2] sm:$0xff]
    %vm54 = vcmp.eq.s32.totalorder %v53, 0
    %vm55 = vmxor %vm54, 1
    %v56 = vsel %vm55, 1, 0
    %v57 = vcvt.s32.f32 %v56
    %v58 = vlaneseq
    %v59 = vand.u32 %v58, 127
    %v60 = vlaneseq
    %v61 = vshrl.u32 %v60, 7
    %v62 = vadd.s32 %v61, 8
    %v63 = vadd.s32 %v61, 16
    %v64 = vadd.s32 %v61, 24
    %v65 = vadd.s32 %v61, 32
    %v66 = vadd.s32 %v61, 40
    %v67 = vadd.s32 %v61, 48
    %v68 = vadd.s32 %v61, 56
    %v69 = vadd.s32 %v61, 64
    %v70 = vadd.s32 %v61, 72
    %v71 = vadd.s32 %v61, 80
    %v72 = vadd.s32 %v61, 88
    %v73 = vadd.s32 %v61, 96
    %v74 = vadd.s32 %v61, 104
    %v75 = vadd.s32 %v61, 112
    %v76 = vadd.s32 %v61, 120
    %vm77 = vcmp.le.s32.totalorder %v61, %v59
    %vm78 = vcmp.le.s32.totalorder %v62, %v59
    %vm79 = vcmp.le.s32.totalorder %v63, %v59
    %vm80 = vcmp.le.s32.totalorder %v64, %v59
    %vm81 = vcmp.le.s32.totalorder %v65, %v59
    %vm82 = vcmp.le.s32.totalorder %v66, %v59
    %vm83 = vcmp.le.s32.totalorder %v67, %v59
    %vm84 = vcmp.le.s32.totalorder %v68, %v59
    %vm85 = vcmp.le.s32.totalorder %v69, %v59
    %vm86 = vcmp.le.s32.totalorder %v70, %v59
    %vm87 = vcmp.le.s32.totalorder %v71, %v59
    %vm88 = vcmp.le.s32.totalorder %v72, %v59
    %vm89 = vcmp.le.s32.totalorder %v73, %v59
    %vm90 = vcmp.le.s32.totalorder %v74, %v59
    %vm91 = vcmp.le.s32.totalorder %v75, %v59
    %vm92 = vcmp.le.s32.totalorder %v76, %v59
    %v93 = vsel %vm77, 1, 0
    %v94 = vsel %vm78, 1, 0
    %v95 = vsel %vm79, 1, 0
    %v96 = vsel %vm80, 1, 0
    %v97 = vsel %vm81, 1, 0
    %v98 = vsel %vm82, 1, 0
    %v99 = vsel %vm83, 1, 0
    %v100 = vsel %vm84, 1, 0
    %v101 = vsel %vm85, 1, 0
    %v102 = vsel %vm86, 1, 0
    %v103 = vsel %vm87, 1, 0
    %v104 = vsel %vm88, 1, 0
    %v105 = vsel %vm89, 1, 0
    %v106 = vsel %vm90, 1, 0
    %v107 = vsel %vm91, 1, 0
    %v108 = vsel %vm92, 1, 0
    %v109 = vcvt.s32.f32 %v93
    %v110 = vcvt.s32.f32 %v94
    %v111 = vcvt.s32.f32 %v95
    %v112 = vcvt.s32.f32 %v96
    %v113 = vcvt.s32.f32 %v97
    %v114 = vcvt.s32.f32 %v98
    %v115 = vcvt.s32.f32 %v99
    %v116 = vcvt.s32.f32 %v100
    %v117 = vcvt.s32.f32 %v101
    %v118 = vcvt.s32.f32 %v102
    %v119 = vcvt.s32.f32 %v103
    %v120 = vcvt.s32.f32 %v104
    %v121 = vcvt.s32.f32 %v105
    %v122 = vcvt.s32.f32 %v106
    %v123 = vcvt.s32.f32 %v107
    %v124 = vcvt.s32.f32 %v108
    %125 = vmatprep.subr.mxu0 0.0
    %126 = vmatpush1.msra.mxu0 %v109
    %127 = vmatprep.subr.mxu0 0.0
    %128 = vmatpush1.msra.mxu0 %v110
    %129 = vmatprep.subr.mxu0 0.0
    %130 = vmatpush1.msra.mxu0 %v111
    %131 = vmatprep.subr.mxu0 0.0
    %132 = vmatpush1.msra.mxu0 %v112
    %133 = vmatprep.subr.mxu0 0.0
    %134 = vmatpush1.msra.mxu0 %v113
    %135 = vmatprep.subr.mxu0 0.0
    %136 = vmatpush1.msra.mxu0 %v114
    %137 = vmatprep.subr.mxu0 0.0
    %138 = vmatpush1.msra.mxu0 %v115
    %139 = vmatprep.subr.mxu0 0.0
    %140 = vmatpush1.msra.mxu0 %v116
    %141 = vmatprep.subr.mxu0 0.0
    %142 = vmatpush1.msra.mxu0 %v117
    %143 = vmatprep.subr.mxu0 0.0
    %144 = vmatpush1.msra.mxu0 %v118
    %145 = vmatprep.subr.mxu0 0.0
    %146 = vmatpush1.msra.mxu0 %v119
    %147 = vmatprep.subr.mxu0 0.0
    %148 = vmatpush1.msra.mxu0 %v120
    %149 = vmatprep.subr.mxu0 0.0
    %150 = vmatpush1.msra.mxu0 %v121
    %151 = vmatprep.subr.mxu0 0.0
    %152 = vmatpush1.msra.mxu0 %v122
    %153 = vmatprep.subr.mxu0 0.0
    %154 = vmatpush1.msra.mxu0 %v123
    %155 = vmatprep.subr.mxu0 0.0
    %156 = vmatpush1.msra.mxu0 %v124
    %157 = vmatprep.subr.mxu0 0.0
    %158 = vmatpush1.msra.mxu0 0.0
    %159 = vmatprep.subr.mxu0 0.0
    %160 = vmatpush1.msra.mxu0 0.0
    %161 = vmatprep.subr.mxu0 0.0
    %162 = vmatpush1.msra.mxu0 0.0
    %163 = vmatprep.subr.mxu0 0.0
    %164 = vmatpush1.msra.mxu0 0.0
    %165 = vmatprep.subr.mxu0 0.0
    %166 = vmatpush1.msra.mxu0 0.0
    %167 = vmatprep.subr.mxu0 0.0
    %168 = vmatpush1.msra.mxu0 0.0
    %169 = vmatprep.subr.mxu0 0.0
    %170 = vmatpush1.msra.mxu0 0.0
    %171 = vmatprep.subr.mxu0 0.0
    %172 = vmatpush1.msra.mxu0 0.0
    %173 = vmatprep.subr.mxu0 0.0
    %174 = vmatpush1.msra.mxu0 0.0
    %175 = vmatprep.subr.mxu0 0.0
    %176 = vmatpush1.msra.mxu0 0.0
    %177 = vmatprep.subr.mxu0 0.0
    %178 = vmatpush1.msra.mxu0 0.0
    %179 = vmatprep.subr.mxu0 0.0
    %180 = vmatpush1.msra.mxu0 0.0
    %181 = vmatprep.subr.mxu0 0.0
    %182 = vmatpush1.msra.mxu0 0.0
    %183 = vmatprep.subr.mxu0 0.0
    %184 = vmatpush1.msra.mxu0 0.0
    %185 = vmatprep.subr.mxu0 0.0
    %186 = vmatpush1.msra.mxu0 0.0
    %187 = vmatprep.subr.mxu0 0.0
    %188 = vmatpush1.msra.mxu0 0.0
    %189 = vmatprep.mubr.f32.mxu0 0.0
    %190 = vmatmul.mubr.f32.gmra.mrb[0].mxu0 %v57
    %v191 = vpop.f32.mrb[0].mxu0
    %v192 = vadd.f32 0.0, %v191
    %v193 = vpop.f32.mrb[0].mxu0
    %194 = vdwg.mxu0
    %195 = vadd.xlane.f32.xlu0 %v57
    %v196 = vpop.xlane.xlu0 %195
    %v197 = vmul.f32 %v196, 0.15
    %v198 = vceil.f32 %v197
    %vm199 = vcmp.lt.s32.totalorder %v59, 20
    %vm200 = vcmp.le.f32.partialorder %v192, %v198
    %vm201 = vmand %vm199, %vm200
    %v202 = vsel %vm201, 1, 0
    %v203 = vcvt.s32.f32 %v202
    %204 = vadd.xlane.f32.xlu0 %v203
    %v205 = vpop.xlane.xlu0 %204
    %v206 = vld [vmem:[#allocation5] sm:$0xff]
    %v207 = vshll.u32 %v206, 7
    %v208 = vsub.s32 127, %v59
    %v209 = vadd.s32 %v207, %v208
    %v210 = vadd.s32 %v59, 1
    %v211 = vsub.s32 0, %v210
    %v212 = vsel %vm55, %v209, %v211
    %v213 = vcombine.high %v212, %v212
    %v215 = vunpack.c.l.s4 1966171168
    %v216 = vunpack.c.0.s8 %v215
    %v217 = vlaneseq
    %v218 = vshrl.u32 %v217, 7
    %v219 = vsub.s32 %v216, %v218
    %v220 = vrot.slane %v212, %v219
    %v222 = vunpack.c.l.s4 1966171168
    %v223 = vunpack.c.0.s8 %v222
    %v224 = vlaneseq
    %v225 = vshrl.u32 %v224, 7
    %v226 = vsub.s32 %v223, %v225
    %v227 = vrot.slane %v213, %v226
    %v228 = vcombine.high %v220, %v220
    %v229 = vcombine.high %v227, %v227
    %v231 = vunpack.c.l.s4 1966171168
    %v232 = vunpack.c.0.s8 %v231
    %v233 = vlaneseq
    %v234 = vshrl.u32 %v233, 7
    %v235 = vsub.s32 %v232, %v234
    %v236 = vrot.slane %v220, %v235
    %v238 = vunpack.c.l.s4 1966171168
    %v239 = vunpack.c.0.s8 %v238
    %v240 = vlaneseq
    %v241 = vshrl.u32 %v240, 7
    %v242 = vsub.s32 %v239, %v241
    %v243 = vrot.slane %v227, %v242
    %v245 = vunpack.c.l.s4 1966171168
    %v246 = vunpack.c.0.s8 %v245
    %v247 = vlaneseq
    %v248 = vshrl.u32 %v247, 7
    %v249 = vsub.s32 %v246, %v248
    %v250 = vrot.slane %v228, %v249
    %v252 = vunpack.c.l.s4 1966171168
    %v253 = vunpack.c.0.s8 %v252
    %v254 = vlaneseq
    %v255 = vshrl.u32 %v254, 7
    %v256 = vsub.s32 %v253, %v255
    %v257 = vrot.slane %v229, %v256
    %v258 = vcombine.high %v236, %v236
    %v259 = vcombine.high %v243, %v243
    %v260 = vcombine.high %v250, %v250
    %v261 = vcombine.high %v257, %v257
    %v262 = vlaneseq
    %v263 = vshrl.u32 %v262, 7
    %v264 = vsub.s32 0, %v263
    %v265 = vrot.slane %v212, %v264
    %267 = vbcast.lane.b32.xlu0 %v265, 256
    %v268 = vpop.permute.xlu0 %267
    %s270 = sor.u32 256, 8
    %271 = vbcast.lane.b32.xlu0 %v265, %s270
    %v272 = vpop.permute.xlu0 %271
    %s274 = sor.u32 256, 16
    %275 = vbcast.lane.b32.xlu0 %v265, %s274
    %v276 = vpop.permute.xlu0 %275
    %s278 = sor.u32 256, 24
    %279 = vbcast.lane.b32.xlu0 %v265, %s278
    %v280 = vpop.permute.xlu0 %279
    %s282 = sor.u32 256, 32
    %283 = vbcast.lane.b32.xlu0 %v265, %s282
    %v284 = vpop.permute.xlu0 %283
    %s286 = sor.u32 256, 40
    %287 = vbcast.lane.b32.xlu0 %v265, %s286
    %v288 = vpop.permute.xlu0 %287
    %s290 = sor.u32 256, 48
    %291 = vbcast.lane.b32.xlu0 %v265, %s290
    %v292 = vpop.permute.xlu0 %291
    %s294 = sor.u32 256, 56
    %295 = vbcast.lane.b32.xlu0 %v265, %s294
    %v296 = vpop.permute.xlu0 %295
    %s298 = sor.u32 256, 64
    %299 = vbcast.lane.b32.xlu0 %v265, %s298
    %v300 = vpop.permute.xlu0 %299
    %s302 = sor.u32 256, 72
    %303 = vbcast.lane.b32.xlu0 %v265, %s302
    %v304 = vpop.permute.xlu0 %303
    %s306 = sor.u32 256, 80
    %307 = vbcast.lane.b32.xlu0 %v265, %s306
    %v308 = vpop.permute.xlu0 %307
    %s310 = sor.u32 256, 88
    %311 = vbcast.lane.b32.xlu0 %v265, %s310
    %v312 = vpop.permute.xlu0 %311
    %s314 = sor.u32 256, 96
    %315 = vbcast.lane.b32.xlu0 %v265, %s314
    %v316 = vpop.permute.xlu0 %315
    %s318 = sor.u32 256, 104
    %319 = vbcast.lane.b32.xlu0 %v265, %s318
    %v320 = vpop.permute.xlu0 %319
    %s322 = sor.u32 256, 112
    %323 = vbcast.lane.b32.xlu0 %v265, %s322
    %v324 = vpop.permute.xlu0 %323
    %s326 = sor.u32 256, 120
    %327 = vbcast.lane.b32.xlu0 %v265, %s326
    %v328 = vpop.permute.xlu0 %327
    %v329 = vlaneseq
    %v330 = vshrl.u32 %v329, 7
    %v331 = vsub.s32 1, %v330
    %v332 = vrot.slane %v212, %v331
    %334 = vbcast.lane.b32.xlu0 %v332, 256
    %v335 = vpop.permute.xlu0 %334
    %s337 = sor.u32 256, 8
    %338 = vbcast.lane.b32.xlu0 %v332, %s337
    %v339 = vpop.permute.xlu0 %338
    %s341 = sor.u32 256, 16
    %342 = vbcast.lane.b32.xlu0 %v332, %s341
    %v343 = vpop.permute.xlu0 %342
    %s345 = sor.u32 256, 24
    %346 = vbcast.lane.b32.xlu0 %v332, %s345
    %v347 = vpop.permute.xlu0 %346
    %s349 = sor.u32 256, 32
    %350 = vbcast.lane.b32.xlu0 %v332, %s349
    %v351 = vpop.permute.xlu0 %350
    %s353 = sor.u32 256, 40
    %354 = vbcast.lane.b32.xlu0 %v332, %s353
    %v355 = vpop.permute.xlu0 %354
    %s357 = sor.u32 256, 48
    %358 = vbcast.lane.b32.xlu0 %v332, %s357
    %v359 = vpop.permute.xlu0 %358
    %s361 = sor.u32 256, 56
    %362 = vbcast.lane.b32.xlu0 %v332, %s361
    %v363 = vpop.permute.xlu0 %362
    %s365 = sor.u32 256, 64
    %366 = vbcast.lane.b32.xlu0 %v332, %s365
    %v367 = vpop.permute.xlu0 %366
    %s369 = sor.u32 256, 72
    %370 = vbcast.lane.b32.xlu0 %v332, %s369
    %v371 = vpop.permute.xlu0 %370
    %s373 = sor.u32 256, 80
    %374 = vbcast.lane.b32.xlu0 %v332, %s373
    %v375 = vpop.permute.xlu0 %374
    %s377 = sor.u32 256, 88
    %378 = vbcast.lane.b32.xlu0 %v332, %s377
    %v379 = vpop.permute.xlu0 %378
    %s381 = sor.u32 256, 96
    %382 = vbcast.lane.b32.xlu0 %v332, %s381
    %v383 = vpop.permute.xlu0 %382
    %s385 = sor.u32 256, 104
    %386 = vbcast.lane.b32.xlu0 %v332, %s385
    %v387 = vpop.permute.xlu0 %386
    %s389 = sor.u32 256, 112
    %390 = vbcast.lane.b32.xlu0 %v332, %s389
    %v391 = vpop.permute.xlu0 %390
    %s393 = sor.u32 256, 120
    %394 = vbcast.lane.b32.xlu0 %v332, %s393
    %v395 = vpop.permute.xlu0 %394
    %v396 = vlaneseq
    %v397 = vshrl.u32 %v396, 7
    %v398 = vsub.s32 2, %v397
    %v399 = vrot.slane %v212, %v398
    %401 = vbcast.lane.b32.xlu0 %v399, 256
    %v402 = vpop.permute.xlu0 %401
    %s404 = sor.u32 256, 8
    %405 = vbcast.lane.b32.xlu0 %v399, %s404
    %v406 = vpop.permute.xlu0 %405
    %s408 = sor.u32 256, 16
    %409 = vbcast.lane.b32.xlu0 %v399, %s408
    %v410 = vpop.permute.xlu0 %409
    %s412 = sor.u32 256, 24
    %413 = vbcast.lane.b32.xlu0 %v399, %s412
    %v414 = vpop.permute.xlu0 %413
    %s416 = sor.u32 256, 32
    %417 = vbcast.lane.b32.xlu0 %v399, %s416
    %v418 = vpop.permute.xlu0 %417
    %s420 = sor.u32 256, 40
    %421 = vbcast.lane.b32.xlu0 %v399, %s420
    %v422 = vpop.permute.xlu0 %421
    %s424 = sor.u32 256, 48
    %425 = vbcast.lane.b32.xlu0 %v399, %s424
    %v426 = vpop.permute.xlu0 %425
    %s428 = sor.u32 256, 56
    %429 = vbcast.lane.b32.xlu0 %v399, %s428
    %v430 = vpop.permute.xlu0 %429
    %s432 = sor.u32 256, 64
    %433 = vbcast.lane.b32.xlu0 %v399, %s432
    %v434 = vpop.permute.xlu0 %433
    %s436 = sor.u32 256, 72
    %437 = vbcast.lane.b32.xlu0 %v399, %s436
    %v438 = vpop.permute.xlu0 %437
    %s440 = sor.u32 256, 80
    %441 = vbcast.lane.b32.xlu0 %v399, %s440
    %v442 = vpop.permute.xlu0 %441
    %s444 = sor.u32 256, 88
    %445 = vbcast.lane.b32.xlu0 %v399, %s444
    %v446 = vpop.permute.xlu0 %445
    %s448 = sor.u32 256, 96
    %449 = vbcast.lane.b32.xlu0 %v399, %s448
    %v450 = vpop.permute.xlu0 %449
    %s452 = sor.u32 256, 104
    %453 = vbcast.lane.b32.xlu0 %v399, %s452
    %v454 = vpop.permute.xlu0 %453
    %s456 = sor.u32 256, 112
    %457 = vbcast.lane.b32.xlu0 %v399, %s456
    %v458 = vpop.permute.xlu0 %457
    %s460 = sor.u32 256, 120
    %461 = vbcast.lane.b32.xlu0 %v399, %s460
    %v462 = vpop.permute.xlu0 %461
    %v463 = vlaneseq
    %v464 = vshrl.u32 %v463, 7
    %v465 = vsub.s32 3, %v464
    %v466 = vrot.slane %v212, %v465
    %468 = vbcast.lane.b32.xlu0 %v466, 256
    %v469 = vpop.permute.xlu0 %468
    %s471 = sor.u32 256, 8
    %472 = vbcast.lane.b32.xlu0 %v466, %s471
    %v473 = vpop.permute.xlu0 %472
    %s475 = sor.u32 256, 16
    %476 = vbcast.lane.b32.xlu0 %v466, %s475
    %v477 = vpop.permute.xlu0 %476
    %s479 = sor.u32 256, 24
    %480 = vbcast.lane.b32.xlu0 %v466, %s479
    %v481 = vpop.permute.xlu0 %480
    %s483 = sor.u32 256, 32
    %484 = vbcast.lane.b32.xlu0 %v466, %s483
    %v485 = vpop.permute.xlu0 %484
    %s487 = sor.u32 256, 40
    %488 = vbcast.lane.b32.xlu0 %v466, %s487
    %v489 = vpop.permute.xlu0 %488
    %s491 = sor.u32 256, 48
    %492 = vbcast.lane.b32.xlu0 %v466, %s491
    %v493 = vpop.permute.xlu0 %492
    %s495 = sor.u32 256, 56
    %496 = vbcast.lane.b32.xlu0 %v466, %s495
    %v497 = vpop.permute.xlu0 %496
    %s499 = sor.u32 256, 64
    %500 = vbcast.lane.b32.xlu0 %v466, %s499
    %v501 = vpop.permute.xlu0 %500
    %s503 = sor.u32 256, 72
    %504 = vbcast.lane.b32.xlu0 %v466, %s503
    %v505 = vpop.permute.xlu0 %504
    %s507 = sor.u32 256, 80
    %508 = vbcast.lane.b32.xlu0 %v466, %s507
    %v509 = vpop.permute.xlu0 %508
    %s511 = sor.u32 256, 88
    %512 = vbcast.lane.b32.xlu0 %v466, %s511
    %v513 = vpop.permute.xlu0 %512
    %s515 = sor.u32 256, 96
    %516 = vbcast.lane.b32.xlu0 %v466, %s515
    %v517 = vpop.permute.xlu0 %516
    %s519 = sor.u32 256, 104
    %520 = vbcast.lane.b32.xlu0 %v466, %s519
    %v521 = vpop.permute.xlu0 %520
    %s523 = sor.u32 256, 112
    %524 = vbcast.lane.b32.xlu0 %v466, %s523
    %v525 = vpop.permute.xlu0 %524
    %s527 = sor.u32 256, 120
    %528 = vbcast.lane.b32.xlu0 %v466, %s527
    %v529 = vpop.permute.xlu0 %528
    %v530 = vlaneseq
    %v531 = vshrl.u32 %v530, 7
    %v532 = vsub.s32 4, %v531
    %v533 = vrot.slane %v212, %v532
    %535 = vbcast.lane.b32.xlu0 %v533, 256
    %v536 = vpop.permute.xlu0 %535
    %s538 = sor.u32 256, 8
    %539 = vbcast.lane.b32.xlu0 %v533, %s538
    %v540 = vpop.permute.xlu0 %539
    %s542 = sor.u32 256, 16
    %543 = vbcast.lane.b32.xlu0 %v533, %s542
    %v544 = vpop.permute.xlu0 %543
    %s546 = sor.u32 256, 24
    %547 = vbcast.lane.b32.xlu0 %v533, %s546
    %v548 = vpop.permute.xlu0 %547
    %s550 = sor.u32 256, 32
    %551 = vbcast.lane.b32.xlu0 %v533, %s550
    %v552 = vpop.permute.xlu0 %551
    %s554 = sor.u32 256, 40
    %555 = vbcast.lane.b32.xlu0 %v533, %s554
    %v556 = vpop.permute.xlu0 %555
    %s558 = sor.u32 256, 48
    %559 = vbcast.lane.b32.xlu0 %v533, %s558
    %v560 = vpop.permute.xlu0 %559
    %s562 = sor.u32 256, 56
    %563 = vbcast.lane.b32.xlu0 %v533, %s562
    %v564 = vpop.permute.xlu0 %563
    %s566 = sor.u32 256, 64
    %567 = vbcast.lane.b32.xlu0 %v533, %s566
    %v568 = vpop.permute.xlu0 %567
    %s570 = sor.u32 256, 72
    %571 = vbcast.lane.b32.xlu0 %v533, %s570
    %v572 = vpop.permute.xlu0 %571
    %s574 = sor.u32 256, 80
    %575 = vbcast.lane.b32.xlu0 %v533, %s574
    %v576 = vpop.permute.xlu0 %575
    %s578 = sor.u32 256, 88
    %579 = vbcast.lane.b32.xlu0 %v533, %s578
    %v580 = vpop.permute.xlu0 %579
    %s582 = sor.u32 256, 96
    %583 = vbcast.lane.b32.xlu0 %v533, %s582
    %v584 = vpop.permute.xlu0 %583
    %s586 = sor.u32 256, 104
    %587 = vbcast.lane.b32.xlu0 %v533, %s586
    %v588 = vpop.permute.xlu0 %587
    %s590 = sor.u32 256, 112
    %591 = vbcast.lane.b32.xlu0 %v533, %s590
    %v592 = vpop.permute.xlu0 %591
    %s594 = sor.u32 256, 120
    %595 = vbcast.lane.b32.xlu0 %v533, %s594
    %v596 = vpop.permute.xlu0 %595
    %v597 = vlaneseq
    %v598 = vshrl.u32 %v597, 7
    %v599 = vsub.s32 5, %v598
    %v600 = vrot.slane %v212, %v599
    %602 = vbcast.lane.b32.xlu0 %v600, 256
    %v603 = vpop.permute.xlu0 %602
    %s605 = sor.u32 256, 8
    %606 = vbcast.lane.b32.xlu0 %v600, %s605
    %v607 = vpop.permute.xlu0 %606
    %s609 = sor.u32 256, 16
    %610 = vbcast.lane.b32.xlu0 %v600, %s609
    %v611 = vpop.permute.xlu0 %610
    %s613 = sor.u32 256, 24
    %614 = vbcast.lane.b32.xlu0 %v600, %s613
    %v615 = vpop.permute.xlu0 %614
    %s617 = sor.u32 256, 32
    %618 = vbcast.lane.b32.xlu0 %v600, %s617
    %v619 = vpop.permute.xlu0 %618
    %s621 = sor.u32 256, 40
    %622 = vbcast.lane.b32.xlu0 %v600, %s621
    %v623 = vpop.permute.xlu0 %622
    %s625 = sor.u32 256, 48
    %626 = vbcast.lane.b32.xlu0 %v600, %s625
    %v627 = vpop.permute.xlu0 %626
    %s629 = sor.u32 256, 56
    %630 = vbcast.lane.b32.xlu0 %v600, %s629
    %v631 = vpop.permute.xlu0 %630
    %s633 = sor.u32 256, 64
    %634 = vbcast.lane.b32.xlu0 %v600, %s633
    %v635 = vpop.permute.xlu0 %634
    %s637 = sor.u32 256, 72
    %638 = vbcast.lane.b32.xlu0 %v600, %s637
    %v639 = vpop.permute.xlu0 %638
    %s641 = sor.u32 256, 80
    %642 = vbcast.lane.b32.xlu0 %v600, %s641
    %v643 = vpop.permute.xlu0 %642
    %s645 = sor.u32 256, 88
    %646 = vbcast.lane.b32.xlu0 %v600, %s645
    %v647 = vpop.permute.xlu0 %646
    %s649 = sor.u32 256, 96
    %650 = vbcast.lane.b32.xlu0 %v600, %s649
    %v651 = vpop.permute.xlu0 %650
    %s653 = sor.u32 256, 104
    %654 = vbcast.lane.b32.xlu0 %v600, %s653
    %v655 = vpop.permute.xlu0 %654
    %s657 = sor.u32 256, 112
    %658 = vbcast.lane.b32.xlu0 %v600, %s657
    %v659 = vpop.permute.xlu0 %658
    %s661 = sor.u32 256, 120
    %662 = vbcast.lane.b32.xlu0 %v600, %s661
    %v663 = vpop.permute.xlu0 %662
    %v664 = vlaneseq
    %v665 = vshrl.u32 %v664, 7
    %v666 = vsub.s32 6, %v665
    %v667 = vrot.slane %v212, %v666
    %669 = vbcast.lane.b32.xlu0 %v667, 256
    %v670 = vpop.permute.xlu0 %669
    %s672 = sor.u32 256, 8
    %673 = vbcast.lane.b32.xlu0 %v667, %s672
    %v674 = vpop.permute.xlu0 %673
    %s676 = sor.u32 256, 16
    %677 = vbcast.lane.b32.xlu0 %v667, %s676
    %v678 = vpop.permute.xlu0 %677
    %s680 = sor.u32 256, 24
    %681 = vbcast.lane.b32.xlu0 %v667, %s680
    %v682 = vpop.permute.xlu0 %681
    %s684 = sor.u32 256, 32
    %685 = vbcast.lane.b32.xlu0 %v667, %s684
    %v686 = vpop.permute.xlu0 %685
    %s688 = sor.u32 256, 40
    %689 = vbcast.lane.b32.xlu0 %v667, %s688
    %v690 = vpop.permute.xlu0 %689
    %s692 = sor.u32 256, 48
    %693 = vbcast.lane.b32.xlu0 %v667, %s692
    %v694 = vpop.permute.xlu0 %693
    %s696 = sor.u32 256, 56
    %697 = vbcast.lane.b32.xlu0 %v667, %s696
    %v698 = vpop.permute.xlu0 %697
    %s700 = sor.u32 256, 64
    %701 = vbcast.lane.b32.xlu0 %v667, %s700
    %v702 = vpop.permute.xlu0 %701
    %s704 = sor.u32 256, 72
    %705 = vbcast.lane.b32.xlu0 %v667, %s704
    %v706 = vpop.permute.xlu0 %705
    %s708 = sor.u32 256, 80
    %709 = vbcast.lane.b32.xlu0 %v667, %s708
    %v710 = vpop.permute.xlu0 %709
    %s712 = sor.u32 256, 88
    %713 = vbcast.lane.b32.xlu0 %v667, %s712
    %v714 = vpop.permute.xlu0 %713
    %s716 = sor.u32 256, 96
    %717 = vbcast.lane.b32.xlu0 %v667, %s716
    %v718 = vpop.permute.xlu0 %717
    %s720 = sor.u32 256, 104
    %721 = vbcast.lane.b32.xlu0 %v667, %s720
    %v722 = vpop.permute.xlu0 %721
    %s724 = sor.u32 256, 112
    %725 = vbcast.lane.b32.xlu0 %v667, %s724
    %v726 = vpop.permute.xlu0 %725
    %s728 = sor.u32 256, 120
    %729 = vbcast.lane.b32.xlu0 %v667, %s728
    %v730 = vpop.permute.xlu0 %729
    %v731 = vlaneseq
    %v732 = vshrl.u32 %v731, 7
    %v733 = vsub.s32 7, %v732
    %v734 = vrot.slane %v212, %v733
    %736 = vbcast.lane.b32.xlu0 %v734, 256
    %v737 = vpop.permute.xlu0 %736
    %s739 = sor.u32 256, 8
    %740 = vbcast.lane.b32.xlu0 %v734, %s739
    %v741 = vpop.permute.xlu0 %740
    %s743 = sor.u32 256, 16
    %744 = vbcast.lane.b32.xlu0 %v734, %s743
    %v745 = vpop.permute.xlu0 %744
    %s747 = sor.u32 256, 24
    %748 = vbcast.lane.b32.xlu0 %v734, %s747
    %v749 = vpop.permute.xlu0 %748
    %s751 = sor.u32 256, 32
    %752 = vbcast.lane.b32.xlu0 %v734, %s751
    %v753 = vpop.permute.xlu0 %752
    %s755 = sor.u32 256, 40
    %756 = vbcast.lane.b32.xlu0 %v734, %s755
    %v757 = vpop.permute.xlu0 %756
    %s759 = sor.u32 256, 48
    %760 = vbcast.lane.b32.xlu0 %v734, %s759
    %v761 = vpop.permute.xlu0 %760
    %s763 = sor.u32 256, 56
    %764 = vbcast.lane.b32.xlu0 %v734, %s763
    %v765 = vpop.permute.xlu0 %764
    %s767 = sor.u32 256, 64
    %768 = vbcast.lane.b32.xlu0 %v734, %s767
    %v769 = vpop.permute.xlu0 %768
    %s771 = sor.u32 256, 72
    %772 = vbcast.lane.b32.xlu0 %v734, %s771
    %v773 = vpop.permute.xlu0 %772
    %s775 = sor.u32 256, 80
    %776 = vbcast.lane.b32.xlu0 %v734, %s775
    %v777 = vpop.permute.xlu0 %776
    %s779 = sor.u32 256, 88
    %780 = vbcast.lane.b32.xlu0 %v734, %s779
    %v781 = vpop.permute.xlu0 %780
    %s783 = sor.u32 256, 96
    %784 = vbcast.lane.b32.xlu0 %v734, %s783
    %v785 = vpop.permute.xlu0 %784
    %s787 = sor.u32 256, 104
    %788 = vbcast.lane.b32.xlu0 %v734, %s787
    %v789 = vpop.permute.xlu0 %788
    %s791 = sor.u32 256, 112
    %792 = vbcast.lane.b32.xlu0 %v734, %s791
    %v793 = vpop.permute.xlu0 %792
    %s795 = sor.u32 256, 120
    %796 = vbcast.lane.b32.xlu0 %v734, %s795
    %v797 = vpop.permute.xlu0 %796
    %v798 = vlaneseq
    %v799 = vshrl.u32 %v798, 7
    %v800 = vsub.s32 0, %v799
    %v801 = vrot.slane %v236, %v800
    %v802 = vlaneseq
    %v803 = vshrl.u32 %v802, 7
    %v804 = vsub.s32 0, %v803
    %v805 = vrot.slane %v250, %v804
    %v806 = vlaneseq
    %v807 = vshrl.u32 %v806, 7
    %v808 = vsub.s32 0, %v807
    %v809 = vrot.slane %v258, %v808
    %v810 = vlaneseq
    %v811 = vshrl.u32 %v810, 7
    %v812 = vsub.s32 0, %v811
    %v813 = vrot.slane %v260, %v812
    %v814 = vlaneseq
    %v815 = vshrl.u32 %v814, 7
    %v816 = vsub.s32 0, %v815
    %v817 = vrot.slane %v243, %v816
    %v818 = vlaneseq
    %v819 = vshrl.u32 %v818, 7
    %v820 = vsub.s32 0, %v819
    %v821 = vrot.slane %v257, %v820
    %v822 = vlaneseq
    %v823 = vshrl.u32 %v822, 7
    %v824 = vsub.s32 0, %v823
    %v825 = vrot.slane %v259, %v824
    %v826 = vlaneseq
    %v827 = vshrl.u32 %v826, 7
    %v828 = vsub.s32 0, %v827
    %v829 = vrot.slane %v261, %v828
    %vm830 = vcmp.gt.s32.totalorder %v801, %v268
    %vm831 = vcmp.gt.s32.totalorder %v801, %v272
    %vm832 = vcmp.gt.s32.totalorder %v801, %v276
    %vm833 = vcmp.gt.s32.totalorder %v801, %v280
    %vm834 = vcmp.gt.s32.totalorder %v801, %v284
    %vm835 = vcmp.gt.s32.totalorder %v801, %v288
    %vm836 = vcmp.gt.s32.totalorder %v801, %v292
    %vm837 = vcmp.gt.s32.totalorder %v801, %v296
    %vm838 = vcmp.gt.s32.totalorder %v801, %v300
    %vm839 = vcmp.gt.s32.totalorder %v801, %v304
    %vm840 = vcmp.gt.s32.totalorder %v801, %v308
    %vm841 = vcmp.gt.s32.totalorder %v801, %v312
    %vm842 = vcmp.gt.s32.totalorder %v801, %v316
    %vm843 = vcmp.gt.s32.totalorder %v801, %v320
    %vm844 = vcmp.gt.s32.totalorder %v801, %v324
    %vm845 = vcmp.gt.s32.totalorder %v801, %v328
    %vm846 = vcmp.gt.s32.totalorder %v805, %v335
    %vm847 = vcmp.gt.s32.totalorder %v805, %v339
    %vm848 = vcmp.gt.s32.totalorder %v805, %v343
    %vm849 = vcmp.gt.s32.totalorder %v805, %v347
    %vm850 = vcmp.gt.s32.totalorder %v805, %v351
    %vm851 = vcmp.gt.s32.totalorder %v805, %v355
    %vm852 = vcmp.gt.s32.totalorder %v805, %v359
    %vm853 = vcmp.gt.s32.totalorder %v805, %v363
    %vm854 = vcmp.gt.s32.totalorder %v805, %v367
    %vm855 = vcmp.gt.s32.totalorder %v805, %v371
    %vm856 = vcmp.gt.s32.totalorder %v805, %v375
    %vm857 = vcmp.gt.s32.totalorder %v805, %v379
    %vm858 = vcmp.gt.s32.totalorder %v805, %v383
    %vm859 = vcmp.gt.s32.totalorder %v805, %v387
    %vm860 = vcmp.gt.s32.totalorder %v805, %v391
    %vm861 = vcmp.gt.s32.totalorder %v805, %v395
    %vm862 = vcmp.gt.s32.totalorder %v809, %v402
    %vm863 = vcmp.gt.s32.totalorder %v809, %v406
    %vm864 = vcmp.gt.s32.totalorder %v809, %v410
    %vm865 = vcmp.gt.s32.totalorder %v809, %v414
    %vm866 = vcmp.gt.s32.totalorder %v809, %v418
    %vm867 = vcmp.gt.s32.totalorder %v809, %v422
    %vm868 = vcmp.gt.s32.totalorder %v809, %v426
    %vm869 = vcmp.gt.s32.totalorder %v809, %v430
    %vm870 = vcmp.gt.s32.totalorder %v809, %v434
    %vm871 = vcmp.gt.s32.totalorder %v809, %v438
    %vm872 = vcmp.gt.s32.totalorder %v809, %v442
    %vm873 = vcmp.gt.s32.totalorder %v809, %v446
    %vm874 = vcmp.gt.s32.totalorder %v809, %v450
    %vm875 = vcmp.gt.s32.totalorder %v809, %v454
    %vm876 = vcmp.gt.s32.totalorder %v809, %v458
    %vm877 = vcmp.gt.s32.totalorder %v809, %v462
    %vm878 = vcmp.gt.s32.totalorder %v813, %v469
    %vm879 = vcmp.gt.s32.totalorder %v813, %v473
    %vm880 = vcmp.gt.s32.totalorder %v813, %v477
    %vm881 = vcmp.gt.s32.totalorder %v813, %v481
    %vm882 = vcmp.gt.s32.totalorder %v813, %v485
    %vm883 = vcmp.gt.s32.totalorder %v813, %v489
    %vm884 = vcmp.gt.s32.totalorder %v813, %v493
    %vm885 = vcmp.gt.s32.totalorder %v813, %v497
    %vm886 = vcmp.gt.s32.totalorder %v813, %v501
    %vm887 = vcmp.gt.s32.totalorder %v813, %v505
    %vm888 = vcmp.gt.s32.totalorder %v813, %v509
    %vm889 = vcmp.gt.s32.totalorder %v813, %v513
    %vm890 = vcmp.gt.s32.totalorder %v813, %v517
    %vm891 = vcmp.gt.s32.totalorder %v813, %v521
    %vm892 = vcmp.gt.s32.totalorder %v813, %v525
    %vm893 = vcmp.gt.s32.totalorder %v813, %v529
    %vm894 = vcmp.gt.s32.totalorder %v817, %v536
    %vm895 = vcmp.gt.s32.totalorder %v817, %v540
    %vm896 = vcmp.gt.s32.totalorder %v817, %v544
    %vm897 = vcmp.gt.s32.totalorder %v817, %v548
    %vm898 = vcmp.gt.s32.totalorder %v817, %v552
    %vm899 = vcmp.gt.s32.totalorder %v817, %v556
    %vm900 = vcmp.gt.s32.totalorder %v817, %v560
    %vm901 = vcmp.gt.s32.totalorder %v817, %v564
    %vm902 = vcmp.gt.s32.totalorder %v817, %v568
    %vm903 = vcmp.gt.s32.totalorder %v817, %v572
    %vm904 = vcmp.gt.s32.totalorder %v817, %v576
    %vm905 = vcmp.gt.s32.totalorder %v817, %v580
    %vm906 = vcmp.gt.s32.totalorder %v817, %v584
    %vm907 = vcmp.gt.s32.totalorder %v817, %v588
    %vm908 = vcmp.gt.s32.totalorder %v817, %v592
    %vm909 = vcmp.gt.s32.totalorder %v817, %v596
    %vm910 = vcmp.gt.s32.totalorder %v821, %v603
    %vm911 = vcmp.gt.s32.totalorder %v821, %v607
    %vm912 = vcmp.gt.s32.totalorder %v821, %v611
    %vm913 = vcmp.gt.s32.totalorder %v821, %v615
    %vm914 = vcmp.gt.s32.totalorder %v821, %v619
    %vm915 = vcmp.gt.s32.totalorder %v821, %v623
    %vm916 = vcmp.gt.s32.totalorder %v821, %v627
    %vm917 = vcmp.gt.s32.totalorder %v821, %v631
    %vm918 = vcmp.gt.s32.totalorder %v821, %v635
    %vm919 = vcmp.gt.s32.totalorder %v821, %v639
    %vm920 = vcmp.gt.s32.totalorder %v821, %v643
    %vm921 = vcmp.gt.s32.totalorder %v821, %v647
    %vm922 = vcmp.gt.s32.totalorder %v821, %v651
    %vm923 = vcmp.gt.s32.totalorder %v821, %v655
    %vm924 = vcmp.gt.s32.totalorder %v821, %v659
    %vm925 = vcmp.gt.s32.totalorder %v821, %v663
    %vm926 = vcmp.gt.s32.totalorder %v825, %v670
    %vm927 = vcmp.gt.s32.totalorder %v825, %v674
    %vm928 = vcmp.gt.s32.totalorder %v825, %v678
    %vm929 = vcmp.gt.s32.totalorder %v825, %v682
    %vm930 = vcmp.gt.s32.totalorder %v825, %v686
    %vm931 = vcmp.gt.s32.totalorder %v825, %v690
    %vm932 = vcmp.gt.s32.totalorder %v825, %v694
    %vm933 = vcmp.gt.s32.totalorder %v825, %v698
    %vm934 = vcmp.gt.s32.totalorder %v825, %v702
    %vm935 = vcmp.gt.s32.totalorder %v825, %v706
    %vm936 = vcmp.gt.s32.totalorder %v825, %v710
    %vm937 = vcmp.gt.s32.totalorder %v825, %v714
    %vm938 = vcmp.gt.s32.totalorder %v825, %v718
    %vm939 = vcmp.gt.s32.totalorder %v825, %v722
    %vm940 = vcmp.gt.s32.totalorder %v825, %v726
    %vm941 = vcmp.gt.s32.totalorder %v825, %v730
    %vm942 = vcmp.gt.s32.totalorder %v829, %v737
    %vm943 = vcmp.gt.s32.totalorder %v829, %v741
    %vm944 = vcmp.gt.s32.totalorder %v829, %v745
    %vm945 = vcmp.gt.s32.totalorder %v829, %v749
    %vm946 = vcmp.gt.s32.totalorder %v829, %v753
    %vm947 = vcmp.gt.s32.totalorder %v829, %v757
    %vm948 = vcmp.gt.s32.totalorder %v829, %v761
    %vm949 = vcmp.gt.s32.totalorder %v829, %v765
    %vm950 = vcmp.gt.s32.totalorder %v829, %v769
    %vm951 = vcmp.gt.s32.totalorder %v829, %v773
    %vm952 = vcmp.gt.s32.totalorder %v829, %v777
    %vm953 = vcmp.gt.s32.totalorder %v829, %v781
    %vm954 = vcmp.gt.s32.totalorder %v829, %v785
    %vm955 = vcmp.gt.s32.totalorder %v829, %v789
    %vm956 = vcmp.gt.s32.totalorder %v829, %v793
    %vm957 = vcmp.gt.s32.totalorder %v829, %v797
    %v958 = vsel %vm830, 1, 0
    %v959 = vsel %vm831, 1, 0
    %v960 = vsel %vm832, 1, 0
    %v961 = vsel %vm833, 1, 0
    %v962 = vsel %vm834, 1, 0
    %v963 = vsel %vm835, 1, 0
    %v964 = vsel %vm836, 1, 0
    %v965 = vsel %vm837, 1, 0
    %v966 = vsel %vm838, 1, 0
    %v967 = vsel %vm839, 1, 0
    %v968 = vsel %vm840, 1, 0
    %v969 = vsel %vm841, 1, 0
    %v970 = vsel %vm842, 1, 0
    %v971 = vsel %vm843, 1, 0
    %v972 = vsel %vm844, 1, 0
    %v973 = vsel %vm845, 1, 0
    %v974 = vsel %vm846, 1, 0
    %v975 = vsel %vm847, 1, 0
    %v976 = vsel %vm848, 1, 0
    %v977 = vsel %vm849, 1, 0
    %v978 = vsel %vm850, 1, 0
    %v979 = vsel %vm851, 1, 0
    %v980 = vsel %vm852, 1, 0
    %v981 = vsel %vm853, 1, 0
    %v982 = vsel %vm854, 1, 0
    %v983 = vsel %vm855, 1, 0
    %v984 = vsel %vm856, 1, 0
    %v985 = vsel %vm857, 1, 0
    %v986 = vsel %vm858, 1, 0
    %v987 = vsel %vm859, 1, 0
    %v988 = vsel %vm860, 1, 0
    %v989 = vsel %vm861, 1, 0
    %v990 = vsel %vm862, 1, 0
    %v991 = vsel %vm863, 1, 0
    %v992 = vsel %vm864, 1, 0
    %v993 = vsel %vm865, 1, 0
    %v994 = vsel %vm866, 1, 0
    %v995 = vsel %vm867, 1, 0
    %v996 = vsel %vm868, 1, 0
    %v997 = vsel %vm869, 1, 0
    %v998 = vsel %vm870, 1, 0
    %v999 = vsel %vm871, 1, 0
    %v1000 = vsel %vm872, 1, 0
    %v1001 = vsel %vm873, 1, 0
    %v1002 = vsel %vm874, 1, 0
    %v1003 = vsel %vm875, 1, 0
    %v1004 = vsel %vm876, 1, 0
    %v1005 = vsel %vm877, 1, 0
    %v1006 = vsel %vm878, 1, 0
    %v1007 = vsel %vm879, 1, 0
    %v1008 = vsel %vm880, 1, 0
    %v1009 = vsel %vm881, 1, 0
    %v1010 = vsel %vm882, 1, 0
    %v1011 = vsel %vm883, 1, 0
    %v1012 = vsel %vm884, 1, 0
    %v1013 = vsel %vm885, 1, 0
    %v1014 = vsel %vm886, 1, 0
    %v1015 = vsel %vm887, 1, 0
    %v1016 = vsel %vm888, 1, 0
    %v1017 = vsel %vm889, 1, 0
    %v1018 = vsel %vm890, 1, 0
    %v1019 = vsel %vm891, 1, 0
    %v1020 = vsel %vm892, 1, 0
    %v1021 = vsel %vm893, 1, 0
    %v1022 = vsel %vm894, 1, 0
    %v1023 = vsel %vm895, 1, 0
    %v1024 = vsel %vm896, 1, 0
    %v1025 = vsel %vm897, 1, 0
    %v1026 = vsel %vm898, 1, 0
    %v1027 = vsel %vm899, 1, 0
    %v1028 = vsel %vm900, 1, 0
    %v1029 = vsel %vm901, 1, 0
    %v1030 = vsel %vm902, 1, 0
    %v1031 = vsel %vm903, 1, 0
    %v1032 = vsel %vm904, 1, 0
    %v1033 = vsel %vm905, 1, 0
    %v1034 = vsel %vm906, 1, 0
    %v1035 = vsel %vm907, 1, 0
    %v1036 = vsel %vm908, 1, 0
    %v1037 = vsel %vm909, 1, 0
    %v1038 = vsel %vm910, 1, 0
    %v1039 = vsel %vm911, 1, 0
    %v1040 = vsel %vm912, 1, 0
    %v1041 = vsel %vm913, 1, 0
    %v1042 = vsel %vm914, 1, 0
    %v1043 = vsel %vm915, 1, 0
    %v1044 = vsel %vm916, 1, 0
    %v1045 = vsel %vm917, 1, 0
    %v1046 = vsel %vm918, 1, 0
    %v1047 = vsel %vm919, 1, 0
    %v1048 = vsel %vm920, 1, 0
    %v1049 = vsel %vm921, 1, 0
    %v1050 = vsel %vm922, 1, 0
    %v1051 = vsel %vm923, 1, 0
    %v1052 = vsel %vm924, 1, 0
    %v1053 = vsel %vm925, 1, 0
    %v1054 = vsel %vm926, 1, 0
    %v1055 = vsel %vm927, 1, 0
    %v1056 = vsel %vm928, 1, 0
    %v1057 = vsel %vm929, 1, 0
    %v1058 = vsel %vm930, 1, 0
    %v1059 = vsel %vm931, 1, 0
    %v1060 = vsel %vm932, 1, 0
    %v1061 = vsel %vm933, 1, 0
    %v1062 = vsel %vm934, 1, 0
    %v1063 = vsel %vm935, 1, 0
    %v1064 = vsel %vm936, 1, 0
    %v1065 = vsel %vm937, 1, 0
    %v1066 = vsel %vm938, 1, 0
    %v1067 = vsel %vm939, 1, 0
    %v1068 = vsel %vm940, 1, 0
    %v1069 = vsel %vm941, 1, 0
    %v1070 = vsel %vm942, 1, 0
    %v1071 = vsel %vm943, 1, 0
    %v1072 = vsel %vm944, 1, 0
    %v1073 = vsel %vm945, 1, 0
    %v1074 = vsel %vm946, 1, 0
    %v1075 = vsel %vm947, 1, 0
    %v1076 = vsel %vm948, 1, 0
    %v1077 = vsel %vm949, 1, 0
    %v1078 = vsel %vm950, 1, 0
    %v1079 = vsel %vm951, 1, 0
    %v1080 = vsel %vm952, 1, 0
    %v1081 = vsel %vm953, 1, 0
    %v1082 = vsel %vm954, 1, 0
    %v1083 = vsel %vm955, 1, 0
    %v1084 = vsel %vm956, 1, 0
    %v1085 = vsel %vm957, 1, 0
    %v1086 = vcvt.s32.f32 %v958
    %v1087 = vcvt.s32.f32 %v959
    %v1088 = vcvt.s32.f32 %v960
    %v1089 = vcvt.s32.f32 %v961
    %v1090 = vcvt.s32.f32 %v962
    %v1091 = vcvt.s32.f32 %v963
    %v1092 = vcvt.s32.f32 %v964
    %v1093 = vcvt.s32.f32 %v965
    %v1094 = vcvt.s32.f32 %v966
    %v1095 = vcvt.s32.f32 %v967
    %v1096 = vcvt.s32.f32 %v968
    %v1097 = vcvt.s32.f32 %v969
    %v1098 = vcvt.s32.f32 %v970
    %v1099 = vcvt.s32.f32 %v971
    %v1100 = vcvt.s32.f32 %v972
    %v1101 = vcvt.s32.f32 %v973
    %v1102 = vcvt.s32.f32 %v974
    %v1103 = vcvt.s32.f32 %v975
    %v1104 = vcvt.s32.f32 %v976
    %v1105 = vcvt.s32.f32 %v977
    %v1106 = vcvt.s32.f32 %v978
    %v1107 = vcvt.s32.f32 %v979
    %v1108 = vcvt.s32.f32 %v980
    %v1109 = vcvt.s32.f32 %v981
    %v1110 = vcvt.s32.f32 %v982
    %v1111 = vcvt.s32.f32 %v983
    %v1112 = vcvt.s32.f32 %v984
    %v1113 = vcvt.s32.f32 %v985
    %v1114 = vcvt.s32.f32 %v986
    %v1115 = vcvt.s32.f32 %v987
    %v1116 = vcvt.s32.f32 %v988
    %v1117 = vcvt.s32.f32 %v989
    %v1118 = vcvt.s32.f32 %v990
    %v1119 = vcvt.s32.f32 %v991
    %v1120 = vcvt.s32.f32 %v992
    %v1121 = vcvt.s32.f32 %v993
    %v1122 = vcvt.s32.f32 %v994
    %v1123 = vcvt.s32.f32 %v995
    %v1124 = vcvt.s32.f32 %v996
    %v1125 = vcvt.s32.f32 %v997
    %v1126 = vcvt.s32.f32 %v998
    %v1127 = vcvt.s32.f32 %v999
    %v1128 = vcvt.s32.f32 %v1000
    %v1129 = vcvt.s32.f32 %v1001
    %v1130 = vcvt.s32.f32 %v1002
    %v1131 = vcvt.s32.f32 %v1003
    %v1132 = vcvt.s32.f32 %v1004
    %v1133 = vcvt.s32.f32 %v1005
    %v1134 = vcvt.s32.f32 %v1006
    %v1135 = vcvt.s32.f32 %v1007
    %v1136 = vcvt.s32.f32 %v1008
    %v1137 = vcvt.s32.f32 %v1009
    %v1138 = vcvt.s32.f32 %v1010
    %v1139 = vcvt.s32.f32 %v1011
    %v1140 = vcvt.s32.f32 %v1012
    %v1141 = vcvt.s32.f32 %v1013
    %v1142 = vcvt.s32.f32 %v1014
    %v1143 = vcvt.s32.f32 %v1015
    %v1144 = vcvt.s32.f32 %v1016
    %v1145 = vcvt.s32.f32 %v1017
    %v1146 = vcvt.s32.f32 %v1018
    %v1147 = vcvt.s32.f32 %v1019
    %v1148 = vcvt.s32.f32 %v1020
    %v1149 = vcvt.s32.f32 %v1021
    %v1150 = vcvt.s32.f32 %v1022
    %v1151 = vcvt.s32.f32 %v1023
    %v1152 = vcvt.s32.f32 %v1024
    %v1153 = vcvt.s32.f32 %v1025
    %v1154 = vcvt.s32.f32 %v1026
    %v1155 = vcvt.s32.f32 %v1027
    %v1156 = vcvt.s32.f32 %v1028
    %v1157 = vcvt.s32.f32 %v1029
    %v1158 = vcvt.s32.f32 %v1030
    %v1159 = vcvt.s32.f32 %v1031
    %v1160 = vcvt.s32.f32 %v1032
    %v1161 = vcvt.s32.f32 %v1033
    %v1162 = vcvt.s32.f32 %v1034
    %v1163 = vcvt.s32.f32 %v1035
    %v1164 = vcvt.s32.f32 %v1036
    %v1165 = vcvt.s32.f32 %v1037
    %v1166 = vcvt.s32.f32 %v1038
    %v1167 = vcvt.s32.f32 %v1039
    %v1168 = vcvt.s32.f32 %v1040
    %v1169 = vcvt.s32.f32 %v1041
    %v1170 = vcvt.s32.f32 %v1042
    %v1171 = vcvt.s32.f32 %v1043
    %v1172 = vcvt.s32.f32 %v1044
    %v1173 = vcvt.s32.f32 %v1045
    %v1174 = vcvt.s32.f32 %v1046
    %v1175 = vcvt.s32.f32 %v1047
    %v1176 = vcvt.s32.f32 %v1048
    %v1177 = vcvt.s32.f32 %v1049
    %v1178 = vcvt.s32.f32 %v1050
    %v1179 = vcvt.s32.f32 %v1051
    %v1180 = vcvt.s32.f32 %v1052
    %v1181 = vcvt.s32.f32 %v1053
    %v1182 = vcvt.s32.f32 %v1054
    %v1183 = vcvt.s32.f32 %v1055
    %v1184 = vcvt.s32.f32 %v1056
    %v1185 = vcvt.s32.f32 %v1057
    %v1186 = vcvt.s32.f32 %v1058
    %v1187 = vcvt.s32.f32 %v1059
    %v1188 = vcvt.s32.f32 %v1060
    %v1189 = vcvt.s32.f32 %v1061
    %v1190 = vcvt.s32.f32 %v1062
    %v1191 = vcvt.s32.f32 %v1063
    %v1192 = vcvt.s32.f32 %v1064
    %v1193 = vcvt.s32.f32 %v1065
    %v1194 = vcvt.s32.f32 %v1066
    %v1195 = vcvt.s32.f32 %v1067
    %v1196 = vcvt.s32.f32 %v1068
    %v1197 = vcvt.s32.f32 %v1069
    %v1198 = vcvt.s32.f32 %v1070
    %v1199 = vcvt.s32.f32 %v1071
    %v1200 = vcvt.s32.f32 %v1072
    %v1201 = vcvt.s32.f32 %v1073
    %v1202 = vcvt.s32.f32 %v1074
    %v1203 = vcvt.s32.f32 %v1075
    %v1204 = vcvt.s32.f32 %v1076
    %v1205 = vcvt.s32.f32 %v1077
    %v1206 = vcvt.s32.f32 %v1078
    %v1207 = vcvt.s32.f32 %v1079
    %v1208 = vcvt.s32.f32 %v1080
    %v1209 = vcvt.s32.f32 %v1081
    %v1210 = vcvt.s32.f32 %v1082
    %v1211 = vcvt.s32.f32 %v1083
    %v1212 = vcvt.s32.f32 %v1084
    %v1213 = vcvt.s32.f32 %v1085
    %1214 = vadd.xlane.f32.xlu0 %v1086
    %v1215 = vpop.xlane.xlu0 %1214
    %1216 = vadd.xlane.f32.xlu0 %v1087
    %v1217 = vpop.xlane.xlu0 %1216
    %1218 = vadd.xlane.f32.xlu0 %v1088
    %v1219 = vpop.xlane.xlu0 %1218
    %1220 = vadd.xlane.f32.xlu0 %v1089
    %v1221 = vpop.xlane.xlu0 %1220
    %1222 = vadd.xlane.f32.xlu0 %v1090
    %v1223 = vpop.xlane.xlu0 %1222
    %1224 = vadd.xlane.f32.xlu0 %v1091
    %v1225 = vpop.xlane.xlu0 %1224
    %1226 = vadd.xlane.f32.xlu0 %v1092
    %v1227 = vpop.xlane.xlu0 %1226
    %1228 = vadd.xlane.f32.xlu0 %v1093
    %v1229 = vpop.xlane.xlu0 %1228
    %1230 = vadd.xlane.f32.xlu0 %v1094
    %v1231 = vpop.xlane.xlu0 %1230
    %1232 = vadd.xlane.f32.xlu0 %v1095
    %v1233 = vpop.xlane.xlu0 %1232
    %1234 = vadd.xlane.f32.xlu0 %v1096
    %v1235 = vpop.xlane.xlu0 %1234
    %1236 = vadd.xlane.f32.xlu0 %v1097
    %v1237 = vpop.xlane.xlu0 %1236
    %1238 = vadd.xlane.f32.xlu0 %v1098
    %v1239 = vpop.xlane.xlu0 %1238
    %1240 = vadd.xlane.f32.xlu0 %v1099
    %v1241 = vpop.xlane.xlu0 %1240
    %1242 = vadd.xlane.f32.xlu0 %v1100
    %v1243 = vpop.xlane.xlu0 %1242
    %1244 = vadd.xlane.f32.xlu0 %v1101
    %v1245 = vpop.xlane.xlu0 %1244
    %1246 = vadd.xlane.f32.xlu0 %v1102
    %v1247 = vpop.xlane.xlu0 %1246
    %1248 = vadd.xlane.f32.xlu0 %v1103
    %v1249 = vpop.xlane.xlu0 %1248
    %1250 = vadd.xlane.f32.xlu0 %v1104
    %v1251 = vpop.xlane.xlu0 %1250
    %1252 = vadd.xlane.f32.xlu0 %v1105
    %v1253 = vpop.xlane.xlu0 %1252
    %1254 = vadd.xlane.f32.xlu0 %v1106
    %v1255 = vpop.xlane.xlu0 %1254
    %1256 = vadd.xlane.f32.xlu0 %v1107
    %v1257 = vpop.xlane.xlu0 %1256
    %1258 = vadd.xlane.f32.xlu0 %v1108
    %v1259 = vpop.xlane.xlu0 %1258
    %1260 = vadd.xlane.f32.xlu0 %v1109
    %v1261 = vpop.xlane.xlu0 %1260
    %1262 = vadd.xlane.f32.xlu0 %v1110
    %v1263 = vpop.xlane.xlu0 %1262
    %1264 = vadd.xlane.f32.xlu0 %v1111
    %v1265 = vpop.xlane.xlu0 %1264
    %1266 = vadd.xlane.f32.xlu0 %v1112
    %v1267 = vpop.xlane.xlu0 %1266
    %1268 = vadd.xlane.f32.xlu0 %v1113
    %v1269 = vpop.xlane.xlu0 %1268
    %1270 = vadd.xlane.f32.xlu0 %v1114
    %v1271 = vpop.xlane.xlu0 %1270
    %1272 = vadd.xlane.f32.xlu0 %v1115
    %v1273 = vpop.xlane.xlu0 %1272
    %1274 = vadd.xlane.f32.xlu0 %v1116
    %v1275 = vpop.xlane.xlu0 %1274
    %1276 = vadd.xlane.f32.xlu0 %v1117
    %v1277 = vpop.xlane.xlu0 %1276
    %1278 = vadd.xlane.f32.xlu0 %v1118
    %v1279 = vpop.xlane.xlu0 %1278
    %1280 = vadd.xlane.f32.xlu0 %v1119
    %v1281 = vpop.xlane.xlu0 %1280
    %1282 = vadd.xlane.f32.xlu0 %v1120
    %v1283 = vpop.xlane.xlu0 %1282
    %1284 = vadd.xlane.f32.xlu0 %v1121
    %v1285 = vpop.xlane.xlu0 %1284
    %1286 = vadd.xlane.f32.xlu0 %v1122
    %v1287 = vpop.xlane.xlu0 %1286
    %1288 = vadd.xlane.f32.xlu0 %v1123
    %v1289 = vpop.xlane.xlu0 %1288
    %1290 = vadd.xlane.f32.xlu0 %v1124
    %v1291 = vpop.xlane.xlu0 %1290
    %1292 = vadd.xlane.f32.xlu0 %v1125
    %v1293 = vpop.xlane.xlu0 %1292
    %1294 = vadd.xlane.f32.xlu0 %v1126
    %v1295 = vpop.xlane.xlu0 %1294
    %1296 = vadd.xlane.f32.xlu0 %v1127
    %v1297 = vpop.xlane.xlu0 %1296
    %1298 = vadd.xlane.f32.xlu0 %v1128
    %v1299 = vpop.xlane.xlu0 %1298
    %1300 = vadd.xlane.f32.xlu0 %v1129
    %v1301 = vpop.xlane.xlu0 %1300
    %1302 = vadd.xlane.f32.xlu0 %v1130
    %v1303 = vpop.xlane.xlu0 %1302
    %1304 = vadd.xlane.f32.xlu0 %v1131
    %v1305 = vpop.xlane.xlu0 %1304
    %1306 = vadd.xlane.f32.xlu0 %v1132
    %v1307 = vpop.xlane.xlu0 %1306
    %1308 = vadd.xlane.f32.xlu0 %v1133
    %v1309 = vpop.xlane.xlu0 %1308
    %1310 = vadd.xlane.f32.xlu0 %v1134
    %v1311 = vpop.xlane.xlu0 %1310
    %1312 = vadd.xlane.f32.xlu0 %v1135
    %v1313 = vpop.xlane.xlu0 %1312
    %1314 = vadd.xlane.f32.xlu0 %v1136
    %v1315 = vpop.xlane.xlu0 %1314
    %1316 = vadd.xlane.f32.xlu0 %v1137
    %v1317 = vpop.xlane.xlu0 %1316
    %1318 = vadd.xlane.f32.xlu0 %v1138
    %v1319 = vpop.xlane.xlu0 %1318
    %1320 = vadd.xlane.f32.xlu0 %v1139
    %v1321 = vpop.xlane.xlu0 %1320
    %1322 = vadd.xlane.f32.xlu0 %v1140
    %v1323 = vpop.xlane.xlu0 %1322
    %1324 = vadd.xlane.f32.xlu0 %v1141
    %v1325 = vpop.xlane.xlu0 %1324
    %1326 = vadd.xlane.f32.xlu0 %v1142
    %v1327 = vpop.xlane.xlu0 %1326
    %1328 = vadd.xlane.f32.xlu0 %v1143
    %v1329 = vpop.xlane.xlu0 %1328
    %1330 = vadd.xlane.f32.xlu0 %v1144
    %v1331 = vpop.xlane.xlu0 %1330
    %1332 = vadd.xlane.f32.xlu0 %v1145
    %v1333 = vpop.xlane.xlu0 %1332
    %1334 = vadd.xlane.f32.xlu0 %v1146
    %v1335 = vpop.xlane.xlu0 %1334
    %1336 = vadd.xlane.f32.xlu0 %v1147
    %v1337 = vpop.xlane.xlu0 %1336
    %1338 = vadd.xlane.f32.xlu0 %v1148
    %v1339 = vpop.xlane.xlu0 %1338
    %1340 = vadd.xlane.f32.xlu0 %v1149
    %v1341 = vpop.xlane.xlu0 %1340
    %1342 = vadd.xlane.f32.xlu0 %v1150
    %v1343 = vpop.xlane.xlu0 %1342
    %1344 = vadd.xlane.f32.xlu0 %v1151
    %v1345 = vpop.xlane.xlu0 %1344
    %1346 = vadd.xlane.f32.xlu0 %v1152
    %v1347 = vpop.xlane.xlu0 %1346
    %1348 = vadd.xlane.f32.xlu0 %v1153
    %v1349 = vpop.xlane.xlu0 %1348
    %1350 = vadd.xlane.f32.xlu0 %v1154
    %v1351 = vpop.xlane.xlu0 %1350
    %1352 = vadd.xlane.f32.xlu0 %v1155
    %v1353 = vpop.xlane.xlu0 %1352
    %1354 = vadd.xlane.f32.xlu0 %v1156
    %v1355 = vpop.xlane.xlu0 %1354
    %1356 = vadd.xlane.f32.xlu0 %v1157
    %v1357 = vpop.xlane.xlu0 %1356
    %1358 = vadd.xlane.f32.xlu0 %v1158
    %v1359 = vpop.xlane.xlu0 %1358
    %1360 = vadd.xlane.f32.xlu0 %v1159
    %v1361 = vpop.xlane.xlu0 %1360
    %1362 = vadd.xlane.f32.xlu0 %v1160
    %v1363 = vpop.xlane.xlu0 %1362
    %1364 = vadd.xlane.f32.xlu0 %v1161
    %v1365 = vpop.xlane.xlu0 %1364
    %1366 = vadd.xlane.f32.xlu0 %v1162
    %v1367 = vpop.xlane.xlu0 %1366
    %1368 = vadd.xlane.f32.xlu0 %v1163
    %v1369 = vpop.xlane.xlu0 %1368
    %1370 = vadd.xlane.f32.xlu0 %v1164
    %v1371 = vpop.xlane.xlu0 %1370
    %1372 = vadd.xlane.f32.xlu0 %v1165
    %v1373 = vpop.xlane.xlu0 %1372
    %1374 = vadd.xlane.f32.xlu0 %v1166
    %v1375 = vpop.xlane.xlu0 %1374
    %1376 = vadd.xlane.f32.xlu0 %v1167
    %v1377 = vpop.xlane.xlu0 %1376
    %1378 = vadd.xlane.f32.xlu0 %v1168
    %v1379 = vpop.xlane.xlu0 %1378
    %1380 = vadd.xlane.f32.xlu0 %v1169
    %v1381 = vpop.xlane.xlu0 %1380
    %1382 = vadd.xlane.f32.xlu0 %v1170
    %v1383 = vpop.xlane.xlu0 %1382
    %1384 = vadd.xlane.f32.xlu0 %v1171
    %v1385 = vpop.xlane.xlu0 %1384
    %1386 = vadd.xlane.f32.xlu0 %v1172
    %v1387 = vpop.xlane.xlu0 %1386
    %1388 = vadd.xlane.f32.xlu0 %v1173
    %v1389 = vpop.xlane.xlu0 %1388
    %1390 = vadd.xlane.f32.xlu0 %v1174
    %v1391 = vpop.xlane.xlu0 %1390
    %1392 = vadd.xlane.f32.xlu0 %v1175
    %v1393 = vpop.xlane.xlu0 %1392
    %1394 = vadd.xlane.f32.xlu0 %v1176
    %v1395 = vpop.xlane.xlu0 %1394
    %1396 = vadd.xlane.f32.xlu0 %v1177
    %v1397 = vpop.xlane.xlu0 %1396
    %1398 = vadd.xlane.f32.xlu0 %v1178
    %v1399 = vpop.xlane.xlu0 %1398
    %1400 = vadd.xlane.f32.xlu0 %v1179
    %v1401 = vpop.xlane.xlu0 %1400
    %1402 = vadd.xlane.f32.xlu0 %v1180
    %v1403 = vpop.xlane.xlu0 %1402
    %1404 = vadd.xlane.f32.xlu0 %v1181
    %v1405 = vpop.xlane.xlu0 %1404
    %1406 = vadd.xlane.f32.xlu0 %v1182
    %v1407 = vpop.xlane.xlu0 %1406
    %1408 = vadd.xlane.f32.xlu0 %v1183
    %v1409 = vpop.xlane.xlu0 %1408
    %1410 = vadd.xlane.f32.xlu0 %v1184
    %v1411 = vpop.xlane.xlu0 %1410
    %1412 = vadd.xlane.f32.xlu0 %v1185
    %v1413 = vpop.xlane.xlu0 %1412
    %1414 = vadd.xlane.f32.xlu0 %v1186
    %v1415 = vpop.xlane.xlu0 %1414
    %1416 = vadd.xlane.f32.xlu0 %v1187
    %v1417 = vpop.xlane.xlu0 %1416
    %1418 = vadd.xlane.f32.xlu0 %v1188
    %v1419 = vpop.xlane.xlu0 %1418
    %1420 = vadd.xlane.f32.xlu0 %v1189
    %v1421 = vpop.xlane.xlu0 %1420
    %1422 = vadd.xlane.f32.xlu0 %v1190
    %v1423 = vpop.xlane.xlu0 %1422
    %1424 = vadd.xlane.f32.xlu0 %v1191
    %v1425 = vpop.xlane.xlu0 %1424
    %1426 = vadd.xlane.f32.xlu0 %v1192
    %v1427 = vpop.xlane.xlu0 %1426
    %1428 = vadd.xlane.f32.xlu0 %v1193
    %v1429 = vpop.xlane.xlu0 %1428
    %1430 = vadd.xlane.f32.xlu0 %v1194
    %v1431 = vpop.xlane.xlu0 %1430
    %1432 = vadd.xlane.f32.xlu0 %v1195
    %v1433 = vpop.xlane.xlu0 %1432
    %1434 = vadd.xlane.f32.xlu0 %v1196
    %v1435 = vpop.xlane.xlu0 %1434
    %1436 = vadd.xlane.f32.xlu0 %v1197
    %v1437 = vpop.xlane.xlu0 %1436
    %1438 = vadd.xlane.f32.xlu0 %v1198
    %v1439 = vpop.xlane.xlu0 %1438
    %1440 = vadd.xlane.f32.xlu0 %v1199
    %v1441 = vpop.xlane.xlu0 %1440
    %1442 = vadd.xlane.f32.xlu0 %v1200
    %v1443 = vpop.xlane.xlu0 %1442
    %1444 = vadd.xlane.f32.xlu0 %v1201
    %v1445 = vpop.xlane.xlu0 %1444
    %1446 = vadd.xlane.f32.xlu0 %v1202
    %v1447 = vpop.xlane.xlu0 %1446
    %1448 = vadd.xlane.f32.xlu0 %v1203
    %v1449 = vpop.xlane.xlu0 %1448
    %1450 = vadd.xlane.f32.xlu0 %v1204
    %v1451 = vpop.xlane.xlu0 %1450
    %1452 = vadd.xlane.f32.xlu0 %v1205
    %v1453 = vpop.xlane.xlu0 %1452
    %1454 = vadd.xlane.f32.xlu0 %v1206
    %v1455 = vpop.xlane.xlu0 %1454
    %1456 = vadd.xlane.f32.xlu0 %v1207
    %v1457 = vpop.xlane.xlu0 %1456
    %1458 = vadd.xlane.f32.xlu0 %v1208
    %v1459 = vpop.xlane.xlu0 %1458
    %1460 = vadd.xlane.f32.xlu0 %v1209
    %v1461 = vpop.xlane.xlu0 %1460
    %1462 = vadd.xlane.f32.xlu0 %v1210
    %v1463 = vpop.xlane.xlu0 %1462
    %1464 = vadd.xlane.f32.xlu0 %v1211
    %v1465 = vpop.xlane.xlu0 %1464
    %1466 = vadd.xlane.f32.xlu0 %v1212
    %v1467 = vpop.xlane.xlu0 %1466
    %1468 = vadd.xlane.f32.xlu0 %v1213
    %v1469 = vpop.xlane.xlu0 %1468
    %v1471 = vlaneseq
    %v1472 = vshrl.u32 %v1471, 7
    %v1473 = vsub.s32 0, %v1472
    %v1474 = vrot.slane %v205, %v1473
    %v1475 = vlaneseq
    %v1476 = vshrl.u32 %v1475, 7
    %v1477 = vsub.s32 1, %v1476
    %v1478 = vrot.slane %v205, %v1477
    %v1479 = vlaneseq
    %v1480 = vshrl.u32 %v1479, 7
    %v1481 = vsub.s32 2, %v1480
    %v1482 = vrot.slane %v205, %v1481
    %v1483 = vlaneseq
    %v1484 = vshrl.u32 %v1483, 7
    %v1485 = vsub.s32 3, %v1484
    %v1486 = vrot.slane %v205, %v1485
    %v1487 = vlaneseq
    %v1488 = vshrl.u32 %v1487, 7
    %v1489 = vsub.s32 4, %v1488
    %v1490 = vrot.slane %v205, %v1489
    %v1491 = vlaneseq
    %v1492 = vshrl.u32 %v1491, 7
    %v1493 = vsub.s32 5, %v1492
    %v1494 = vrot.slane %v205, %v1493
    %v1495 = vlaneseq
    %v1496 = vshrl.u32 %v1495, 7
    %v1497 = vsub.s32 6, %v1496
    %v1498 = vrot.slane %v205, %v1497
    %v1499 = vlaneseq
    %v1500 = vshrl.u32 %v1499, 7
    %v1501 = vsub.s32 7, %v1500
    %v1502 = vrot.slane %v205, %v1501
    %vm1511 = vcmp.lt.f32.partialorder %v1215, %v1474
    %vm1512 = vcmp.lt.f32.partialorder %v1217, %v1474
    %vm1513 = vcmp.lt.f32.partialorder %v1219, %v1474
    %vm1514 = vcmp.lt.f32.partialorder %v1221, %v1474
    %vm1515 = vcmp.lt.f32.partialorder %v1223, %v1474
    %vm1516 = vcmp.lt.f32.partialorder %v1225, %v1474
    %vm1517 = vcmp.lt.f32.partialorder %v1227, %v1474
    %vm1518 = vcmp.lt.f32.partialorder %v1229, %v1474
    %vm1519 = vcmp.lt.f32.partialorder %v1231, %v1474
    %vm1520 = vcmp.lt.f32.partialorder %v1233, %v1474
    %vm1521 = vcmp.lt.f32.partialorder %v1235, %v1474
    %vm1522 = vcmp.lt.f32.partialorder %v1237, %v1474
    %vm1523 = vcmp.lt.f32.partialorder %v1239, %v1474
    %vm1524 = vcmp.lt.f32.partialorder %v1241, %v1474
    %vm1525 = vcmp.lt.f32.partialorder %v1243, %v1474
    %vm1526 = vcmp.lt.f32.partialorder %v1245, %v1474
    %vm1527 = vcmp.lt.f32.partialorder %v1247, %v1478
    %vm1528 = vcmp.lt.f32.partialorder %v1249, %v1478
    %vm1529 = vcmp.lt.f32.partialorder %v1251, %v1478
    %vm1530 = vcmp.lt.f32.partialorder %v1253, %v1478
    %vm1531 = vcmp.lt.f32.partialorder %v1255, %v1478
    %vm1532 = vcmp.lt.f32.partialorder %v1257, %v1478
    %vm1533 = vcmp.lt.f32.partialorder %v1259, %v1478
    %vm1534 = vcmp.lt.f32.partialorder %v1261, %v1478
    %vm1535 = vcmp.lt.f32.partialorder %v1263, %v1478
    %vm1536 = vcmp.lt.f32.partialorder %v1265, %v1478
    %vm1537 = vcmp.lt.f32.partialorder %v1267, %v1478
    %vm1538 = vcmp.lt.f32.partialorder %v1269, %v1478
    %vm1539 = vcmp.lt.f32.partialorder %v1271, %v1478
    %vm1540 = vcmp.lt.f32.partialorder %v1273, %v1478
    %vm1541 = vcmp.lt.f32.partialorder %v1275, %v1478
    %vm1542 = vcmp.lt.f32.partialorder %v1277, %v1478
    %vm1543 = vcmp.lt.f32.partialorder %v1279, %v1482
    %vm1544 = vcmp.lt.f32.partialorder %v1281, %v1482
    %vm1545 = vcmp.lt.f32.partialorder %v1283, %v1482
    %vm1546 = vcmp.lt.f32.partialorder %v1285, %v1482
    %vm1547 = vcmp.lt.f32.partialorder %v1287, %v1482
    %vm1548 = vcmp.lt.f32.partialorder %v1289, %v1482
    %vm1549 = vcmp.lt.f32.partialorder %v1291, %v1482
    %vm1550 = vcmp.lt.f32.partialorder %v1293, %v1482
    %vm1551 = vcmp.lt.f32.partialorder %v1295, %v1482
    %vm1552 = vcmp.lt.f32.partialorder %v1297, %v1482
    %vm1553 = vcmp.lt.f32.partialorder %v1299, %v1482
    %vm1554 = vcmp.lt.f32.partialorder %v1301, %v1482
    %vm1555 = vcmp.lt.f32.partialorder %v1303, %v1482
    %vm1556 = vcmp.lt.f32.partialorder %v1305, %v1482
    %vm1557 = vcmp.lt.f32.partialorder %v1307, %v1482
    %vm1558 = vcmp.lt.f32.partialorder %v1309, %v1482
    %vm1559 = vcmp.lt.f32.partialorder %v1311, %v1486
    %vm1560 = vcmp.lt.f32.partialorder %v1313, %v1486
    %vm1561 = vcmp.lt.f32.partialorder %v1315, %v1486
    %vm1562 = vcmp.lt.f32.partialorder %v1317, %v1486
    %vm1563 = vcmp.lt.f32.partialorder %v1319, %v1486
    %vm1564 = vcmp.lt.f32.partialorder %v1321, %v1486
    %vm1565 = vcmp.lt.f32.partialorder %v1323, %v1486
    %vm1566 = vcmp.lt.f32.partialorder %v1325, %v1486
    %vm1567 = vcmp.lt.f32.partialorder %v1327, %v1486
    %vm1568 = vcmp.lt.f32.partialorder %v1329, %v1486
    %vm1569 = vcmp.lt.f32.partialorder %v1331, %v1486
    %vm1570 = vcmp.lt.f32.partialorder %v1333, %v1486
    %vm1571 = vcmp.lt.f32.partialorder %v1335, %v1486
    %vm1572 = vcmp.lt.f32.partialorder %v1337, %v1486
    %vm1573 = vcmp.lt.f32.partialorder %v1339, %v1486
    %vm1574 = vcmp.lt.f32.partialorder %v1341, %v1486
    %vm1575 = vcmp.lt.f32.partialorder %v1343, %v1490
    %vm1576 = vcmp.lt.f32.partialorder %v1345, %v1490
    %vm1577 = vcmp.lt.f32.partialorder %v1347, %v1490
    %vm1578 = vcmp.lt.f32.partialorder %v1349, %v1490
    %vm1579 = vcmp.lt.f32.partialorder %v1351, %v1490
    %vm1580 = vcmp.lt.f32.partialorder %v1353, %v1490
    %vm1581 = vcmp.lt.f32.partialorder %v1355, %v1490
    %vm1582 = vcmp.lt.f32.partialorder %v1357, %v1490
    %vm1583 = vcmp.lt.f32.partialorder %v1359, %v1490
    %vm1584 = vcmp.lt.f32.partialorder %v1361, %v1490
    %vm1585 = vcmp.lt.f32.partialorder %v1363, %v1490
    %vm1586 = vcmp.lt.f32.partialorder %v1365, %v1490
    %vm1587 = vcmp.lt.f32.partialorder %v1367, %v1490
    %vm1588 = vcmp.lt.f32.partialorder %v1369, %v1490
    %vm1589 = vcmp.lt.f32.partialorder %v1371, %v1490
    %vm1590 = vcmp.lt.f32.partialorder %v1373, %v1490
    %vm1591 = vcmp.lt.f32.partialorder %v1375, %v1494
    %vm1592 = vcmp.lt.f32.partialorder %v1377, %v1494
    %vm1593 = vcmp.lt.f32.partialorder %v1379, %v1494
    %vm1594 = vcmp.lt.f32.partialorder %v1381, %v1494
    %vm1595 = vcmp.lt.f32.partialorder %v1383, %v1494
    %vm1596 = vcmp.lt.f32.partialorder %v1385, %v1494
    %vm1597 = vcmp.lt.f32.partialorder %v1387, %v1494
    %vm1598 = vcmp.lt.f32.partialorder %v1389, %v1494
    %vm1599 = vcmp.lt.f32.partialorder %v1391, %v1494
    %vm1600 = vcmp.lt.f32.partialorder %v1393, %v1494
    %vm1601 = vcmp.lt.f32.partialorder %v1395, %v1494
    %vm1602 = vcmp.lt.f32.partialorder %v1397, %v1494
    %vm1603 = vcmp.lt.f32.partialorder %v1399, %v1494
    %vm1604 = vcmp.lt.f32.partialorder %v1401, %v1494
    %vm1605 = vcmp.lt.f32.partialorder %v1403, %v1494
    %vm1606 = vcmp.lt.f32.partialorder %v1405, %v1494
    %vm1607 = vcmp.lt.f32.partialorder %v1407, %v1498
    %vm1608 = vcmp.lt.f32.partialorder %v1409, %v1498
    %vm1609 = vcmp.lt.f32.partialorder %v1411, %v1498
    %vm1610 = vcmp.lt.f32.partialorder %v1413, %v1498
    %vm1611 = vcmp.lt.f32.partialorder %v1415, %v1498
    %vm1612 = vcmp.lt.f32.partialorder %v1417, %v1498
    %vm1613 = vcmp.lt.f32.partialorder %v1419, %v1498
    %vm1614 = vcmp.lt.f32.partialorder %v1421, %v1498
    %vm1615 = vcmp.lt.f32.partialorder %v1423, %v1498
    %vm1616 = vcmp.lt.f32.partialorder %v1425, %v1498
    %vm1617 = vcmp.lt.f32.partialorder %v1427, %v1498
    %vm1618 = vcmp.lt.f32.partialorder %v1429, %v1498
    %vm1619 = vcmp.lt.f32.partialorder %v1431, %v1498
    %vm1620 = vcmp.lt.f32.partialorder %v1433, %v1498
    %vm1621 = vcmp.lt.f32.partialorder %v1435, %v1498
    %vm1622 = vcmp.lt.f32.partialorder %v1437, %v1498
    %vm1623 = vcmp.lt.f32.partialorder %v1439, %v1502
    %vm1624 = vcmp.lt.f32.partialorder %v1441, %v1502
    %vm1625 = vcmp.lt.f32.partialorder %v1443, %v1502
    %vm1626 = vcmp.lt.f32.partialorder %v1445, %v1502
    %vm1627 = vcmp.lt.f32.partialorder %v1447, %v1502
    %vm1628 = vcmp.lt.f32.partialorder %v1449, %v1502
    %vm1629 = vcmp.lt.f32.partialorder %v1451, %v1502
    %vm1630 = vcmp.lt.f32.partialorder %v1453, %v1502
    %vm1631 = vcmp.lt.f32.partialorder %v1455, %v1502
    %vm1632 = vcmp.lt.f32.partialorder %v1457, %v1502
    %vm1633 = vcmp.lt.f32.partialorder %v1459, %v1502
    %vm1634 = vcmp.lt.f32.partialorder %v1461, %v1502
    %vm1635 = vcmp.lt.f32.partialorder %v1463, %v1502
    %vm1636 = vcmp.lt.f32.partialorder %v1465, %v1502
    %vm1637 = vcmp.lt.f32.partialorder %v1467, %v1502
    %vm1638 = vcmp.lt.f32.partialorder %v1469, %v1502
    %v1639 = vlaneseq
    %v1640 = vshrl.u32 %v1639, 7
    %v1641 = vsub.s32 0, %v1640
    %v1642 = vrot.slane %v53, %v1641
    %1644 = vbcast.lane.b32.xlu0 %v1642, 256
    %v1645 = vpop.permute.xlu0 %1644
    %s1647 = sor.u32 256, 8
    %1648 = vbcast.lane.b32.xlu0 %v1642, %s1647
    %v1649 = vpop.permute.xlu0 %1648
    %s1651 = sor.u32 256, 16
    %1652 = vbcast.lane.b32.xlu0 %v1642, %s1651
    %v1653 = vpop.permute.xlu0 %1652
    %s1655 = sor.u32 256, 24
    %1656 = vbcast.lane.b32.xlu0 %v1642, %s1655
    %v1657 = vpop.permute.xlu0 %1656
    %s1659 = sor.u32 256, 32
    %1660 = vbcast.lane.b32.xlu0 %v1642, %s1659
    %v1661 = vpop.permute.xlu0 %1660
    %s1663 = sor.u32 256, 40
    %1664 = vbcast.lane.b32.xlu0 %v1642, %s1663
    %v1665 = vpop.permute.xlu0 %1664
    %s1667 = sor.u32 256, 48
    %1668 = vbcast.lane.b32.xlu0 %v1642, %s1667
    %v1669 = vpop.permute.xlu0 %1668
    %s1671 = sor.u32 256, 56
    %1672 = vbcast.lane.b32.xlu0 %v1642, %s1671
    %v1673 = vpop.permute.xlu0 %1672
    %s1675 = sor.u32 256, 64
    %1676 = vbcast.lane.b32.xlu0 %v1642, %s1675
    %v1677 = vpop.permute.xlu0 %1676
    %s1679 = sor.u32 256, 72
    %1680 = vbcast.lane.b32.xlu0 %v1642, %s1679
    %v1681 = vpop.permute.xlu0 %1680
    %s1683 = sor.u32 256, 80
    %1684 = vbcast.lane.b32.xlu0 %v1642, %s1683
    %v1685 = vpop.permute.xlu0 %1684
    %s1687 = sor.u32 256, 88
    %1688 = vbcast.lane.b32.xlu0 %v1642, %s1687
    %v1689 = vpop.permute.xlu0 %1688
    %s1691 = sor.u32 256, 96
    %1692 = vbcast.lane.b32.xlu0 %v1642, %s1691
    %v1693 = vpop.permute.xlu0 %1692
    %s1695 = sor.u32 256, 104
    %1696 = vbcast.lane.b32.xlu0 %v1642, %s1695
    %v1697 = vpop.permute.xlu0 %1696
    %s1699 = sor.u32 256, 112
    %1700 = vbcast.lane.b32.xlu0 %v1642, %s1699
    %v1701 = vpop.permute.xlu0 %1700
    %s1703 = sor.u32 256, 120
    %1704 = vbcast.lane.b32.xlu0 %v1642, %s1703
    %v1705 = vpop.permute.xlu0 %1704
    %v1706 = vlaneseq
    %v1707 = vshrl.u32 %v1706, 7
    %v1708 = vsub.s32 1, %v1707
    %v1709 = vrot.slane %v53, %v1708
    %1711 = vbcast.lane.b32.xlu0 %v1709, 256
    %v1712 = vpop.permute.xlu0 %1711
    %s1714 = sor.u32 256, 8
    %1715 = vbcast.lane.b32.xlu0 %v1709, %s1714
    %v1716 = vpop.permute.xlu0 %1715
    %s1718 = sor.u32 256, 16
    %1719 = vbcast.lane.b32.xlu0 %v1709, %s1718
    %v1720 = vpop.permute.xlu0 %1719
    %s1722 = sor.u32 256, 24
    %1723 = vbcast.lane.b32.xlu0 %v1709, %s1722
    %v1724 = vpop.permute.xlu0 %1723
    %s1726 = sor.u32 256, 32
    %1727 = vbcast.lane.b32.xlu0 %v1709, %s1726
    %v1728 = vpop.permute.xlu0 %1727
    %s1730 = sor.u32 256, 40
    %1731 = vbcast.lane.b32.xlu0 %v1709, %s1730
    %v1732 = vpop.permute.xlu0 %1731
    %s1734 = sor.u32 256, 48
    %1735 = vbcast.lane.b32.xlu0 %v1709, %s1734
    %v1736 = vpop.permute.xlu0 %1735
    %s1738 = sor.u32 256, 56
    %1739 = vbcast.lane.b32.xlu0 %v1709, %s1738
    %v1740 = vpop.permute.xlu0 %1739
    %s1742 = sor.u32 256, 64
    %1743 = vbcast.lane.b32.xlu0 %v1709, %s1742
    %v1744 = vpop.permute.xlu0 %1743
    %s1746 = sor.u32 256, 72
    %1747 = vbcast.lane.b32.xlu0 %v1709, %s1746
    %v1748 = vpop.permute.xlu0 %1747
    %s1750 = sor.u32 256, 80
    %1751 = vbcast.lane.b32.xlu0 %v1709, %s1750
    %v1752 = vpop.permute.xlu0 %1751
    %s1754 = sor.u32 256, 88
    %1755 = vbcast.lane.b32.xlu0 %v1709, %s1754
    %v1756 = vpop.permute.xlu0 %1755
    %s1758 = sor.u32 256, 96
    %1759 = vbcast.lane.b32.xlu0 %v1709, %s1758
    %v1760 = vpop.permute.xlu0 %1759
    %s1762 = sor.u32 256, 104
    %1763 = vbcast.lane.b32.xlu0 %v1709, %s1762
    %v1764 = vpop.permute.xlu0 %1763
    %s1766 = sor.u32 256, 112
    %1767 = vbcast.lane.b32.xlu0 %v1709, %s1766
    %v1768 = vpop.permute.xlu0 %1767
    %s1770 = sor.u32 256, 120
    %1771 = vbcast.lane.b32.xlu0 %v1709, %s1770
    %v1772 = vpop.permute.xlu0 %1771
    %v1773 = vlaneseq
    %v1774 = vshrl.u32 %v1773, 7
    %v1775 = vsub.s32 2, %v1774
    %v1776 = vrot.slane %v53, %v1775
    %1778 = vbcast.lane.b32.xlu0 %v1776, 256
    %v1779 = vpop.permute.xlu0 %1778
    %s1781 = sor.u32 256, 8
    %1782 = vbcast.lane.b32.xlu0 %v1776, %s1781
    %v1783 = vpop.permute.xlu0 %1782
    %s1785 = sor.u32 256, 16
    %1786 = vbcast.lane.b32.xlu0 %v1776, %s1785
    %v1787 = vpop.permute.xlu0 %1786
    %s1789 = sor.u32 256, 24
    %1790 = vbcast.lane.b32.xlu0 %v1776, %s1789
    %v1791 = vpop.permute.xlu0 %1790
    %s1793 = sor.u32 256, 32
    %1794 = vbcast.lane.b32.xlu0 %v1776, %s1793
    %v1795 = vpop.permute.xlu0 %1794
    %s1797 = sor.u32 256, 40
    %1798 = vbcast.lane.b32.xlu0 %v1776, %s1797
    %v1799 = vpop.permute.xlu0 %1798
    %s1801 = sor.u32 256, 48
    %1802 = vbcast.lane.b32.xlu0 %v1776, %s1801
    %v1803 = vpop.permute.xlu0 %1802
    %s1805 = sor.u32 256, 56
    %1806 = vbcast.lane.b32.xlu0 %v1776, %s1805
    %v1807 = vpop.permute.xlu0 %1806
    %s1809 = sor.u32 256, 64
    %1810 = vbcast.lane.b32.xlu0 %v1776, %s1809
    %v1811 = vpop.permute.xlu0 %1810
    %s1813 = sor.u32 256, 72
    %1814 = vbcast.lane.b32.xlu0 %v1776, %s1813
    %v1815 = vpop.permute.xlu0 %1814
    %s1817 = sor.u32 256, 80
    %1818 = vbcast.lane.b32.xlu0 %v1776, %s1817
    %v1819 = vpop.permute.xlu0 %1818
    %s1821 = sor.u32 256, 88
    %1822 = vbcast.lane.b32.xlu0 %v1776, %s1821
    %v1823 = vpop.permute.xlu0 %1822
    %s1825 = sor.u32 256, 96
    %1826 = vbcast.lane.b32.xlu0 %v1776, %s1825
    %v1827 = vpop.permute.xlu0 %1826
    %s1829 = sor.u32 256, 104
    %1830 = vbcast.lane.b32.xlu0 %v1776, %s1829
    %v1831 = vpop.permute.xlu0 %1830
    %s1833 = sor.u32 256, 112
    %1834 = vbcast.lane.b32.xlu0 %v1776, %s1833
    %v1835 = vpop.permute.xlu0 %1834
    %s1837 = sor.u32 256, 120
    %1838 = vbcast.lane.b32.xlu0 %v1776, %s1837
    %v1839 = vpop.permute.xlu0 %1838
    %v1840 = vlaneseq
    %v1841 = vshrl.u32 %v1840, 7
    %v1842 = vsub.s32 3, %v1841
    %v1843 = vrot.slane %v53, %v1842
    %1845 = vbcast.lane.b32.xlu0 %v1843, 256
    %v1846 = vpop.permute.xlu0 %1845
    %s1848 = sor.u32 256, 8
    %1849 = vbcast.lane.b32.xlu0 %v1843, %s1848
    %v1850 = vpop.permute.xlu0 %1849
    %s1852 = sor.u32 256, 16
    %1853 = vbcast.lane.b32.xlu0 %v1843, %s1852
    %v1854 = vpop.permute.xlu0 %1853
    %s1856 = sor.u32 256, 24
    %1857 = vbcast.lane.b32.xlu0 %v1843, %s1856
    %v1858 = vpop.permute.xlu0 %1857
    %s1860 = sor.u32 256, 32
    %1861 = vbcast.lane.b32.xlu0 %v1843, %s1860
    %v1862 = vpop.permute.xlu0 %1861
    %s1864 = sor.u32 256, 40
    %1865 = vbcast.lane.b32.xlu0 %v1843, %s1864
    %v1866 = vpop.permute.xlu0 %1865
    %s1868 = sor.u32 256, 48
    %1869 = vbcast.lane.b32.xlu0 %v1843, %s1868
    %v1870 = vpop.permute.xlu0 %1869
    %s1872 = sor.u32 256, 56
    %1873 = vbcast.lane.b32.xlu0 %v1843, %s1872
    %v1874 = vpop.permute.xlu0 %1873
    %s1876 = sor.u32 256, 64
    %1877 = vbcast.lane.b32.xlu0 %v1843, %s1876
    %v1878 = vpop.permute.xlu0 %1877
    %s1880 = sor.u32 256, 72
    %1881 = vbcast.lane.b32.xlu0 %v1843, %s1880
    %v1882 = vpop.permute.xlu0 %1881
    %s1884 = sor.u32 256, 80
    %1885 = vbcast.lane.b32.xlu0 %v1843, %s1884
    %v1886 = vpop.permute.xlu0 %1885
    %s1888 = sor.u32 256, 88
    %1889 = vbcast.lane.b32.xlu0 %v1843, %s1888
    %v1890 = vpop.permute.xlu0 %1889
    %s1892 = sor.u32 256, 96
    %1893 = vbcast.lane.b32.xlu0 %v1843, %s1892
    %v1894 = vpop.permute.xlu0 %1893
    %s1896 = sor.u32 256, 104
    %1897 = vbcast.lane.b32.xlu0 %v1843, %s1896
    %v1898 = vpop.permute.xlu0 %1897
    %s1900 = sor.u32 256, 112
    %1901 = vbcast.lane.b32.xlu0 %v1843, %s1900
    %v1902 = vpop.permute.xlu0 %1901
    %s1904 = sor.u32 256, 120
    %1905 = vbcast.lane.b32.xlu0 %v1843, %s1904
    %v1906 = vpop.permute.xlu0 %1905
    %v1907 = vlaneseq
    %v1908 = vshrl.u32 %v1907, 7
    %v1909 = vsub.s32 4, %v1908
    %v1910 = vrot.slane %v53, %v1909
    %1912 = vbcast.lane.b32.xlu0 %v1910, 256
    %v1913 = vpop.permute.xlu0 %1912
    %s1915 = sor.u32 256, 8
    %1916 = vbcast.lane.b32.xlu0 %v1910, %s1915
    %v1917 = vpop.permute.xlu0 %1916
    %s1919 = sor.u32 256, 16
    %1920 = vbcast.lane.b32.xlu0 %v1910, %s1919
    %v1921 = vpop.permute.xlu0 %1920
    %s1923 = sor.u32 256, 24
    %1924 = vbcast.lane.b32.xlu0 %v1910, %s1923
    %v1925 = vpop.permute.xlu0 %1924
    %s1927 = sor.u32 256, 32
    %1928 = vbcast.lane.b32.xlu0 %v1910, %s1927
    %v1929 = vpop.permute.xlu0 %1928
    %s1931 = sor.u32 256, 40
    %1932 = vbcast.lane.b32.xlu0 %v1910, %s1931
    %v1933 = vpop.permute.xlu0 %1932
    %s1935 = sor.u32 256, 48
    %1936 = vbcast.lane.b32.xlu0 %v1910, %s1935
    %v1937 = vpop.permute.xlu0 %1936
    %s1939 = sor.u32 256, 56
    %1940 = vbcast.lane.b32.xlu0 %v1910, %s1939
    %v1941 = vpop.permute.xlu0 %1940
    %s1943 = sor.u32 256, 64
    %1944 = vbcast.lane.b32.xlu0 %v1910, %s1943
    %v1945 = vpop.permute.xlu0 %1944
    %s1947 = sor.u32 256, 72
    %1948 = vbcast.lane.b32.xlu0 %v1910, %s1947
    %v1949 = vpop.permute.xlu0 %1948
    %s1951 = sor.u32 256, 80
    %1952 = vbcast.lane.b32.xlu0 %v1910, %s1951
    %v1953 = vpop.permute.xlu0 %1952
    %s1955 = sor.u32 256, 88
    %1956 = vbcast.lane.b32.xlu0 %v1910, %s1955
    %v1957 = vpop.permute.xlu0 %1956
    %s1959 = sor.u32 256, 96
    %1960 = vbcast.lane.b32.xlu0 %v1910, %s1959
    %v1961 = vpop.permute.xlu0 %1960
    %s1963 = sor.u32 256, 104
    %1964 = vbcast.lane.b32.xlu0 %v1910, %s1963
    %v1965 = vpop.permute.xlu0 %1964
    %s1967 = sor.u32 256, 112
    %1968 = vbcast.lane.b32.xlu0 %v1910, %s1967
    %v1969 = vpop.permute.xlu0 %1968
    %s1971 = sor.u32 256, 120
    %1972 = vbcast.lane.b32.xlu0 %v1910, %s1971
    %v1973 = vpop.permute.xlu0 %1972
    %v1974 = vlaneseq
    %v1975 = vshrl.u32 %v1974, 7
    %v1976 = vsub.s32 5, %v1975
    %v1977 = vrot.slane %v53, %v1976
    %1979 = vbcast.lane.b32.xlu0 %v1977, 256
    %v1980 = vpop.permute.xlu0 %1979
    %s1982 = sor.u32 256, 8
    %1983 = vbcast.lane.b32.xlu0 %v1977, %s1982
    %v1984 = vpop.permute.xlu0 %1983
    %s1986 = sor.u32 256, 16
    %1987 = vbcast.lane.b32.xlu0 %v1977, %s1986
    %v1988 = vpop.permute.xlu0 %1987
    %s1990 = sor.u32 256, 24
    %1991 = vbcast.lane.b32.xlu0 %v1977, %s1990
    %v1992 = vpop.permute.xlu0 %1991
    %s1994 = sor.u32 256, 32
    %1995 = vbcast.lane.b32.xlu0 %v1977, %s1994
    %v1996 = vpop.permute.xlu0 %1995
    %s1998 = sor.u32 256, 40
    %1999 = vbcast.lane.b32.xlu0 %v1977, %s1998
    %v2000 = vpop.permute.xlu0 %1999
    %s2002 = sor.u32 256, 48
    %2003 = vbcast.lane.b32.xlu0 %v1977, %s2002
    %v2004 = vpop.permute.xlu0 %2003
    %s2006 = sor.u32 256, 56
    %2007 = vbcast.lane.b32.xlu0 %v1977, %s2006
    %v2008 = vpop.permute.xlu0 %2007
    %s2010 = sor.u32 256, 64
    %2011 = vbcast.lane.b32.xlu0 %v1977, %s2010
    %v2012 = vpop.permute.xlu0 %2011
    %s2014 = sor.u32 256, 72
    %2015 = vbcast.lane.b32.xlu0 %v1977, %s2014
    %v2016 = vpop.permute.xlu0 %2015
    %s2018 = sor.u32 256, 80
    %2019 = vbcast.lane.b32.xlu0 %v1977, %s2018
    %v2020 = vpop.permute.xlu0 %2019
    %s2022 = sor.u32 256, 88
    %2023 = vbcast.lane.b32.xlu0 %v1977, %s2022
    %v2024 = vpop.permute.xlu0 %2023
    %s2026 = sor.u32 256, 96
    %2027 = vbcast.lane.b32.xlu0 %v1977, %s2026
    %v2028 = vpop.permute.xlu0 %2027
    %s2030 = sor.u32 256, 104
    %2031 = vbcast.lane.b32.xlu0 %v1977, %s2030
    %v2032 = vpop.permute.xlu0 %2031
    %s2034 = sor.u32 256, 112
    %2035 = vbcast.lane.b32.xlu0 %v1977, %s2034
    %v2036 = vpop.permute.xlu0 %2035
    %s2038 = sor.u32 256, 120
    %2039 = vbcast.lane.b32.xlu0 %v1977, %s2038
    %v2040 = vpop.permute.xlu0 %2039
    %v2041 = vlaneseq
    %v2042 = vshrl.u32 %v2041, 7
    %v2043 = vsub.s32 6, %v2042
    %v2044 = vrot.slane %v53, %v2043
    %2046 = vbcast.lane.b32.xlu0 %v2044, 256
    %v2047 = vpop.permute.xlu0 %2046
    %s2049 = sor.u32 256, 8
    %2050 = vbcast.lane.b32.xlu0 %v2044, %s2049
    %v2051 = vpop.permute.xlu0 %2050
    %s2053 = sor.u32 256, 16
    %2054 = vbcast.lane.b32.xlu0 %v2044, %s2053
    %v2055 = vpop.permute.xlu0 %2054
    %s2057 = sor.u32 256, 24
    %2058 = vbcast.lane.b32.xlu0 %v2044, %s2057
    %v2059 = vpop.permute.xlu0 %2058
    %s2061 = sor.u32 256, 32
    %2062 = vbcast.lane.b32.xlu0 %v2044, %s2061
    %v2063 = vpop.permute.xlu0 %2062
    %s2065 = sor.u32 256, 40
    %2066 = vbcast.lane.b32.xlu0 %v2044, %s2065
    %v2067 = vpop.permute.xlu0 %2066
    %s2069 = sor.u32 256, 48
    %2070 = vbcast.lane.b32.xlu0 %v2044, %s2069
    %v2071 = vpop.permute.xlu0 %2070
    %s2073 = sor.u32 256, 56
    %2074 = vbcast.lane.b32.xlu0 %v2044, %s2073
    %v2075 = vpop.permute.xlu0 %2074
    %s2077 = sor.u32 256, 64
    %2078 = vbcast.lane.b32.xlu0 %v2044, %s2077
    %v2079 = vpop.permute.xlu0 %2078
    %s2081 = sor.u32 256, 72
    %2082 = vbcast.lane.b32.xlu0 %v2044, %s2081
    %v2083 = vpop.permute.xlu0 %2082
    %s2085 = sor.u32 256, 80
    %2086 = vbcast.lane.b32.xlu0 %v2044, %s2085
    %v2087 = vpop.permute.xlu0 %2086
    %s2089 = sor.u32 256, 88
    %2090 = vbcast.lane.b32.xlu0 %v2044, %s2089
    %v2091 = vpop.permute.xlu0 %2090
    %s2093 = sor.u32 256, 96
    %2094 = vbcast.lane.b32.xlu0 %v2044, %s2093
    %v2095 = vpop.permute.xlu0 %2094
    %s2097 = sor.u32 256, 104
    %2098 = vbcast.lane.b32.xlu0 %v2044, %s2097
    %v2099 = vpop.permute.xlu0 %2098
    %s2101 = sor.u32 256, 112
    %2102 = vbcast.lane.b32.xlu0 %v2044, %s2101
    %v2103 = vpop.permute.xlu0 %2102
    %s2105 = sor.u32 256, 120
    %2106 = vbcast.lane.b32.xlu0 %v2044, %s2105
    %v2107 = vpop.permute.xlu0 %2106
    %v2108 = vlaneseq
    %v2109 = vshrl.u32 %v2108, 7
    %v2110 = vsub.s32 7, %v2109
    %v2111 = vrot.slane %v53, %v2110
    %2113 = vbcast.lane.b32.xlu0 %v2111, 256
    %v2114 = vpop.permute.xlu0 %2113
    %s2116 = sor.u32 256, 8
    %2117 = vbcast.lane.b32.xlu0 %v2111, %s2116
    %v2118 = vpop.permute.xlu0 %2117
    %s2120 = sor.u32 256, 16
    %2121 = vbcast.lane.b32.xlu0 %v2111, %s2120
    %v2122 = vpop.permute.xlu0 %2121
    %s2124 = sor.u32 256, 24
    %2125 = vbcast.lane.b32.xlu0 %v2111, %s2124
    %v2126 = vpop.permute.xlu0 %2125
    %s2128 = sor.u32 256, 32
    %2129 = vbcast.lane.b32.xlu0 %v2111, %s2128
    %v2130 = vpop.permute.xlu0 %2129
    %s2132 = sor.u32 256, 40
    %2133 = vbcast.lane.b32.xlu0 %v2111, %s2132
    %v2134 = vpop.permute.xlu0 %2133
    %s2136 = sor.u32 256, 48
    %2137 = vbcast.lane.b32.xlu0 %v2111, %s2136
    %v2138 = vpop.permute.xlu0 %2137
    %s2140 = sor.u32 256, 56
    %2141 = vbcast.lane.b32.xlu0 %v2111, %s2140
    %v2142 = vpop.permute.xlu0 %2141
    %s2144 = sor.u32 256, 64
    %2145 = vbcast.lane.b32.xlu0 %v2111, %s2144
    %v2146 = vpop.permute.xlu0 %2145
    %s2148 = sor.u32 256, 72
    %2149 = vbcast.lane.b32.xlu0 %v2111, %s2148
    %v2150 = vpop.permute.xlu0 %2149
    %s2152 = sor.u32 256, 80
    %2153 = vbcast.lane.b32.xlu0 %v2111, %s2152
    %v2154 = vpop.permute.xlu0 %2153
    %s2156 = sor.u32 256, 88
    %2157 = vbcast.lane.b32.xlu0 %v2111, %s2156
    %v2158 = vpop.permute.xlu0 %2157
    %s2160 = sor.u32 256, 96
    %2161 = vbcast.lane.b32.xlu0 %v2111, %s2160
    %v2162 = vpop.permute.xlu0 %2161
    %s2164 = sor.u32 256, 104
    %2165 = vbcast.lane.b32.xlu0 %v2111, %s2164
    %v2166 = vpop.permute.xlu0 %2165
    %s2168 = sor.u32 256, 112
    %2169 = vbcast.lane.b32.xlu0 %v2111, %s2168
    %v2170 = vpop.permute.xlu0 %2169
    %s2172 = sor.u32 256, 120
    %2173 = vbcast.lane.b32.xlu0 %v2111, %s2172
    %v2174 = vpop.permute.xlu0 %2173
    %v2175 = vsel %vm1511, %v1645, 0
    %v2176 = vsel %vm1512, %v1649, 0
    %v2177 = vsel %vm1513, %v1653, 0
    %v2178 = vsel %vm1514, %v1657, 0
    %v2179 = vsel %vm1515, %v1661, 0
    %v2180 = vsel %vm1516, %v1665, 0
    %v2181 = vsel %vm1517, %v1669, 0
    %v2182 = vsel %vm1518, %v1673, 0
    %v2183 = vsel %vm1519, %v1677, 0
    %v2184 = vsel %vm1520, %v1681, 0
    %v2185 = vsel %vm1521, %v1685, 0
    %v2186 = vsel %vm1522, %v1689, 0
    %v2187 = vsel %vm1523, %v1693, 0
    %v2188 = vsel %vm1524, %v1697, 0
    %v2189 = vsel %vm1525, %v1701, 0
    %v2190 = vsel %vm1526, %v1705, 0
    %v2191 = vsel %vm1527, %v1712, 0
    %v2192 = vsel %vm1528, %v1716, 0
    %v2193 = vsel %vm1529, %v1720, 0
    %v2194 = vsel %vm1530, %v1724, 0
    %v2195 = vsel %vm1531, %v1728, 0
    %v2196 = vsel %vm1532, %v1732, 0
    %v2197 = vsel %vm1533, %v1736, 0
    %v2198 = vsel %vm1534, %v1740, 0
    %v2199 = vsel %vm1535, %v1744, 0
    %v2200 = vsel %vm1536, %v1748, 0
    %v2201 = vsel %vm1537, %v1752, 0
    %v2202 = vsel %vm1538, %v1756, 0
    %v2203 = vsel %vm1539, %v1760, 0
    %v2204 = vsel %vm1540, %v1764, 0
    %v2205 = vsel %vm1541, %v1768, 0
    %v2206 = vsel %vm1542, %v1772, 0
    %v2207 = vsel %vm1543, %v1779, 0
    %v2208 = vsel %vm1544, %v1783, 0
    %v2209 = vsel %vm1545, %v1787, 0
    %v2210 = vsel %vm1546, %v1791, 0
    %v2211 = vsel %vm1547, %v1795, 0
    %v2212 = vsel %vm1548, %v1799, 0
    %v2213 = vsel %vm1549, %v1803, 0
    %v2214 = vsel %vm1550, %v1807, 0
    %v2215 = vsel %vm1551, %v1811, 0
    %v2216 = vsel %vm1552, %v1815, 0
    %v2217 = vsel %vm1553, %v1819, 0
    %v2218 = vsel %vm1554, %v1823, 0
    %v2219 = vsel %vm1555, %v1827, 0
    %v2220 = vsel %vm1556, %v1831, 0
    %v2221 = vsel %vm1557, %v1835, 0
    %v2222 = vsel %vm1558, %v1839, 0
    %v2223 = vsel %vm1559, %v1846, 0
    %v2224 = vsel %vm1560, %v1850, 0
    %v2225 = vsel %vm1561, %v1854, 0
    %v2226 = vsel %vm1562, %v1858, 0
    %v2227 = vsel %vm1563, %v1862, 0
    %v2228 = vsel %vm1564, %v1866, 0
    %v2229 = vsel %vm1565, %v1870, 0
    %v2230 = vsel %vm1566, %v1874, 0
    %v2231 = vsel %vm1567, %v1878, 0
    %v2232 = vsel %vm1568, %v1882, 0
    %v2233 = vsel %vm1569, %v1886, 0
    %v2234 = vsel %vm1570, %v1890, 0
    %v2235 = vsel %vm1571, %v1894, 0
    %v2236 = vsel %vm1572, %v1898, 0
    %v2237 = vsel %vm1573, %v1902, 0
    %v2238 = vsel %vm1574, %v1906, 0
    %v2239 = vsel %vm1575, %v1913, 0
    %v2240 = vsel %vm1576, %v1917, 0
    %v2241 = vsel %vm1577, %v1921, 0
    %v2242 = vsel %vm1578, %v1925, 0
    %v2243 = vsel %vm1579, %v1929, 0
    %v2244 = vsel %vm1580, %v1933, 0
    %v2245 = vsel %vm1581, %v1937, 0
    %v2246 = vsel %vm1582, %v1941, 0
    %v2247 = vsel %vm1583, %v1945, 0
    %v2248 = vsel %vm1584, %v1949, 0
    %v2249 = vsel %vm1585, %v1953, 0
    %v2250 = vsel %vm1586, %v1957, 0
    %v2251 = vsel %vm1587, %v1961, 0
    %v2252 = vsel %vm1588, %v1965, 0
    %v2253 = vsel %vm1589, %v1969, 0
    %v2254 = vsel %vm1590, %v1973, 0
    %v2255 = vsel %vm1591, %v1980, 0
    %v2256 = vsel %vm1592, %v1984, 0
    %v2257 = vsel %vm1593, %v1988, 0
    %v2258 = vsel %vm1594, %v1992, 0
    %v2259 = vsel %vm1595, %v1996, 0
    %v2260 = vsel %vm1596, %v2000, 0
    %v2261 = vsel %vm1597, %v2004, 0
    %v2262 = vsel %vm1598, %v2008, 0
    %v2263 = vsel %vm1599, %v2012, 0
    %v2264 = vsel %vm1600, %v2016, 0
    %v2265 = vsel %vm1601, %v2020, 0
    %v2266 = vsel %vm1602, %v2024, 0
    %v2267 = vsel %vm1603, %v2028, 0
    %v2268 = vsel %vm1604, %v2032, 0
    %v2269 = vsel %vm1605, %v2036, 0
    %v2270 = vsel %vm1606, %v2040, 0
    %v2271 = vsel %vm1607, %v2047, 0
    %v2272 = vsel %vm1608, %v2051, 0
    %v2273 = vsel %vm1609, %v2055, 0
    %v2274 = vsel %vm1610, %v2059, 0
    %v2275 = vsel %vm1611, %v2063, 0
    %v2276 = vsel %vm1612, %v2067, 0
    %v2277 = vsel %vm1613, %v2071, 0
    %v2278 = vsel %vm1614, %v2075, 0
    %v2279 = vsel %vm1615, %v2079, 0
    %v2280 = vsel %vm1616, %v2083, 0
    %v2281 = vsel %vm1617, %v2087, 0
    %v2282 = vsel %vm1618, %v2091, 0
    %v2283 = vsel %vm1619, %v2095, 0
    %v2284 = vsel %vm1620, %v2099, 0
    %v2285 = vsel %vm1621, %v2103, 0
    %v2286 = vsel %vm1622, %v2107, 0
    %v2287 = vsel %vm1623, %v2114, 0
    %v2288 = vsel %vm1624, %v2118, 0
    %v2289 = vsel %vm1625, %v2122, 0
    %v2290 = vsel %vm1626, %v2126, 0
    %v2291 = vsel %vm1627, %v2130, 0
    %v2292 = vsel %vm1628, %v2134, 0
    %v2293 = vsel %vm1629, %v2138, 0
    %v2294 = vsel %vm1630, %v2142, 0
    %v2295 = vsel %vm1631, %v2146, 0
    %v2296 = vsel %vm1632, %v2150, 0
    %v2297 = vsel %vm1633, %v2154, 0
    %v2298 = vsel %vm1634, %v2158, 0
    %v2299 = vsel %vm1635, %v2162, 0
    %v2300 = vsel %vm1636, %v2166, 0
    %v2301 = vsel %vm1637, %v2170, 0
    %v2302 = vsel %vm1638, %v2174, 0
    %v2303 = vld [vmem:[#allocation7] sm:$0xff]
    %vm2304 = vcmp.lt.s32.totalorder %v2303, 15099494
    %v2305 = vsel %vm2304, 1, 0
    %v2306 = vlaneseq
    %v2307 = vshrl.u32 %v2306, 7
    %v2308 = vsub.s32 0, %v2307
    %v2309 = vrot.slane %v2305, %v2308
    %2311 = vbcast.lane.b32.xlu0 %v2309, 256
    %v2312 = vpop.permute.xlu0 %2311
    %s2314 = sor.u32 256, 8
    %2315 = vbcast.lane.b32.xlu0 %v2309, %s2314
    %v2316 = vpop.permute.xlu0 %2315
    %s2318 = sor.u32 256, 16
    %2319 = vbcast.lane.b32.xlu0 %v2309, %s2318
    %v2320 = vpop.permute.xlu0 %2319
    %s2322 = sor.u32 256, 24
    %2323 = vbcast.lane.b32.xlu0 %v2309, %s2322
    %v2324 = vpop.permute.xlu0 %2323
    %s2326 = sor.u32 256, 32
    %2327 = vbcast.lane.b32.xlu0 %v2309, %s2326
    %v2328 = vpop.permute.xlu0 %2327
    %s2330 = sor.u32 256, 40
    %2331 = vbcast.lane.b32.xlu0 %v2309, %s2330
    %v2332 = vpop.permute.xlu0 %2331
    %s2334 = sor.u32 256, 48
    %2335 = vbcast.lane.b32.xlu0 %v2309, %s2334
    %v2336 = vpop.permute.xlu0 %2335
    %s2338 = sor.u32 256, 56
    %2339 = vbcast.lane.b32.xlu0 %v2309, %s2338
    %v2340 = vpop.permute.xlu0 %2339
    %s2342 = sor.u32 256, 64
    %2343 = vbcast.lane.b32.xlu0 %v2309, %s2342
    %v2344 = vpop.permute.xlu0 %2343
    %s2346 = sor.u32 256, 72
    %2347 = vbcast.lane.b32.xlu0 %v2309, %s2346
    %v2348 = vpop.permute.xlu0 %2347
    %s2350 = sor.u32 256, 80
    %2351 = vbcast.lane.b32.xlu0 %v2309, %s2350
    %v2352 = vpop.permute.xlu0 %2351
    %s2354 = sor.u32 256, 88
    %2355 = vbcast.lane.b32.xlu0 %v2309, %s2354
    %v2356 = vpop.permute.xlu0 %2355
    %s2358 = sor.u32 256, 96
    %2359 = vbcast.lane.b32.xlu0 %v2309, %s2358
    %v2360 = vpop.permute.xlu0 %2359
    %s2362 = sor.u32 256, 104
    %2363 = vbcast.lane.b32.xlu0 %v2309, %s2362
    %v2364 = vpop.permute.xlu0 %2363
    %s2366 = sor.u32 256, 112
    %2367 = vbcast.lane.b32.xlu0 %v2309, %s2366
    %v2368 = vpop.permute.xlu0 %2367
    %s2370 = sor.u32 256, 120
    %2371 = vbcast.lane.b32.xlu0 %v2309, %s2370
    %v2372 = vpop.permute.xlu0 %2371
    %v2373 = vlaneseq
    %v2374 = vshrl.u32 %v2373, 7
    %v2375 = vsub.s32 1, %v2374
    %v2376 = vrot.slane %v2305, %v2375
    %2378 = vbcast.lane.b32.xlu0 %v2376, 256
    %v2379 = vpop.permute.xlu0 %2378
    %s2381 = sor.u32 256, 8
    %2382 = vbcast.lane.b32.xlu0 %v2376, %s2381
    %v2383 = vpop.permute.xlu0 %2382
    %s2385 = sor.u32 256, 16
    %2386 = vbcast.lane.b32.xlu0 %v2376, %s2385
    %v2387 = vpop.permute.xlu0 %2386
    %s2389 = sor.u32 256, 24
    %2390 = vbcast.lane.b32.xlu0 %v2376, %s2389
    %v2391 = vpop.permute.xlu0 %2390
    %s2393 = sor.u32 256, 32
    %2394 = vbcast.lane.b32.xlu0 %v2376, %s2393
    %v2395 = vpop.permute.xlu0 %2394
    %s2397 = sor.u32 256, 40
    %2398 = vbcast.lane.b32.xlu0 %v2376, %s2397
    %v2399 = vpop.permute.xlu0 %2398
    %s2401 = sor.u32 256, 48
    %2402 = vbcast.lane.b32.xlu0 %v2376, %s2401
    %v2403 = vpop.permute.xlu0 %2402
    %s2405 = sor.u32 256, 56
    %2406 = vbcast.lane.b32.xlu0 %v2376, %s2405
    %v2407 = vpop.permute.xlu0 %2406
    %s2409 = sor.u32 256, 64
    %2410 = vbcast.lane.b32.xlu0 %v2376, %s2409
    %v2411 = vpop.permute.xlu0 %2410
    %s2413 = sor.u32 256, 72
    %2414 = vbcast.lane.b32.xlu0 %v2376, %s2413
    %v2415 = vpop.permute.xlu0 %2414
    %s2417 = sor.u32 256, 80
    %2418 = vbcast.lane.b32.xlu0 %v2376, %s2417
    %v2419 = vpop.permute.xlu0 %2418
    %s2421 = sor.u32 256, 88
    %2422 = vbcast.lane.b32.xlu0 %v2376, %s2421
    %v2423 = vpop.permute.xlu0 %2422
    %s2425 = sor.u32 256, 96
    %2426 = vbcast.lane.b32.xlu0 %v2376, %s2425
    %v2427 = vpop.permute.xlu0 %2426
    %s2429 = sor.u32 256, 104
    %2430 = vbcast.lane.b32.xlu0 %v2376, %s2429
    %v2431 = vpop.permute.xlu0 %2430
    %s2433 = sor.u32 256, 112
    %2434 = vbcast.lane.b32.xlu0 %v2376, %s2433
    %v2435 = vpop.permute.xlu0 %2434
    %s2437 = sor.u32 256, 120
    %2438 = vbcast.lane.b32.xlu0 %v2376, %s2437
    %v2439 = vpop.permute.xlu0 %2438
    %v2440 = vlaneseq
    %v2441 = vshrl.u32 %v2440, 7
    %v2442 = vsub.s32 2, %v2441
    %v2443 = vrot.slane %v2305, %v2442
    %2445 = vbcast.lane.b32.xlu0 %v2443, 256
    %v2446 = vpop.permute.xlu0 %2445
    %s2448 = sor.u32 256, 8
    %2449 = vbcast.lane.b32.xlu0 %v2443, %s2448
    %v2450 = vpop.permute.xlu0 %2449
    %s2452 = sor.u32 256, 16
    %2453 = vbcast.lane.b32.xlu0 %v2443, %s2452
    %v2454 = vpop.permute.xlu0 %2453
    %s2456 = sor.u32 256, 24
    %2457 = vbcast.lane.b32.xlu0 %v2443, %s2456
    %v2458 = vpop.permute.xlu0 %2457
    %s2460 = sor.u32 256, 32
    %2461 = vbcast.lane.b32.xlu0 %v2443, %s2460
    %v2462 = vpop.permute.xlu0 %2461
    %s2464 = sor.u32 256, 40
    %2465 = vbcast.lane.b32.xlu0 %v2443, %s2464
    %v2466 = vpop.permute.xlu0 %2465
    %s2468 = sor.u32 256, 48
    %2469 = vbcast.lane.b32.xlu0 %v2443, %s2468
    %v2470 = vpop.permute.xlu0 %2469
    %s2472 = sor.u32 256, 56
    %2473 = vbcast.lane.b32.xlu0 %v2443, %s2472
    %v2474 = vpop.permute.xlu0 %2473
    %s2476 = sor.u32 256, 64
    %2477 = vbcast.lane.b32.xlu0 %v2443, %s2476
    %v2478 = vpop.permute.xlu0 %2477
    %s2480 = sor.u32 256, 72
    %2481 = vbcast.lane.b32.xlu0 %v2443, %s2480
    %v2482 = vpop.permute.xlu0 %2481
    %s2484 = sor.u32 256, 80
    %2485 = vbcast.lane.b32.xlu0 %v2443, %s2484
    %v2486 = vpop.permute.xlu0 %2485
    %s2488 = sor.u32 256, 88
    %2489 = vbcast.lane.b32.xlu0 %v2443, %s2488
    %v2490 = vpop.permute.xlu0 %2489
    %s2492 = sor.u32 256, 96
    %2493 = vbcast.lane.b32.xlu0 %v2443, %s2492
    %v2494 = vpop.permute.xlu0 %2493
    %s2496 = sor.u32 256, 104
    %2497 = vbcast.lane.b32.xlu0 %v2443, %s2496
    %v2498 = vpop.permute.xlu0 %2497
    %s2500 = sor.u32 256, 112
    %2501 = vbcast.lane.b32.xlu0 %v2443, %s2500
    %v2502 = vpop.permute.xlu0 %2501
    %s2504 = sor.u32 256, 120
    %2505 = vbcast.lane.b32.xlu0 %v2443, %s2504
    %v2506 = vpop.permute.xlu0 %2505
    %v2507 = vlaneseq
    %v2508 = vshrl.u32 %v2507, 7
    %v2509 = vsub.s32 3, %v2508
    %v2510 = vrot.slane %v2305, %v2509
    %2512 = vbcast.lane.b32.xlu0 %v2510, 256
    %v2513 = vpop.permute.xlu0 %2512
    %s2515 = sor.u32 256, 8
    %2516 = vbcast.lane.b32.xlu0 %v2510, %s2515
    %v2517 = vpop.permute.xlu0 %2516
    %s2519 = sor.u32 256, 16
    %2520 = vbcast.lane.b32.xlu0 %v2510, %s2519
    %v2521 = vpop.permute.xlu0 %2520
    %s2523 = sor.u32 256, 24
    %2524 = vbcast.lane.b32.xlu0 %v2510, %s2523
    %v2525 = vpop.permute.xlu0 %2524
    %s2527 = sor.u32 256, 32
    %2528 = vbcast.lane.b32.xlu0 %v2510, %s2527
    %v2529 = vpop.permute.xlu0 %2528
    %s2531 = sor.u32 256, 40
    %2532 = vbcast.lane.b32.xlu0 %v2510, %s2531
    %v2533 = vpop.permute.xlu0 %2532
    %s2535 = sor.u32 256, 48
    %2536 = vbcast.lane.b32.xlu0 %v2510, %s2535
    %v2537 = vpop.permute.xlu0 %2536
    %s2539 = sor.u32 256, 56
    %2540 = vbcast.lane.b32.xlu0 %v2510, %s2539
    %v2541 = vpop.permute.xlu0 %2540
    %s2543 = sor.u32 256, 64
    %2544 = vbcast.lane.b32.xlu0 %v2510, %s2543
    %v2545 = vpop.permute.xlu0 %2544
    %s2547 = sor.u32 256, 72
    %2548 = vbcast.lane.b32.xlu0 %v2510, %s2547
    %v2549 = vpop.permute.xlu0 %2548
    %s2551 = sor.u32 256, 80
    %2552 = vbcast.lane.b32.xlu0 %v2510, %s2551
    %v2553 = vpop.permute.xlu0 %2552
    %s2555 = sor.u32 256, 88
    %2556 = vbcast.lane.b32.xlu0 %v2510, %s2555
    %v2557 = vpop.permute.xlu0 %2556
    %s2559 = sor.u32 256, 96
    %2560 = vbcast.lane.b32.xlu0 %v2510, %s2559
    %v2561 = vpop.permute.xlu0 %2560
    %s2563 = sor.u32 256, 104
    %2564 = vbcast.lane.b32.xlu0 %v2510, %s2563
    %v2565 = vpop.permute.xlu0 %2564
    %s2567 = sor.u32 256, 112
    %2568 = vbcast.lane.b32.xlu0 %v2510, %s2567
    %v2569 = vpop.permute.xlu0 %2568
    %s2571 = sor.u32 256, 120
    %2572 = vbcast.lane.b32.xlu0 %v2510, %s2571
    %v2573 = vpop.permute.xlu0 %2572
    %v2574 = vlaneseq
    %v2575 = vshrl.u32 %v2574, 7
    %v2576 = vsub.s32 4, %v2575
    %v2577 = vrot.slane %v2305, %v2576
    %2579 = vbcast.lane.b32.xlu0 %v2577, 256
    %v2580 = vpop.permute.xlu0 %2579
    %s2582 = sor.u32 256, 8
    %2583 = vbcast.lane.b32.xlu0 %v2577, %s2582
    %v2584 = vpop.permute.xlu0 %2583
    %s2586 = sor.u32 256, 16
    %2587 = vbcast.lane.b32.xlu0 %v2577, %s2586
    %v2588 = vpop.permute.xlu0 %2587
    %s2590 = sor.u32 256, 24
    %2591 = vbcast.lane.b32.xlu0 %v2577, %s2590
    %v2592 = vpop.permute.xlu0 %2591
    %s2594 = sor.u32 256, 32
    %2595 = vbcast.lane.b32.xlu0 %v2577, %s2594
    %v2596 = vpop.permute.xlu0 %2595
    %s2598 = sor.u32 256, 40
    %2599 = vbcast.lane.b32.xlu0 %v2577, %s2598
    %v2600 = vpop.permute.xlu0 %2599
    %s2602 = sor.u32 256, 48
    %2603 = vbcast.lane.b32.xlu0 %v2577, %s2602
    %v2604 = vpop.permute.xlu0 %2603
    %s2606 = sor.u32 256, 56
    %2607 = vbcast.lane.b32.xlu0 %v2577, %s2606
    %v2608 = vpop.permute.xlu0 %2607
    %s2610 = sor.u32 256, 64
    %2611 = vbcast.lane.b32.xlu0 %v2577, %s2610
    %v2612 = vpop.permute.xlu0 %2611
    %s2614 = sor.u32 256, 72
    %2615 = vbcast.lane.b32.xlu0 %v2577, %s2614
    %v2616 = vpop.permute.xlu0 %2615
    %s2618 = sor.u32 256, 80
    %2619 = vbcast.lane.b32.xlu0 %v2577, %s2618
    %v2620 = vpop.permute.xlu0 %2619
    %s2622 = sor.u32 256, 88
    %2623 = vbcast.lane.b32.xlu0 %v2577, %s2622
    %v2624 = vpop.permute.xlu0 %2623
    %s2626 = sor.u32 256, 96
    %2627 = vbcast.lane.b32.xlu0 %v2577, %s2626
    %v2628 = vpop.permute.xlu0 %2627
    %s2630 = sor.u32 256, 104
    %2631 = vbcast.lane.b32.xlu0 %v2577, %s2630
    %v2632 = vpop.permute.xlu0 %2631
    %s2634 = sor.u32 256, 112
    %2635 = vbcast.lane.b32.xlu0 %v2577, %s2634
    %v2636 = vpop.permute.xlu0 %2635
    %s2638 = sor.u32 256, 120
    %2639 = vbcast.lane.b32.xlu0 %v2577, %s2638
    %v2640 = vpop.permute.xlu0 %2639
    %v2641 = vlaneseq
    %v2642 = vshrl.u32 %v2641, 7
    %v2643 = vsub.s32 5, %v2642
    %v2644 = vrot.slane %v2305, %v2643
    %2646 = vbcast.lane.b32.xlu0 %v2644, 256
    %v2647 = vpop.permute.xlu0 %2646
    %s2649 = sor.u32 256, 8
    %2650 = vbcast.lane.b32.xlu0 %v2644, %s2649
    %v2651 = vpop.permute.xlu0 %2650
    %s2653 = sor.u32 256, 16
    %2654 = vbcast.lane.b32.xlu0 %v2644, %s2653
    %v2655 = vpop.permute.xlu0 %2654
    %s2657 = sor.u32 256, 24
    %2658 = vbcast.lane.b32.xlu0 %v2644, %s2657
    %v2659 = vpop.permute.xlu0 %2658
    %s2661 = sor.u32 256, 32
    %2662 = vbcast.lane.b32.xlu0 %v2644, %s2661
    %v2663 = vpop.permute.xlu0 %2662
    %s2665 = sor.u32 256, 40
    %2666 = vbcast.lane.b32.xlu0 %v2644, %s2665
    %v2667 = vpop.permute.xlu0 %2666
    %s2669 = sor.u32 256, 48
    %2670 = vbcast.lane.b32.xlu0 %v2644, %s2669
    %v2671 = vpop.permute.xlu0 %2670
    %s2673 = sor.u32 256, 56
    %2674 = vbcast.lane.b32.xlu0 %v2644, %s2673
    %v2675 = vpop.permute.xlu0 %2674
    %s2677 = sor.u32 256, 64
    %2678 = vbcast.lane.b32.xlu0 %v2644, %s2677
    %v2679 = vpop.permute.xlu0 %2678
    %s2681 = sor.u32 256, 72
    %2682 = vbcast.lane.b32.xlu0 %v2644, %s2681
    %v2683 = vpop.permute.xlu0 %2682
    %s2685 = sor.u32 256, 80
    %2686 = vbcast.lane.b32.xlu0 %v2644, %s2685
    %v2687 = vpop.permute.xlu0 %2686
    %s2689 = sor.u32 256, 88
    %2690 = vbcast.lane.b32.xlu0 %v2644, %s2689
    %v2691 = vpop.permute.xlu0 %2690
    %s2693 = sor.u32 256, 96
    %2694 = vbcast.lane.b32.xlu0 %v2644, %s2693
    %v2695 = vpop.permute.xlu0 %2694
    %s2697 = sor.u32 256, 104
    %2698 = vbcast.lane.b32.xlu0 %v2644, %s2697
    %v2699 = vpop.permute.xlu0 %2698
    %s2701 = sor.u32 256, 112
    %2702 = vbcast.lane.b32.xlu0 %v2644, %s2701
    %v2703 = vpop.permute.xlu0 %2702
    %s2705 = sor.u32 256, 120
    %2706 = vbcast.lane.b32.xlu0 %v2644, %s2705
    %v2707 = vpop.permute.xlu0 %2706
    %v2708 = vlaneseq
    %v2709 = vshrl.u32 %v2708, 7
    %v2710 = vsub.s32 6, %v2709
    %v2711 = vrot.slane %v2305, %v2710
    %2713 = vbcast.lane.b32.xlu0 %v2711, 256
    %v2714 = vpop.permute.xlu0 %2713
    %s2716 = sor.u32 256, 8
    %2717 = vbcast.lane.b32.xlu0 %v2711, %s2716
    %v2718 = vpop.permute.xlu0 %2717
    %s2720 = sor.u32 256, 16
    %2721 = vbcast.lane.b32.xlu0 %v2711, %s2720
    %v2722 = vpop.permute.xlu0 %2721
    %s2724 = sor.u32 256, 24
    %2725 = vbcast.lane.b32.xlu0 %v2711, %s2724
    %v2726 = vpop.permute.xlu0 %2725
    %s2728 = sor.u32 256, 32
    %2729 = vbcast.lane.b32.xlu0 %v2711, %s2728
    %v2730 = vpop.permute.xlu0 %2729
    %s2732 = sor.u32 256, 40
    %2733 = vbcast.lane.b32.xlu0 %v2711, %s2732
    %v2734 = vpop.permute.xlu0 %2733
    %s2736 = sor.u32 256, 48
    %2737 = vbcast.lane.b32.xlu0 %v2711, %s2736
    %v2738 = vpop.permute.xlu0 %2737
    %s2740 = sor.u32 256, 56
    %2741 = vbcast.lane.b32.xlu0 %v2711, %s2740
    %v2742 = vpop.permute.xlu0 %2741
    %s2744 = sor.u32 256, 64
    %2745 = vbcast.lane.b32.xlu0 %v2711, %s2744
    %v2746 = vpop.permute.xlu0 %2745
    %s2748 = sor.u32 256, 72
    %2749 = vbcast.lane.b32.xlu0 %v2711, %s2748
    %v2750 = vpop.permute.xlu0 %2749
    %s2752 = sor.u32 256, 80
    %2753 = vbcast.lane.b32.xlu0 %v2711, %s2752
    %v2754 = vpop.permute.xlu0 %2753
    %s2756 = sor.u32 256, 88
    %2757 = vbcast.lane.b32.xlu0 %v2711, %s2756
    %v2758 = vpop.permute.xlu0 %2757
    %s2760 = sor.u32 256, 96
    %2761 = vbcast.lane.b32.xlu0 %v2711, %s2760
    %v2762 = vpop.permute.xlu0 %2761
    %s2764 = sor.u32 256, 104
    %2765 = vbcast.lane.b32.xlu0 %v2711, %s2764
    %v2766 = vpop.permute.xlu0 %2765
    %s2768 = sor.u32 256, 112
    %2769 = vbcast.lane.b32.xlu0 %v2711, %s2768
    %v2770 = vpop.permute.xlu0 %2769
    %s2772 = sor.u32 256, 120
    %2773 = vbcast.lane.b32.xlu0 %v2711, %s2772
    %v2774 = vpop.permute.xlu0 %2773
    %v2775 = vlaneseq
    %v2776 = vshrl.u32 %v2775, 7
    %v2777 = vsub.s32 7, %v2776
    %v2778 = vrot.slane %v2305, %v2777
    %2780 = vbcast.lane.b32.xlu0 %v2778, 256
    %v2781 = vpop.permute.xlu0 %2780
    %s2783 = sor.u32 256, 8
    %2784 = vbcast.lane.b32.xlu0 %v2778, %s2783
    %v2785 = vpop.permute.xlu0 %2784
    %s2787 = sor.u32 256, 16
    %2788 = vbcast.lane.b32.xlu0 %v2778, %s2787
    %v2789 = vpop.permute.xlu0 %2788
    %s2791 = sor.u32 256, 24
    %2792 = vbcast.lane.b32.xlu0 %v2778, %s2791
    %v2793 = vpop.permute.xlu0 %2792
    %s2795 = sor.u32 256, 32
    %2796 = vbcast.lane.b32.xlu0 %v2778, %s2795
    %v2797 = vpop.permute.xlu0 %2796
    %s2799 = sor.u32 256, 40
    %2800 = vbcast.lane.b32.xlu0 %v2778, %s2799
    %v2801 = vpop.permute.xlu0 %2800
    %s2803 = sor.u32 256, 48
    %2804 = vbcast.lane.b32.xlu0 %v2778, %s2803
    %v2805 = vpop.permute.xlu0 %2804
    %s2807 = sor.u32 256, 56
    %2808 = vbcast.lane.b32.xlu0 %v2778, %s2807
    %v2809 = vpop.permute.xlu0 %2808
    %s2811 = sor.u32 256, 64
    %2812 = vbcast.lane.b32.xlu0 %v2778, %s2811
    %v2813 = vpop.permute.xlu0 %2812
    %s2815 = sor.u32 256, 72
    %2816 = vbcast.lane.b32.xlu0 %v2778, %s2815
    %v2817 = vpop.permute.xlu0 %2816
    %s2819 = sor.u32 256, 80
    %2820 = vbcast.lane.b32.xlu0 %v2778, %s2819
    %v2821 = vpop.permute.xlu0 %2820
    %s2823 = sor.u32 256, 88
    %2824 = vbcast.lane.b32.xlu0 %v2778, %s2823
    %v2825 = vpop.permute.xlu0 %2824
    %s2827 = sor.u32 256, 96
    %2828 = vbcast.lane.b32.xlu0 %v2778, %s2827
    %v2829 = vpop.permute.xlu0 %2828
    %s2831 = sor.u32 256, 104
    %2832 = vbcast.lane.b32.xlu0 %v2778, %s2831
    %v2833 = vpop.permute.xlu0 %2832
    %s2835 = sor.u32 256, 112
    %2836 = vbcast.lane.b32.xlu0 %v2778, %s2835
    %v2837 = vpop.permute.xlu0 %2836
    %s2839 = sor.u32 256, 120
    %2840 = vbcast.lane.b32.xlu0 %v2778, %s2839
    %v2841 = vpop.permute.xlu0 %2840
    %vm2842 = vcmp.ne.s32.totalorder %v2312, 0
    %vm2843 = vcmp.ne.s32.totalorder %v2316, 0
    %vm2844 = vcmp.ne.s32.totalorder %v2320, 0
    %vm2845 = vcmp.ne.s32.totalorder %v2324, 0
    %vm2846 = vcmp.ne.s32.totalorder %v2328, 0
    %vm2847 = vcmp.ne.s32.totalorder %v2332, 0
    %vm2848 = vcmp.ne.s32.totalorder %v2336, 0
    %vm2849 = vcmp.ne.s32.totalorder %v2340, 0
    %vm2850 = vcmp.ne.s32.totalorder %v2344, 0
    %vm2851 = vcmp.ne.s32.totalorder %v2348, 0
    %vm2852 = vcmp.ne.s32.totalorder %v2352, 0
    %vm2853 = vcmp.ne.s32.totalorder %v2356, 0
    %vm2854 = vcmp.ne.s32.totalorder %v2360, 0
    %vm2855 = vcmp.ne.s32.totalorder %v2364, 0
    %vm2856 = vcmp.ne.s32.totalorder %v2368, 0
    %vm2857 = vcmp.ne.s32.totalorder %v2372, 0
    %vm2858 = vcmp.ne.s32.totalorder %v2379, 0
    %vm2859 = vcmp.ne.s32.totalorder %v2383, 0
    %vm2860 = vcmp.ne.s32.totalorder %v2387, 0
    %vm2861 = vcmp.ne.s32.totalorder %v2391, 0
    %vm2862 = vcmp.ne.s32.totalorder %v2395, 0
    %vm2863 = vcmp.ne.s32.totalorder %v2399, 0
    %vm2864 = vcmp.ne.s32.totalorder %v2403, 0
    %vm2865 = vcmp.ne.s32.totalorder %v2407, 0
    %vm2866 = vcmp.ne.s32.totalorder %v2411, 0
    %vm2867 = vcmp.ne.s32.totalorder %v2415, 0
    %vm2868 = vcmp.ne.s32.totalorder %v2419, 0
    %vm2869 = vcmp.ne.s32.totalorder %v2423, 0
    %vm2870 = vcmp.ne.s32.totalorder %v2427, 0
    %vm2871 = vcmp.ne.s32.totalorder %v2431, 0
    %vm2872 = vcmp.ne.s32.totalorder %v2435, 0
    %vm2873 = vcmp.ne.s32.totalorder %v2439, 0
    %vm2874 = vcmp.ne.s32.totalorder %v2446, 0
    %vm2875 = vcmp.ne.s32.totalorder %v2450, 0
    %vm2876 = vcmp.ne.s32.totalorder %v2454, 0
    %vm2877 = vcmp.ne.s32.totalorder %v2458, 0
    %vm2878 = vcmp.ne.s32.totalorder %v2462, 0
    %vm2879 = vcmp.ne.s32.totalorder %v2466, 0
    %vm2880 = vcmp.ne.s32.totalorder %v2470, 0
    %vm2881 = vcmp.ne.s32.totalorder %v2474, 0
    %vm2882 = vcmp.ne.s32.totalorder %v2478, 0
    %vm2883 = vcmp.ne.s32.totalorder %v2482, 0
    %vm2884 = vcmp.ne.s32.totalorder %v2486, 0
    %vm2885 = vcmp.ne.s32.totalorder %v2490, 0
    %vm2886 = vcmp.ne.s32.totalorder %v2494, 0
    %vm2887 = vcmp.ne.s32.totalorder %v2498, 0
    %vm2888 = vcmp.ne.s32.totalorder %v2502, 0
    %vm2889 = vcmp.ne.s32.totalorder %v2506, 0
    %vm2890 = vcmp.ne.s32.totalorder %v2513, 0
    %vm2891 = vcmp.ne.s32.totalorder %v2517, 0
    %vm2892 = vcmp.ne.s32.totalorder %v2521, 0
    %vm2893 = vcmp.ne.s32.totalorder %v2525, 0
    %vm2894 = vcmp.ne.s32.totalorder %v2529, 0
    %vm2895 = vcmp.ne.s32.totalorder %v2533, 0
    %vm2896 = vcmp.ne.s32.totalorder %v2537, 0
    %vm2897 = vcmp.ne.s32.totalorder %v2541, 0
    %vm2898 = vcmp.ne.s32.totalorder %v2545, 0
    %vm2899 = vcmp.ne.s32.totalorder %v2549, 0
    %vm2900 = vcmp.ne.s32.totalorder %v2553, 0
    %vm2901 = vcmp.ne.s32.totalorder %v2557, 0
    %vm2902 = vcmp.ne.s32.totalorder %v2561, 0
    %vm2903 = vcmp.ne.s32.totalorder %v2565, 0
    %vm2904 = vcmp.ne.s32.totalorder %v2569, 0
    %vm2905 = vcmp.ne.s32.totalorder %v2573, 0
    %vm2906 = vcmp.ne.s32.totalorder %v2580, 0
    %vm2907 = vcmp.ne.s32.totalorder %v2584, 0
    %vm2908 = vcmp.ne.s32.totalorder %v2588, 0
    %vm2909 = vcmp.ne.s32.totalorder %v2592, 0
    %vm2910 = vcmp.ne.s32.totalorder %v2596, 0
    %vm2911 = vcmp.ne.s32.totalorder %v2600, 0
    %vm2912 = vcmp.ne.s32.totalorder %v2604, 0
    %vm2913 = vcmp.ne.s32.totalorder %v2608, 0
    %vm2914 = vcmp.ne.s32.totalorder %v2612, 0
    %vm2915 = vcmp.ne.s32.totalorder %v2616, 0
    %vm2916 = vcmp.ne.s32.totalorder %v2620, 0
    %vm2917 = vcmp.ne.s32.totalorder %v2624, 0
    %vm2918 = vcmp.ne.s32.totalorder %v2628, 0
    %vm2919 = vcmp.ne.s32.totalorder %v2632, 0
    %vm2920 = vcmp.ne.s32.totalorder %v2636, 0
    %vm2921 = vcmp.ne.s32.totalorder %v2640, 0
    %vm2922 = vcmp.ne.s32.totalorder %v2647, 0
    %vm2923 = vcmp.ne.s32.totalorder %v2651, 0
    %vm2924 = vcmp.ne.s32.totalorder %v2655, 0
    %vm2925 = vcmp.ne.s32.totalorder %v2659, 0
    %vm2926 = vcmp.ne.s32.totalorder %v2663, 0
    %vm2927 = vcmp.ne.s32.totalorder %v2667, 0
    %vm2928 = vcmp.ne.s32.totalorder %v2671, 0
    %vm2929 = vcmp.ne.s32.totalorder %v2675, 0
    %vm2930 = vcmp.ne.s32.totalorder %v2679, 0
    %vm2931 = vcmp.ne.s32.totalorder %v2683, 0
    %vm2932 = vcmp.ne.s32.totalorder %v2687, 0
    %vm2933 = vcmp.ne.s32.totalorder %v2691, 0
    %vm2934 = vcmp.ne.s32.totalorder %v2695, 0
    %vm2935 = vcmp.ne.s32.totalorder %v2699, 0
    %vm2936 = vcmp.ne.s32.totalorder %v2703, 0
    %vm2937 = vcmp.ne.s32.totalorder %v2707, 0
    %vm2938 = vcmp.ne.s32.totalorder %v2714, 0
    %vm2939 = vcmp.ne.s32.totalorder %v2718, 0
    %vm2940 = vcmp.ne.s32.totalorder %v2722, 0
    %vm2941 = vcmp.ne.s32.totalorder %v2726, 0
    %vm2942 = vcmp.ne.s32.totalorder %v2730, 0
    %vm2943 = vcmp.ne.s32.totalorder %v2734, 0
    %vm2944 = vcmp.ne.s32.totalorder %v2738, 0
    %vm2945 = vcmp.ne.s32.totalorder %v2742, 0
    %vm2946 = vcmp.ne.s32.totalorder %v2746, 0
    %vm2947 = vcmp.ne.s32.totalorder %v2750, 0
    %vm2948 = vcmp.ne.s32.totalorder %v2754, 0
    %vm2949 = vcmp.ne.s32.totalorder %v2758, 0
    %vm2950 = vcmp.ne.s32.totalorder %v2762, 0
    %vm2951 = vcmp.ne.s32.totalorder %v2766, 0
    %vm2952 = vcmp.ne.s32.totalorder %v2770, 0
    %vm2953 = vcmp.ne.s32.totalorder %v2774, 0
    %vm2954 = vcmp.ne.s32.totalorder %v2781, 0
    %vm2955 = vcmp.ne.s32.totalorder %v2785, 0
    %vm2956 = vcmp.ne.s32.totalorder %v2789, 0
    %vm2957 = vcmp.ne.s32.totalorder %v2793, 0
    %vm2958 = vcmp.ne.s32.totalorder %v2797, 0
    %vm2959 = vcmp.ne.s32.totalorder %v2801, 0
    %vm2960 = vcmp.ne.s32.totalorder %v2805, 0
    %vm2961 = vcmp.ne.s32.totalorder %v2809, 0
    %vm2962 = vcmp.ne.s32.totalorder %v2813, 0
    %vm2963 = vcmp.ne.s32.totalorder %v2817, 0
    %vm2964 = vcmp.ne.s32.totalorder %v2821, 0
    %vm2965 = vcmp.ne.s32.totalorder %v2825, 0
    %vm2966 = vcmp.ne.s32.totalorder %v2829, 0
    %vm2967 = vcmp.ne.s32.totalorder %v2833, 0
    %vm2968 = vcmp.ne.s32.totalorder %v2837, 0
    %vm2969 = vcmp.ne.s32.totalorder %v2841, 0
    %vm2970 = vmand %vm1511, %vm2842
    %vm2971 = vmand %vm1512, %vm2843
    %vm2972 = vmand %vm1513, %vm2844
    %vm2973 = vmand %vm1514, %vm2845
    %vm2974 = vmand %vm1515, %vm2846
    %vm2975 = vmand %vm1516, %vm2847
    %vm2976 = vmand %vm1517, %vm2848
    %vm2977 = vmand %vm1518, %vm2849
    %vm2978 = vmand %vm1519, %vm2850
    %vm2979 = vmand %vm1520, %vm2851
    %vm2980 = vmand %vm1521, %vm2852
    %vm2981 = vmand %vm1522, %vm2853
    %vm2982 = vmand %vm1523, %vm2854
    %vm2983 = vmand %vm1524, %vm2855
    %vm2984 = vmand %vm1525, %vm2856
    %vm2985 = vmand %vm1526, %vm2857
    %vm2986 = vmand %vm1527, %vm2858
    %vm2987 = vmand %vm1528, %vm2859
    %vm2988 = vmand %vm1529, %vm2860
    %vm2989 = vmand %vm1530, %vm2861
    %vm2990 = vmand %vm1531, %vm2862
    %vm2991 = vmand %vm1532, %vm2863
    %vm2992 = vmand %vm1533, %vm2864
    %vm2993 = vmand %vm1534, %vm2865
    %vm2994 = vmand %vm1535, %vm2866
    %vm2995 = vmand %vm1536, %vm2867
    %vm2996 = vmand %vm1537, %vm2868
    %vm2997 = vmand %vm1538, %vm2869
    %vm2998 = vmand %vm1539, %vm2870
    %vm2999 = vmand %vm1540, %vm2871
    %vm3000 = vmand %vm1541, %vm2872
    %vm3001 = vmand %vm1542, %vm2873
    %vm3002 = vmand %vm1543, %vm2874
    %vm3003 = vmand %vm1544, %vm2875
    %vm3004 = vmand %vm1545, %vm2876
    %vm3005 = vmand %vm1546, %vm2877
    %vm3006 = vmand %vm1547, %vm2878
    %vm3007 = vmand %vm1548, %vm2879
    %vm3008 = vmand %vm1549, %vm2880
    %vm3009 = vmand %vm1550, %vm2881
    %vm3010 = vmand %vm1551, %vm2882
    %vm3011 = vmand %vm1552, %vm2883
    %vm3012 = vmand %vm1553, %vm2884
    %vm3013 = vmand %vm1554, %vm2885
    %vm3014 = vmand %vm1555, %vm2886
    %vm3015 = vmand %vm1556, %vm2887
    %vm3016 = vmand %vm1557, %vm2888
    %vm3017 = vmand %vm1558, %vm2889
    %vm3018 = vmand %vm1559, %vm2890
    %vm3019 = vmand %vm1560, %vm2891
    %vm3020 = vmand %vm1561, %vm2892
    %vm3021 = vmand %vm1562, %vm2893
    %vm3022 = vmand %vm1563, %vm2894
    %vm3023 = vmand %vm1564, %vm2895
    %vm3024 = vmand %vm1565, %vm2896
    %vm3025 = vmand %vm1566, %vm2897
    %vm3026 = vmand %vm1567, %vm2898
    %vm3027 = vmand %vm1568, %vm2899
    %vm3028 = vmand %vm1569, %vm2900
    %vm3029 = vmand %vm1570, %vm2901
    %vm3030 = vmand %vm1571, %vm2902
    %vm3031 = vmand %vm1572, %vm2903
    %vm3032 = vmand %vm1573, %vm2904
    %vm3033 = vmand %vm1574, %vm2905
    %vm3034 = vmand %vm1575, %vm2906
    %vm3035 = vmand %vm1576, %vm2907
    %vm3036 = vmand %vm1577, %vm2908
    %vm3037 = vmand %vm1578, %vm2909
    %vm3038 = vmand %vm1579, %vm2910
    %vm3039 = vmand %vm1580, %vm2911
    %vm3040 = vmand %vm1581, %vm2912
    %vm3041 = vmand %vm1582, %vm2913
    %vm3042 = vmand %vm1583, %vm2914
    %vm3043 = vmand %vm1584, %vm2915
    %vm3044 = vmand %vm1585, %vm2916
    %vm3045 = vmand %vm1586, %vm2917
    %vm3046 = vmand %vm1587, %vm2918
    %vm3047 = vmand %vm1588, %vm2919
    %vm3048 = vmand %vm1589, %vm2920
    %vm3049 = vmand %vm1590, %vm2921
    %vm3050 = vmand %vm1591, %vm2922
    %vm3051 = vmand %vm1592, %vm2923
    %vm3052 = vmand %vm1593, %vm2924
    %vm3053 = vmand %vm1594, %vm2925
    %vm3054 = vmand %vm1595, %vm2926
    %vm3055 = vmand %vm1596, %vm2927
    %vm3056 = vmand %vm1597, %vm2928
    %vm3057 = vmand %vm1598, %vm2929
    %vm3058 = vmand %vm1599, %vm2930
    %vm3059 = vmand %vm1600, %vm2931
    %vm3060 = vmand %vm1601, %vm2932
    %vm3061 = vmand %vm1602, %vm2933
    %vm3062 = vmand %vm1603, %vm2934
    %vm3063 = vmand %vm1604, %vm2935
    %vm3064 = vmand %vm1605, %vm2936
    %vm3065 = vmand %vm1606, %vm2937
    %vm3066 = vmand %vm1607, %vm2938
    %vm3067 = vmand %vm1608, %vm2939
    %vm3068 = vmand %vm1609, %vm2940
    %vm3069 = vmand %vm1610, %vm2941
    %vm3070 = vmand %vm1611, %vm2942
    %vm3071 = vmand %vm1612, %vm2943
    %vm3072 = vmand %vm1613, %vm2944
    %vm3073 = vmand %vm1614, %vm2945
    %vm3074 = vmand %vm1615, %vm2946
    %vm3075 = vmand %vm1616, %vm2947
    %vm3076 = vmand %vm1617, %vm2948
    %vm3077 = vmand %vm1618, %vm2949
    %vm3078 = vmand %vm1619, %vm2950
    %vm3079 = vmand %vm1620, %vm2951
    %vm3080 = vmand %vm1621, %vm2952
    %vm3081 = vmand %vm1622, %vm2953
    %vm3082 = vmand %vm1623, %vm2954
    %vm3083 = vmand %vm1624, %vm2955
    %vm3084 = vmand %vm1625, %vm2956
    %vm3085 = vmand %vm1626, %vm2957
    %vm3086 = vmand %vm1627, %vm2958
    %vm3087 = vmand %vm1628, %vm2959
    %vm3088 = vmand %vm1629, %vm2960
    %vm3089 = vmand %vm1630, %vm2961
    %vm3090 = vmand %vm1631, %vm2962
    %vm3091 = vmand %vm1632, %vm2963
    %vm3092 = vmand %vm1633, %vm2964
    %vm3093 = vmand %vm1634, %vm2965
    %vm3094 = vmand %vm1635, %vm2966
    %vm3095 = vmand %vm1636, %vm2967
    %vm3096 = vmand %vm1637, %vm2968
    %vm3097 = vmand %vm1638, %vm2969
    %v3098 = vsel %vm2970, 2, %v1645
    %v3099 = vsel %vm2971, 2, %v1649
    %v3100 = vsel %vm2972, 2, %v1653
    %v3101 = vsel %vm2973, 2, %v1657
    %v3102 = vsel %vm2974, 2, %v1661
    %v3103 = vsel %vm2975, 2, %v1665
    %v3104 = vsel %vm2976, 2, %v1669
    %v3105 = vsel %vm2977, 2, %v1673
    %v3106 = vsel %vm2978, 2, %v1677
    %v3107 = vsel %vm2979, 2, %v1681
    %v3108 = vsel %vm2980, 2, %v1685
    %v3109 = vsel %vm2981, 2, %v1689
    %v3110 = vsel %vm2982, 2, %v1693
    %v3111 = vsel %vm2983, 2, %v1697
    %v3112 = vsel %vm2984, 2, %v1701
    %v3113 = vsel %vm2985, 2, %v1705
    %v3114 = vsel %vm2986, 2, %v1712
    %v3115 = vsel %vm2987, 2, %v1716
    %v3116 = vsel %vm2988, 2, %v1720
    %v3117 = vsel %vm2989, 2, %v1724
    %v3118 = vsel %vm2990, 2, %v1728
    %v3119 = vsel %vm2991, 2, %v1732
    %v3120 = vsel %vm2992, 2, %v1736
    %v3121 = vsel %vm2993, 2, %v1740
    %v3122 = vsel %vm2994, 2, %v1744
    %v3123 = vsel %vm2995, 2, %v1748
    %v3124 = vsel %vm2996, 2, %v1752
    %v3125 = vsel %vm2997, 2, %v1756
    %v3126 = vsel %vm2998, 2, %v1760
    %v3127 = vsel %vm2999, 2, %v1764
    %v3128 = vsel %vm3000, 2, %v1768
    %v3129 = vsel %vm3001, 2, %v1772
    %v3130 = vsel %vm3002, 2, %v1779
    %v3131 = vsel %vm3003, 2, %v1783
    %v3132 = vsel %vm3004, 2, %v1787
    %v3133 = vsel %vm3005, 2, %v1791
    %v3134 = vsel %vm3006, 2, %v1795
    %v3135 = vsel %vm3007, 2, %v1799
    %v3136 = vsel %vm3008, 2, %v1803
    %v3137 = vsel %vm3009, 2, %v1807
    %v3138 = vsel %vm3010, 2, %v1811
    %v3139 = vsel %vm3011, 2, %v1815
    %v3140 = vsel %vm3012, 2, %v1819
    %v3141 = vsel %vm3013, 2, %v1823
    %v3142 = vsel %vm3014, 2, %v1827
    %v3143 = vsel %vm3015, 2, %v1831
    %v3144 = vsel %vm3016, 2, %v1835
    %v3145 = vsel %vm3017, 2, %v1839
    %v3146 = vsel %vm3018, 2, %v1846
    %v3147 = vsel %vm3019, 2, %v1850
    %v3148 = vsel %vm3020, 2, %v1854
    %v3149 = vsel %vm3021, 2, %v1858
    %v3150 = vsel %vm3022, 2, %v1862
    %v3151 = vsel %vm3023, 2, %v1866
    %v3152 = vsel %vm3024, 2, %v1870
    %v3153 = vsel %vm3025, 2, %v1874
    %v3154 = vsel %vm3026, 2, %v1878
    %v3155 = vsel %vm3027, 2, %v1882
    %v3156 = vsel %vm3028, 2, %v1886
    %v3157 = vsel %vm3029, 2, %v1890
    %v3158 = vsel %vm3030, 2, %v1894
    %v3159 = vsel %vm3031, 2, %v1898
    %v3160 = vsel %vm3032, 2, %v1902
    %v3161 = vsel %vm3033, 2, %v1906
    %v3162 = vsel %vm3034, 2, %v1913
    %v3163 = vsel %vm3035, 2, %v1917
    %v3164 = vsel %vm3036, 2, %v1921
    %v3165 = vsel %vm3037, 2, %v1925
    %v3166 = vsel %vm3038, 2, %v1929
    %v3167 = vsel %vm3039, 2, %v1933
    %v3168 = vsel %vm3040, 2, %v1937
    %v3169 = vsel %vm3041, 2, %v1941
    %v3170 = vsel %vm3042, 2, %v1945
    %v3171 = vsel %vm3043, 2, %v1949
    %v3172 = vsel %vm3044, 2, %v1953
    %v3173 = vsel %vm3045, 2, %v1957
    %v3174 = vsel %vm3046, 2, %v1961
    %v3175 = vsel %vm3047, 2, %v1965
    %v3176 = vsel %vm3048, 2, %v1969
    %v3177 = vsel %vm3049, 2, %v1973
    %v3178 = vsel %vm3050, 2, %v1980
    %v3179 = vsel %vm3051, 2, %v1984
    %v3180 = vsel %vm3052, 2, %v1988
    %v3181 = vsel %vm3053, 2, %v1992
    %v3182 = vsel %vm3054, 2, %v1996
    %v3183 = vsel %vm3055, 2, %v2000
    %v3184 = vsel %vm3056, 2, %v2004
    %v3185 = vsel %vm3057, 2, %v2008
    %v3186 = vsel %vm3058, 2, %v2012
    %v3187 = vsel %vm3059, 2, %v2016
    %v3188 = vsel %vm3060, 2, %v2020
    %v3189 = vsel %vm3061, 2, %v2024
    %v3190 = vsel %vm3062, 2, %v2028
    %v3191 = vsel %vm3063, 2, %v2032
    %v3192 = vsel %vm3064, 2, %v2036
    %v3193 = vsel %vm3065, 2, %v2040
    %v3194 = vsel %vm3066, 2, %v2047
    %v3195 = vsel %vm3067, 2, %v2051
    %v3196 = vsel %vm3068, 2, %v2055
    %v3197 = vsel %vm3069, 2, %v2059
    %v3198 = vsel %vm3070, 2, %v2063
    %v3199 = vsel %vm3071, 2, %v2067
    %v3200 = vsel %vm3072, 2, %v2071
    %v3201 = vsel %vm3073, 2, %v2075
    %v3202 = vsel %vm3074, 2, %v2079
    %v3203 = vsel %vm3075, 2, %v2083
    %v3204 = vsel %vm3076, 2, %v2087
    %v3205 = vsel %vm3077, 2, %v2091
    %v3206 = vsel %vm3078, 2, %v2095
    %v3207 = vsel %vm3079, 2, %v2099
    %v3208 = vsel %vm3080, 2, %v2103
    %v3209 = vsel %vm3081, 2, %v2107
    %v3210 = vsel %vm3082, 2, %v2114
    %v3211 = vsel %vm3083, 2, %v2118
    %v3212 = vsel %vm3084, 2, %v2122
    %v3213 = vsel %vm3085, 2, %v2126
    %v3214 = vsel %vm3086, 2, %v2130
    %v3215 = vsel %vm3087, 2, %v2134
    %v3216 = vsel %vm3088, 2, %v2138
    %v3217 = vsel %vm3089, 2, %v2142
    %v3218 = vsel %vm3090, 2, %v2146
    %v3219 = vsel %vm3091, 2, %v2150
    %v3220 = vsel %vm3092, 2, %v2154
    %v3221 = vsel %vm3093, 2, %v2158
    %v3222 = vsel %vm3094, 2, %v2162
    %v3223 = vsel %vm3095, 2, %v2166
    %v3224 = vsel %vm3096, 2, %v2170
    %v3225 = vsel %vm3097, 2, %v2174
    %3226 = vset.pattern.permute.xlu0 0
    %3227 = vperm.xlu0 %3226, %v3098
    %v3228 = vpop.permute.xlu0 %3227
    %3229 = vset.pattern.permute.xlu0 0
    %3230 = vperm.xlu0 %3229, %v3099
    %v3231 = vpop.permute.xlu0 %3230
    %3232 = vset.pattern.permute.xlu0 0
    %3233 = vperm.xlu0 %3232, %v3100
    %v3234 = vpop.permute.xlu0 %3233
    %3235 = vset.pattern.permute.xlu0 0
    %3236 = vperm.xlu0 %3235, %v3101
    %v3237 = vpop.permute.xlu0 %3236
    %3238 = vset.pattern.permute.xlu0 0
    %3239 = vperm.xlu0 %3238, %v3102
    %v3240 = vpop.permute.xlu0 %3239
    %3241 = vset.pattern.permute.xlu0 0
    %3242 = vperm.xlu0 %3241, %v3103
    %v3243 = vpop.permute.xlu0 %3242
    %3244 = vset.pattern.permute.xlu0 0
    %3245 = vperm.xlu0 %3244, %v3104
    %v3246 = vpop.permute.xlu0 %3245
    %3247 = vset.pattern.permute.xlu0 0
    %3248 = vperm.xlu0 %3247, %v3105
    %v3249 = vpop.permute.xlu0 %3248
    %3250 = vset.pattern.permute.xlu0 0
    %3251 = vperm.xlu0 %3250, %v3106
    %v3252 = vpop.permute.xlu0 %3251
    %3253 = vset.pattern.permute.xlu0 0
    %3254 = vperm.xlu0 %3253, %v3107
    %v3255 = vpop.permute.xlu0 %3254
    %3256 = vset.pattern.permute.xlu0 0
    %3257 = vperm.xlu0 %3256, %v3108
    %v3258 = vpop.permute.xlu0 %3257
    %3259 = vset.pattern.permute.xlu0 0
    %3260 = vperm.xlu0 %3259, %v3109
    %v3261 = vpop.permute.xlu0 %3260
    %3262 = vset.pattern.permute.xlu0 0
    %3263 = vperm.xlu0 %3262, %v3110
    %v3264 = vpop.permute.xlu0 %3263
    %3265 = vset.pattern.permute.xlu0 0
    %3266 = vperm.xlu0 %3265, %v3111
    %v3267 = vpop.permute.xlu0 %3266
    %3268 = vset.pattern.permute.xlu0 0
    %3269 = vperm.xlu0 %3268, %v3112
    %v3270 = vpop.permute.xlu0 %3269
    %3271 = vset.pattern.permute.xlu0 0
    %3272 = vperm.xlu0 %3271, %v3113
    %v3273 = vpop.permute.xlu0 %3272
    %3274 = vset.pattern.permute.xlu0 0
    %3275 = vperm.xlu0 %3274, %v3114
    %v3276 = vpop.permute.xlu0 %3275
    %3277 = vset.pattern.permute.xlu0 0
    %3278 = vperm.xlu0 %3277, %v3115
    %v3279 = vpop.permute.xlu0 %3278
    %3280 = vset.pattern.permute.xlu0 0
    %3281 = vperm.xlu0 %3280, %v3116
    %v3282 = vpop.permute.xlu0 %3281
    %3283 = vset.pattern.permute.xlu0 0
    %3284 = vperm.xlu0 %3283, %v3117
    %v3285 = vpop.permute.xlu0 %3284
    %3286 = vset.pattern.permute.xlu0 0
    %3287 = vperm.xlu0 %3286, %v3118
    %v3288 = vpop.permute.xlu0 %3287
    %3289 = vset.pattern.permute.xlu0 0
    %3290 = vperm.xlu0 %3289, %v3119
    %v3291 = vpop.permute.xlu0 %3290
    %3292 = vset.pattern.permute.xlu0 0
    %3293 = vperm.xlu0 %3292, %v3120
    %v3294 = vpop.permute.xlu0 %3293
    %3295 = vset.pattern.permute.xlu0 0
    %3296 = vperm.xlu0 %3295, %v3121
    %v3297 = vpop.permute.xlu0 %3296
    %3298 = vset.pattern.permute.xlu0 0
    %3299 = vperm.xlu0 %3298, %v3122
    %v3300 = vpop.permute.xlu0 %3299
    %3301 = vset.pattern.permute.xlu0 0
    %3302 = vperm.xlu0 %3301, %v3123
    %v3303 = vpop.permute.xlu0 %3302
    %3304 = vset.pattern.permute.xlu0 0
    %3305 = vperm.xlu0 %3304, %v3124
    %v3306 = vpop.permute.xlu0 %3305
    %3307 = vset.pattern.permute.xlu0 0
    %3308 = vperm.xlu0 %3307, %v3125
    %v3309 = vpop.permute.xlu0 %3308
    %3310 = vset.pattern.permute.xlu0 0
    %3311 = vperm.xlu0 %3310, %v3126
    %v3312 = vpop.permute.xlu0 %3311
    %3313 = vset.pattern.permute.xlu0 0
    %3314 = vperm.xlu0 %3313, %v3127
    %v3315 = vpop.permute.xlu0 %3314
    %3316 = vset.pattern.permute.xlu0 0
    %3317 = vperm.xlu0 %3316, %v3128
    %v3318 = vpop.permute.xlu0 %3317
    %3319 = vset.pattern.permute.xlu0 0
    %3320 = vperm.xlu0 %3319, %v3129
    %v3321 = vpop.permute.xlu0 %3320
    %3322 = vset.pattern.permute.xlu0 0
    %3323 = vperm.xlu0 %3322, %v3130
    %v3324 = vpop.permute.xlu0 %3323
    %3325 = vset.pattern.permute.xlu0 0
    %3326 = vperm.xlu0 %3325, %v3131
    %v3327 = vpop.permute.xlu0 %3326
    %3328 = vset.pattern.permute.xlu0 0
    %3329 = vperm.xlu0 %3328, %v3132
    %v3330 = vpop.permute.xlu0 %3329
    %3331 = vset.pattern.permute.xlu0 0
    %3332 = vperm.xlu0 %3331, %v3133
    %v3333 = vpop.permute.xlu0 %3332
    %3334 = vset.pattern.permute.xlu0 0
    %3335 = vperm.xlu0 %3334, %v3134
    %v3336 = vpop.permute.xlu0 %3335
    %3337 = vset.pattern.permute.xlu0 0
    %3338 = vperm.xlu0 %3337, %v3135
    %v3339 = vpop.permute.xlu0 %3338
    %3340 = vset.pattern.permute.xlu0 0
    %3341 = vperm.xlu0 %3340, %v3136
    %v3342 = vpop.permute.xlu0 %3341
    %3343 = vset.pattern.permute.xlu0 0
    %3344 = vperm.xlu0 %3343, %v3137
    %v3345 = vpop.permute.xlu0 %3344
    %3346 = vset.pattern.permute.xlu0 0
    %3347 = vperm.xlu0 %3346, %v3138
    %v3348 = vpop.permute.xlu0 %3347
    %3349 = vset.pattern.permute.xlu0 0
    %3350 = vperm.xlu0 %3349, %v3139
    %v3351 = vpop.permute.xlu0 %3350
    %3352 = vset.pattern.permute.xlu0 0
    %3353 = vperm.xlu0 %3352, %v3140
    %v3354 = vpop.permute.xlu0 %3353
    %3355 = vset.pattern.permute.xlu0 0
    %3356 = vperm.xlu0 %3355, %v3141
    %v3357 = vpop.permute.xlu0 %3356
    %3358 = vset.pattern.permute.xlu0 0
    %3359 = vperm.xlu0 %3358, %v3142
    %v3360 = vpop.permute.xlu0 %3359
    %3361 = vset.pattern.permute.xlu0 0
    %3362 = vperm.xlu0 %3361, %v3143
    %v3363 = vpop.permute.xlu0 %3362
    %3364 = vset.pattern.permute.xlu0 0
    %3365 = vperm.xlu0 %3364, %v3144
    %v3366 = vpop.permute.xlu0 %3365
    %3367 = vset.pattern.permute.xlu0 0
    %3368 = vperm.xlu0 %3367, %v3145
    %v3369 = vpop.permute.xlu0 %3368
    %3370 = vset.pattern.permute.xlu0 0
    %3371 = vperm.xlu0 %3370, %v3146
    %v3372 = vpop.permute.xlu0 %3371
    %3373 = vset.pattern.permute.xlu0 0
    %3374 = vperm.xlu0 %3373, %v3147
    %v3375 = vpop.permute.xlu0 %3374
    %3376 = vset.pattern.permute.xlu0 0
    %3377 = vperm.xlu0 %3376, %v3148
    %v3378 = vpop.permute.xlu0 %3377
    %3379 = vset.pattern.permute.xlu0 0
    %3380 = vperm.xlu0 %3379, %v3149
    %v3381 = vpop.permute.xlu0 %3380
    %3382 = vset.pattern.permute.xlu0 0
    %3383 = vperm.xlu0 %3382, %v3150
    %v3384 = vpop.permute.xlu0 %3383
    %3385 = vset.pattern.permute.xlu0 0
    %3386 = vperm.xlu0 %3385, %v3151
    %v3387 = vpop.permute.xlu0 %3386
    %3388 = vset.pattern.permute.xlu0 0
    %3389 = vperm.xlu0 %3388, %v3152
    %v3390 = vpop.permute.xlu0 %3389
    %3391 = vset.pattern.permute.xlu0 0
    %3392 = vperm.xlu0 %3391, %v3153
    %v3393 = vpop.permute.xlu0 %3392
    %3394 = vset.pattern.permute.xlu0 0
    %3395 = vperm.xlu0 %3394, %v3154
    %v3396 = vpop.permute.xlu0 %3395
    %3397 = vset.pattern.permute.xlu0 0
    %3398 = vperm.xlu0 %3397, %v3155
    %v3399 = vpop.permute.xlu0 %3398
    %3400 = vset.pattern.permute.xlu0 0
    %3401 = vperm.xlu0 %3400, %v3156
    %v3402 = vpop.permute.xlu0 %3401
    %3403 = vset.pattern.permute.xlu0 0
    %3404 = vperm.xlu0 %3403, %v3157
    %v3405 = vpop.permute.xlu0 %3404
    %3406 = vset.pattern.permute.xlu0 0
    %3407 = vperm.xlu0 %3406, %v3158
    %v3408 = vpop.permute.xlu0 %3407
    %3409 = vset.pattern.permute.xlu0 0
    %3410 = vperm.xlu0 %3409, %v3159
    %v3411 = vpop.permute.xlu0 %3410
    %3412 = vset.pattern.permute.xlu0 0
    %3413 = vperm.xlu0 %3412, %v3160
    %v3414 = vpop.permute.xlu0 %3413
    %3415 = vset.pattern.permute.xlu0 0
    %3416 = vperm.xlu0 %3415, %v3161
    %v3417 = vpop.permute.xlu0 %3416
    %3418 = vset.pattern.permute.xlu0 0
    %3419 = vperm.xlu0 %3418, %v3162
    %v3420 = vpop.permute.xlu0 %3419
    %3421 = vset.pattern.permute.xlu0 0
    %3422 = vperm.xlu0 %3421, %v3163
    %v3423 = vpop.permute.xlu0 %3422
    %3424 = vset.pattern.permute.xlu0 0
    %3425 = vperm.xlu0 %3424, %v3164
    %v3426 = vpop.permute.xlu0 %3425
    %3427 = vset.pattern.permute.xlu0 0
    %3428 = vperm.xlu0 %3427, %v3165
    %v3429 = vpop.permute.xlu0 %3428
    %3430 = vset.pattern.permute.xlu0 0
    %3431 = vperm.xlu0 %3430, %v3166
    %v3432 = vpop.permute.xlu0 %3431
    %3433 = vset.pattern.permute.xlu0 0
    %3434 = vperm.xlu0 %3433, %v3167
    %v3435 = vpop.permute.xlu0 %3434
    %3436 = vset.pattern.permute.xlu0 0
    %3437 = vperm.xlu0 %3436, %v3168
    %v3438 = vpop.permute.xlu0 %3437
    %3439 = vset.pattern.permute.xlu0 0
    %3440 = vperm.xlu0 %3439, %v3169
    %v3441 = vpop.permute.xlu0 %3440
    %3442 = vset.pattern.permute.xlu0 0
    %3443 = vperm.xlu0 %3442, %v3170
    %v3444 = vpop.permute.xlu0 %3443
    %3445 = vset.pattern.permute.xlu0 0
    %3446 = vperm.xlu0 %3445, %v3171
    %v3447 = vpop.permute.xlu0 %3446
    %3448 = vset.pattern.permute.xlu0 0
    %3449 = vperm.xlu0 %3448, %v3172
    %v3450 = vpop.permute.xlu0 %3449
    %3451 = vset.pattern.permute.xlu0 0
    %3452 = vperm.xlu0 %3451, %v3173
    %v3453 = vpop.permute.xlu0 %3452
    %3454 = vset.pattern.permute.xlu0 0
    %3455 = vperm.xlu0 %3454, %v3174
    %v3456 = vpop.permute.xlu0 %3455
    %3457 = vset.pattern.permute.xlu0 0
    %3458 = vperm.xlu0 %3457, %v3175
    %v3459 = vpop.permute.xlu0 %3458
    %3460 = vset.pattern.permute.xlu0 0
    %3461 = vperm.xlu0 %3460, %v3176
    %v3462 = vpop.permute.xlu0 %3461
    %3463 = vset.pattern.permute.xlu0 0
    %3464 = vperm.xlu0 %3463, %v3177
    %v3465 = vpop.permute.xlu0 %3464
    %3466 = vset.pattern.permute.xlu0 0
    %3467 = vperm.xlu0 %3466, %v3178
    %v3468 = vpop.permute.xlu0 %3467
    %3469 = vset.pattern.permute.xlu0 0
    %3470 = vperm.xlu0 %3469, %v3179
    %v3471 = vpop.permute.xlu0 %3470
    %3472 = vset.pattern.permute.xlu0 0
    %3473 = vperm.xlu0 %3472, %v3180
    %v3474 = vpop.permute.xlu0 %3473
    %3475 = vset.pattern.permute.xlu0 0
    %3476 = vperm.xlu0 %3475, %v3181
    %v3477 = vpop.permute.xlu0 %3476
    %3478 = vset.pattern.permute.xlu0 0
    %3479 = vperm.xlu0 %3478, %v3182
    %v3480 = vpop.permute.xlu0 %3479
    %3481 = vset.pattern.permute.xlu0 0
    %3482 = vperm.xlu0 %3481, %v3183
    %v3483 = vpop.permute.xlu0 %3482
    %3484 = vset.pattern.permute.xlu0 0
    %3485 = vperm.xlu0 %3484, %v3184
    %v3486 = vpop.permute.xlu0 %3485
    %3487 = vset.pattern.permute.xlu0 0
    %3488 = vperm.xlu0 %3487, %v3185
    %v3489 = vpop.permute.xlu0 %3488
    %3490 = vset.pattern.permute.xlu0 0
    %3491 = vperm.xlu0 %3490, %v3186
    %v3492 = vpop.permute.xlu0 %3491
    %3493 = vset.pattern.permute.xlu0 0
    %3494 = vperm.xlu0 %3493, %v3187
    %v3495 = vpop.permute.xlu0 %3494
    %3496 = vset.pattern.permute.xlu0 0
    %3497 = vperm.xlu0 %3496, %v3188
    %v3498 = vpop.permute.xlu0 %3497
    %3499 = vset.pattern.permute.xlu0 0
    %3500 = vperm.xlu0 %3499, %v3189
    %v3501 = vpop.permute.xlu0 %3500
    %3502 = vset.pattern.permute.xlu0 0
    %3503 = vperm.xlu0 %3502, %v3190
    %v3504 = vpop.permute.xlu0 %3503
    %3505 = vset.pattern.permute.xlu0 0
    %3506 = vperm.xlu0 %3505, %v3191
    %v3507 = vpop.permute.xlu0 %3506
    %3508 = vset.pattern.permute.xlu0 0
    %3509 = vperm.xlu0 %3508, %v3192
    %v3510 = vpop.permute.xlu0 %3509
    %3511 = vset.pattern.permute.xlu0 0
    %3512 = vperm.xlu0 %3511, %v3193
    %v3513 = vpop.permute.xlu0 %3512
    %3514 = vset.pattern.permute.xlu0 0
    %3515 = vperm.xlu0 %3514, %v3194
    %v3516 = vpop.permute.xlu0 %3515
    %3517 = vset.pattern.permute.xlu0 0
    %3518 = vperm.xlu0 %3517, %v3195
    %v3519 = vpop.permute.xlu0 %3518
    %3520 = vset.pattern.permute.xlu0 0
    %3521 = vperm.xlu0 %3520, %v3196
    %v3522 = vpop.permute.xlu0 %3521
    %3523 = vset.pattern.permute.xlu0 0
    %3524 = vperm.xlu0 %3523, %v3197
    %v3525 = vpop.permute.xlu0 %3524
    %3526 = vset.pattern.permute.xlu0 0
    %3527 = vperm.xlu0 %3526, %v3198
    %v3528 = vpop.permute.xlu0 %3527
    %3529 = vset.pattern.permute.xlu0 0
    %3530 = vperm.xlu0 %3529, %v3199
    %v3531 = vpop.permute.xlu0 %3530
    %3532 = vset.pattern.permute.xlu0 0
    %3533 = vperm.xlu0 %3532, %v3200
    %v3534 = vpop.permute.xlu0 %3533
    %3535 = vset.pattern.permute.xlu0 0
    %3536 = vperm.xlu0 %3535, %v3201
    %v3537 = vpop.permute.xlu0 %3536
    %3538 = vset.pattern.permute.xlu0 0
    %3539 = vperm.xlu0 %3538, %v3202
    %v3540 = vpop.permute.xlu0 %3539
    %3541 = vset.pattern.permute.xlu0 0
    %3542 = vperm.xlu0 %3541, %v3203
    %v3543 = vpop.permute.xlu0 %3542
    %3544 = vset.pattern.permute.xlu0 0
    %3545 = vperm.xlu0 %3544, %v3204
    %v3546 = vpop.permute.xlu0 %3545
    %3547 = vset.pattern.permute.xlu0 0
    %3548 = vperm.xlu0 %3547, %v3205
    %v3549 = vpop.permute.xlu0 %3548
    %3550 = vset.pattern.permute.xlu0 0
    %3551 = vperm.xlu0 %3550, %v3206
    %v3552 = vpop.permute.xlu0 %3551
    %3553 = vset.pattern.permute.xlu0 0
    %3554 = vperm.xlu0 %3553, %v3207
    %v3555 = vpop.permute.xlu0 %3554
    %3556 = vset.pattern.permute.xlu0 0
    %3557 = vperm.xlu0 %3556, %v3208
    %v3558 = vpop.permute.xlu0 %3557
    %3559 = vset.pattern.permute.xlu0 0
    %3560 = vperm.xlu0 %3559, %v3209
    %v3561 = vpop.permute.xlu0 %3560
    %3562 = vset.pattern.permute.xlu0 0
    %3563 = vperm.xlu0 %3562, %v3210
    %v3564 = vpop.permute.xlu0 %3563
    %3565 = vset.pattern.permute.xlu0 0
    %3566 = vperm.xlu0 %3565, %v3211
    %v3567 = vpop.permute.xlu0 %3566
    %3568 = vset.pattern.permute.xlu0 0
    %3569 = vperm.xlu0 %3568, %v3212
    %v3570 = vpop.permute.xlu0 %3569
    %3571 = vset.pattern.permute.xlu0 0
    %3572 = vperm.xlu0 %3571, %v3213
    %v3573 = vpop.permute.xlu0 %3572
    %3574 = vset.pattern.permute.xlu0 0
    %3575 = vperm.xlu0 %3574, %v3214
    %v3576 = vpop.permute.xlu0 %3575
    %3577 = vset.pattern.permute.xlu0 0
    %3578 = vperm.xlu0 %3577, %v3215
    %v3579 = vpop.permute.xlu0 %3578
    %3580 = vset.pattern.permute.xlu0 0
    %3581 = vperm.xlu0 %3580, %v3216
    %v3582 = vpop.permute.xlu0 %3581
    %3583 = vset.pattern.permute.xlu0 0
    %3584 = vperm.xlu0 %3583, %v3217
    %v3585 = vpop.permute.xlu0 %3584
    %3586 = vset.pattern.permute.xlu0 0
    %3587 = vperm.xlu0 %3586, %v3218
    %v3588 = vpop.permute.xlu0 %3587
    %3589 = vset.pattern.permute.xlu0 0
    %3590 = vperm.xlu0 %3589, %v3219
    %v3591 = vpop.permute.xlu0 %3590
    %3592 = vset.pattern.permute.xlu0 0
    %3593 = vperm.xlu0 %3592, %v3220
    %v3594 = vpop.permute.xlu0 %3593
    %3595 = vset.pattern.permute.xlu0 0
    %3596 = vperm.xlu0 %3595, %v3221
    %v3597 = vpop.permute.xlu0 %3596
    %3598 = vset.pattern.permute.xlu0 0
    %3599 = vperm.xlu0 %3598, %v3222
    %v3600 = vpop.permute.xlu0 %3599
    %3601 = vset.pattern.permute.xlu0 0
    %3602 = vperm.xlu0 %3601, %v3223
    %v3603 = vpop.permute.xlu0 %3602
    %3604 = vset.pattern.permute.xlu0 0
    %3605 = vperm.xlu0 %3604, %v3224
    %v3606 = vpop.permute.xlu0 %3605
    %3607 = vset.pattern.permute.xlu0 0
    %3608 = vperm.xlu0 %3607, %v3225
    %v3609 = vpop.permute.xlu0 %3608
    %v3610 = vlaneseq
    %v3611 = vshrl.u32 %v3610, 7
    %v3612 = vsub.s32 %v59, %v3611
    %v3613 = vrot.slane %v3228, %v3612
    %v3614 = vadd.s32 %v59, 4294967288
    %v3615 = vlaneseq
    %v3616 = vshrl.u32 %v3615, 7
    %v3617 = vsub.s32 %v3614, %v3616
    %v3618 = vrot.slane %v3231, %v3617
    %vm3619 = vcmask 130112
    %v3620 = vsel %vm3619, %v3618, %v3613
    %v3621 = vadd.s32 %v59, 4294967280
    %v3622 = vlaneseq
    %v3623 = vshrl.u32 %v3622, 7
    %v3624 = vsub.s32 %v3621, %v3623
    %v3625 = vrot.slane %v3234, %v3624
    %vm3626 = vcmask 195712
    %v3627 = vsel %vm3626, %v3625, %v3620
    %v3628 = vadd.s32 %v59, 4294967272
    %v3629 = vlaneseq
    %v3630 = vshrl.u32 %v3629, 7
    %v3631 = vsub.s32 %v3628, %v3630
    %v3632 = vrot.slane %v3237, %v3631
    %vm3633 = vcmask 261312
    %v3634 = vsel %vm3633, %v3632, %v3627
    %v3635 = vadd.s32 %v59, 4294967264
    %v3636 = vlaneseq
    %v3637 = vshrl.u32 %v3636, 7
    %v3638 = vsub.s32 %v3635, %v3637
    %v3639 = vrot.slane %v3240, %v3638
    %vm3640 = vcmask 326912
    %v3641 = vsel %vm3640, %v3639, %v3634
    %v3642 = vadd.s32 %v59, 4294967256
    %v3643 = vlaneseq
    %v3644 = vshrl.u32 %v3643, 7
    %v3645 = vsub.s32 %v3642, %v3644
    %v3646 = vrot.slane %v3243, %v3645
    %vm3647 = vcmask 392512
    %v3648 = vsel %vm3647, %v3646, %v3641
    %v3649 = vadd.s32 %v59, 4294967248
    %v3650 = vlaneseq
    %v3651 = vshrl.u32 %v3650, 7
    %v3652 = vsub.s32 %v3649, %v3651
    %v3653 = vrot.slane %v3246, %v3652
    %vm3654 = vcmask 458112
    %v3655 = vsel %vm3654, %v3653, %v3648
    %v3656 = vadd.s32 %v59, 4294967240
    %v3657 = vlaneseq
    %v3658 = vshrl.u32 %v3657, 7
    %v3659 = vsub.s32 %v3656, %v3658
    %v3660 = vrot.slane %v3249, %v3659
    %vm3661 = vcmask 523712
    %v3662 = vsel %vm3661, %v3660, %v3655
    %v3663 = vadd.s32 %v59, 4294967232
    %v3664 = vlaneseq
    %v3665 = vshrl.u32 %v3664, 7
    %v3666 = vsub.s32 %v3663, %v3665
    %v3667 = vrot.slane %v3252, %v3666
    %vm3668 = vcmask 589312
    %v3669 = vsel %vm3668, %v3667, %v3662
    %v3670 = vadd.s32 %v59, 4294967224
    %v3671 = vlaneseq
    %v3672 = vshrl.u32 %v3671, 7
    %v3673 = vsub.s32 %v3670, %v3672
    %v3674 = vrot.slane %v3255, %v3673
    %vm3675 = vcmask 654912
    %v3676 = vsel %vm3675, %v3674, %v3669
    %v3677 = vadd.s32 %v59, 4294967216
    %v3678 = vlaneseq
    %v3679 = vshrl.u32 %v3678, 7
    %v3680 = vsub.s32 %v3677, %v3679
    %v3681 = vrot.slane %v3258, %v3680
    %vm3682 = vcmask 720512
    %v3683 = vsel %vm3682, %v3681, %v3676
    %v3684 = vadd.s32 %v59, 4294967208
    %v3685 = vlaneseq
    %v3686 = vshrl.u32 %v3685, 7
    %v3687 = vsub.s32 %v3684, %v3686
    %v3688 = vrot.slane %v3261, %v3687
    %vm3689 = vcmask 786112
    %v3690 = vsel %vm3689, %v3688, %v3683
    %v3691 = vadd.s32 %v59, 4294967200
    %v3692 = vlaneseq
    %v3693 = vshrl.u32 %v3692, 7
    %v3694 = vsub.s32 %v3691, %v3693
    %v3695 = vrot.slane %v3264, %v3694
    %vm3696 = vcmask 851712
    %v3697 = vsel %vm3696, %v3695, %v3690
    %v3698 = vadd.s32 %v59, 4294967192
    %v3699 = vlaneseq
    %v3700 = vshrl.u32 %v3699, 7
    %v3701 = vsub.s32 %v3698, %v3700
    %v3702 = vrot.slane %v3267, %v3701
    %vm3703 = vcmask 917312
    %v3704 = vsel %vm3703, %v3702, %v3697
    %v3705 = vadd.s32 %v59, 4294967184
    %v3706 = vlaneseq
    %v3707 = vshrl.u32 %v3706, 7
    %v3708 = vsub.s32 %v3705, %v3707
    %v3709 = vrot.slane %v3270, %v3708
    %vm3710 = vcmask 982912
    %v3711 = vsel %vm3710, %v3709, %v3704
    %v3712 = vadd.s32 %v59, 4294967176
    %v3713 = vlaneseq
    %v3714 = vshrl.u32 %v3713, 7
    %v3715 = vsub.s32 %v3712, %v3714
    %v3716 = vrot.slane %v3273, %v3715
    %vm3717 = vcmask 1048512
    %v3718 = vsel %vm3717, %v3716, %v3711
    %v3719 = vlaneseq
    %v3720 = vshrl.u32 %v3719, 7
    %v3721 = vsub.s32 %v59, %v3720
    %v3722 = vrot.slane %v3276, %v3721
    %v3723 = vlaneseq
    %v3724 = vshrl.u32 %v3723, 7
    %v3725 = vsub.s32 %v3614, %v3724
    %v3726 = vrot.slane %v3279, %v3725
    %v3727 = vsel %vm3619, %v3726, %v3722
    %v3728 = vlaneseq
    %v3729 = vshrl.u32 %v3728, 7
    %v3730 = vsub.s32 %v3621, %v3729
    %v3731 = vrot.slane %v3282, %v3730
    %v3732 = vsel %vm3626, %v3731, %v3727
    %v3733 = vlaneseq
    %v3734 = vshrl.u32 %v3733, 7
    %v3735 = vsub.s32 %v3628, %v3734
    %v3736 = vrot.slane %v3285, %v3735
    %v3737 = vsel %vm3633, %v3736, %v3732
    %v3738 = vlaneseq
    %v3739 = vshrl.u32 %v3738, 7
    %v3740 = vsub.s32 %v3635, %v3739
    %v3741 = vrot.slane %v3288, %v3740
    %v3742 = vsel %vm3640, %v3741, %v3737
    %v3743 = vlaneseq
    %v3744 = vshrl.u32 %v3743, 7
    %v3745 = vsub.s32 %v3642, %v3744
    %v3746 = vrot.slane %v3291, %v3745
    %v3747 = vsel %vm3647, %v3746, %v3742
    %v3748 = vlaneseq
    %v3749 = vshrl.u32 %v3748, 7
    %v3750 = vsub.s32 %v3649, %v3749
    %v3751 = vrot.slane %v3294, %v3750
    %v3752 = vsel %vm3654, %v3751, %v3747
    %v3753 = vlaneseq
    %v3754 = vshrl.u32 %v3753, 7
    %v3755 = vsub.s32 %v3656, %v3754
    %v3756 = vrot.slane %v3297, %v3755
    %v3757 = vsel %vm3661, %v3756, %v3752
    %v3758 = vlaneseq
    %v3759 = vshrl.u32 %v3758, 7
    %v3760 = vsub.s32 %v3663, %v3759
    %v3761 = vrot.slane %v3300, %v3760
    %v3762 = vsel %vm3668, %v3761, %v3757
    %v3763 = vlaneseq
    %v3764 = vshrl.u32 %v3763, 7
    %v3765 = vsub.s32 %v3670, %v3764
    %v3766 = vrot.slane %v3303, %v3765
    %v3767 = vsel %vm3675, %v3766, %v3762
    %v3768 = vlaneseq
    %v3769 = vshrl.u32 %v3768, 7
    %v3770 = vsub.s32 %v3677, %v3769
    %v3771 = vrot.slane %v3306, %v3770
    %v3772 = vsel %vm3682, %v3771, %v3767
    %v3773 = vlaneseq
    %v3774 = vshrl.u32 %v3773, 7
    %v3775 = vsub.s32 %v3684, %v3774
    %v3776 = vrot.slane %v3309, %v3775
    %v3777 = vsel %vm3689, %v3776, %v3772
    %v3778 = vlaneseq
    %v3779 = vshrl.u32 %v3778, 7
    %v3780 = vsub.s32 %v3691, %v3779
    %v3781 = vrot.slane %v3312, %v3780
    %v3782 = vsel %vm3696, %v3781, %v3777
    %v3783 = vlaneseq
    %v3784 = vshrl.u32 %v3783, 7
    %v3785 = vsub.s32 %v3698, %v3784
    %v3786 = vrot.slane %v3315, %v3785
    %v3787 = vsel %vm3703, %v3786, %v3782
    %v3788 = vlaneseq
    %v3789 = vshrl.u32 %v3788, 7
    %v3790 = vsub.s32 %v3705, %v3789
    %v3791 = vrot.slane %v3318, %v3790
    %v3792 = vsel %vm3710, %v3791, %v3787
    %v3793 = vlaneseq
    %v3794 = vshrl.u32 %v3793, 7
    %v3795 = vsub.s32 %v3712, %v3794
    %v3796 = vrot.slane %v3321, %v3795
    %v3797 = vsel %vm3717, %v3796, %v3792
    %v3798 = vlaneseq
    %v3799 = vshrl.u32 %v3798, 7
    %v3800 = vsub.s32 %v59, %v3799
    %v3801 = vrot.slane %v3324, %v3800
    %v3802 = vlaneseq
    %v3803 = vshrl.u32 %v3802, 7
    %v3804 = vsub.s32 %v3614, %v3803
    %v3805 = vrot.slane %v3327, %v3804
    %v3806 = vsel %vm3619, %v3805, %v3801
    %v3807 = vlaneseq
    %v3808 = vshrl.u32 %v3807, 7
    %v3809 = vsub.s32 %v3621, %v3808
    %v3810 = vrot.slane %v3330, %v3809
    %v3811 = vsel %vm3626, %v3810, %v3806
    %v3812 = vlaneseq
    %v3813 = vshrl.u32 %v3812, 7
    %v3814 = vsub.s32 %v3628, %v3813
    %v3815 = vrot.slane %v3333, %v3814
    %v3816 = vsel %vm3633, %v3815, %v3811
    %v3817 = vlaneseq
    %v3818 = vshrl.u32 %v3817, 7
    %v3819 = vsub.s32 %v3635, %v3818
    %v3820 = vrot.slane %v3336, %v3819
    %v3821 = vsel %vm3640, %v3820, %v3816
    %v3822 = vlaneseq
    %v3823 = vshrl.u32 %v3822, 7
    %v3824 = vsub.s32 %v3642, %v3823
    %v3825 = vrot.slane %v3339, %v3824
    %v3826 = vsel %vm3647, %v3825, %v3821
    %v3827 = vlaneseq
    %v3828 = vshrl.u32 %v3827, 7
    %v3829 = vsub.s32 %v3649, %v3828
    %v3830 = vrot.slane %v3342, %v3829
    %v3831 = vsel %vm3654, %v3830, %v3826
    %v3832 = vlaneseq
    %v3833 = vshrl.u32 %v3832, 7
    %v3834 = vsub.s32 %v3656, %v3833
    %v3835 = vrot.slane %v3345, %v3834
    %v3836 = vsel %vm3661, %v3835, %v3831
    %v3837 = vlaneseq
    %v3838 = vshrl.u32 %v3837, 7
    %v3839 = vsub.s32 %v3663, %v3838
    %v3840 = vrot.slane %v3348, %v3839
    %v3841 = vsel %vm3668, %v3840, %v3836
    %v3842 = vlaneseq
    %v3843 = vshrl.u32 %v3842, 7
    %v3844 = vsub.s32 %v3670, %v3843
    %v3845 = vrot.slane %v3351, %v3844
    %v3846 = vsel %vm3675, %v3845, %v3841
    %v3847 = vlaneseq
    %v3848 = vshrl.u32 %v3847, 7
    %v3849 = vsub.s32 %v3677, %v3848
    %v3850 = vrot.slane %v3354, %v3849
    %v3851 = vsel %vm3682, %v3850, %v3846
    %v3852 = vlaneseq
    %v3853 = vshrl.u32 %v3852, 7
    %v3854 = vsub.s32 %v3684, %v3853
    %v3855 = vrot.slane %v3357, %v3854
    %v3856 = vsel %vm3689, %v3855, %v3851
    %v3857 = vlaneseq
    %v3858 = vshrl.u32 %v3857, 7
    %v3859 = vsub.s32 %v3691, %v3858
    %v3860 = vrot.slane %v3360, %v3859
    %v3861 = vsel %vm3696, %v3860, %v3856
    %v3862 = vlaneseq
    %v3863 = vshrl.u32 %v3862, 7
    %v3864 = vsub.s32 %v3698, %v3863
    %v3865 = vrot.slane %v3363, %v3864
    %v3866 = vsel %vm3703, %v3865, %v3861
    %v3867 = vlaneseq
    %v3868 = vshrl.u32 %v3867, 7
    %v3869 = vsub.s32 %v3705, %v3868
    %v3870 = vrot.slane %v3366, %v3869
    %v3871 = vsel %vm3710, %v3870, %v3866
    %v3872 = vlaneseq
    %v3873 = vshrl.u32 %v3872, 7
    %v3874 = vsub.s32 %v3712, %v3873
    %v3875 = vrot.slane %v3369, %v3874
    %v3876 = vsel %vm3717, %v3875, %v3871
    %v3877 = vlaneseq
    %v3878 = vshrl.u32 %v3877, 7
    %v3879 = vsub.s32 %v59, %v3878
    %v3880 = vrot.slane %v3372, %v3879
    %v3881 = vlaneseq
    %v3882 = vshrl.u32 %v3881, 7
    %v3883 = vsub.s32 %v3614, %v3882
    %v3884 = vrot.slane %v3375, %v3883
    %v3885 = vsel %vm3619, %v3884, %v3880
    %v3886 = vlaneseq
    %v3887 = vshrl.u32 %v3886, 7
    %v3888 = vsub.s32 %v3621, %v3887
    %v3889 = vrot.slane %v3378, %v3888
    %v3890 = vsel %vm3626, %v3889, %v3885
    %v3891 = vlaneseq
    %v3892 = vshrl.u32 %v3891, 7
    %v3893 = vsub.s32 %v3628, %v3892
    %v3894 = vrot.slane %v3381, %v3893
    %v3895 = vsel %vm3633, %v3894, %v3890
    %v3896 = vlaneseq
    %v3897 = vshrl.u32 %v3896, 7
    %v3898 = vsub.s32 %v3635, %v3897
    %v3899 = vrot.slane %v3384, %v3898
    %v3900 = vsel %vm3640, %v3899, %v3895
    %v3901 = vlaneseq
    %v3902 = vshrl.u32 %v3901, 7
    %v3903 = vsub.s32 %v3642, %v3902
    %v3904 = vrot.slane %v3387, %v3903
    %v3905 = vsel %vm3647, %v3904, %v3900
    %v3906 = vlaneseq
    %v3907 = vshrl.u32 %v3906, 7
    %v3908 = vsub.s32 %v3649, %v3907
    %v3909 = vrot.slane %v3390, %v3908
    %v3910 = vsel %vm3654, %v3909, %v3905
    %v3911 = vlaneseq
    %v3912 = vshrl.u32 %v3911, 7
    %v3913 = vsub.s32 %v3656, %v3912
    %v3914 = vrot.slane %v3393, %v3913
    %v3915 = vsel %vm3661, %v3914, %v3910
    %v3916 = vlaneseq
    %v3917 = vshrl.u32 %v3916, 7
    %v3918 = vsub.s32 %v3663, %v3917
    %v3919 = vrot.slane %v3396, %v3918
    %v3920 = vsel %vm3668, %v3919, %v3915
    %v3921 = vlaneseq
    %v3922 = vshrl.u32 %v3921, 7
    %v3923 = vsub.s32 %v3670, %v3922
    %v3924 = vrot.slane %v3399, %v3923
    %v3925 = vsel %vm3675, %v3924, %v3920
    %v3926 = vlaneseq
    %v3927 = vshrl.u32 %v3926, 7
    %v3928 = vsub.s32 %v3677, %v3927
    %v3929 = vrot.slane %v3402, %v3928
    %v3930 = vsel %vm3682, %v3929, %v3925
    %v3931 = vlaneseq
    %v3932 = vshrl.u32 %v3931, 7
    %v3933 = vsub.s32 %v3684, %v3932
    %v3934 = vrot.slane %v3405, %v3933
    %v3935 = vsel %vm3689, %v3934, %v3930
    %v3936 = vlaneseq
    %v3937 = vshrl.u32 %v3936, 7
    %v3938 = vsub.s32 %v3691, %v3937
    %v3939 = vrot.slane %v3408, %v3938
    %v3940 = vsel %vm3696, %v3939, %v3935
    %v3941 = vlaneseq
    %v3942 = vshrl.u32 %v3941, 7
    %v3943 = vsub.s32 %v3698, %v3942
    %v3944 = vrot.slane %v3411, %v3943
    %v3945 = vsel %vm3703, %v3944, %v3940
    %v3946 = vlaneseq
    %v3947 = vshrl.u32 %v3946, 7
    %v3948 = vsub.s32 %v3705, %v3947
    %v3949 = vrot.slane %v3414, %v3948
    %v3950 = vsel %vm3710, %v3949, %v3945
    %v3951 = vlaneseq
    %v3952 = vshrl.u32 %v3951, 7
    %v3953 = vsub.s32 %v3712, %v3952
    %v3954 = vrot.slane %v3417, %v3953
    %v3955 = vsel %vm3717, %v3954, %v3950
    %v3956 = vlaneseq
    %v3957 = vshrl.u32 %v3956, 7
    %v3958 = vsub.s32 %v59, %v3957
    %v3959 = vrot.slane %v3420, %v3958
    %v3960 = vlaneseq
    %v3961 = vshrl.u32 %v3960, 7
    %v3962 = vsub.s32 %v3614, %v3961
    %v3963 = vrot.slane %v3423, %v3962
    %v3964 = vsel %vm3619, %v3963, %v3959
    %v3965 = vlaneseq
    %v3966 = vshrl.u32 %v3965, 7
    %v3967 = vsub.s32 %v3621, %v3966
    %v3968 = vrot.slane %v3426, %v3967
    %v3969 = vsel %vm3626, %v3968, %v3964
    %v3970 = vlaneseq
    %v3971 = vshrl.u32 %v3970, 7
    %v3972 = vsub.s32 %v3628, %v3971
    %v3973 = vrot.slane %v3429, %v3972
    %v3974 = vsel %vm3633, %v3973, %v3969
    %v3975 = vlaneseq
    %v3976 = vshrl.u32 %v3975, 7
    %v3977 = vsub.s32 %v3635, %v3976
    %v3978 = vrot.slane %v3432, %v3977
    %v3979 = vsel %vm3640, %v3978, %v3974
    %v3980 = vlaneseq
    %v3981 = vshrl.u32 %v3980, 7
    %v3982 = vsub.s32 %v3642, %v3981
    %v3983 = vrot.slane %v3435, %v3982
    %v3984 = vsel %vm3647, %v3983, %v3979
    %v3985 = vlaneseq
    %v3986 = vshrl.u32 %v3985, 7
    %v3987 = vsub.s32 %v3649, %v3986
    %v3988 = vrot.slane %v3438, %v3987
    %v3989 = vsel %vm3654, %v3988, %v3984
    %v3990 = vlaneseq
    %v3991 = vshrl.u32 %v3990, 7
    %v3992 = vsub.s32 %v3656, %v3991
    %v3993 = vrot.slane %v3441, %v3992
    %v3994 = vsel %vm3661, %v3993, %v3989
    %v3995 = vlaneseq
    %v3996 = vshrl.u32 %v3995, 7
    %v3997 = vsub.s32 %v3663, %v3996
    %v3998 = vrot.slane %v3444, %v3997
    %v3999 = vsel %vm3668, %v3998, %v3994
    %v4000 = vlaneseq
    %v4001 = vshrl.u32 %v4000, 7
    %v4002 = vsub.s32 %v3670, %v4001
    %v4003 = vrot.slane %v3447, %v4002
    %v4004 = vsel %vm3675, %v4003, %v3999
    %v4005 = vlaneseq
    %v4006 = vshrl.u32 %v4005, 7
    %v4007 = vsub.s32 %v3677, %v4006
    %v4008 = vrot.slane %v3450, %v4007
    %v4009 = vsel %vm3682, %v4008, %v4004
    %v4010 = vlaneseq
    %v4011 = vshrl.u32 %v4010, 7
    %v4012 = vsub.s32 %v3684, %v4011
    %v4013 = vrot.slane %v3453, %v4012
    %v4014 = vsel %vm3689, %v4013, %v4009
    %v4015 = vlaneseq
    %v4016 = vshrl.u32 %v4015, 7
    %v4017 = vsub.s32 %v3691, %v4016
    %v4018 = vrot.slane %v3456, %v4017
    %v4019 = vsel %vm3696, %v4018, %v4014
    %v4020 = vlaneseq
    %v4021 = vshrl.u32 %v4020, 7
    %v4022 = vsub.s32 %v3698, %v4021
    %v4023 = vrot.slane %v3459, %v4022
    %v4024 = vsel %vm3703, %v4023, %v4019
    %v4025 = vlaneseq
    %v4026 = vshrl.u32 %v4025, 7
    %v4027 = vsub.s32 %v3705, %v4026
    %v4028 = vrot.slane %v3462, %v4027
    %v4029 = vsel %vm3710, %v4028, %v4024
    %v4030 = vlaneseq
    %v4031 = vshrl.u32 %v4030, 7
    %v4032 = vsub.s32 %v3712, %v4031
    %v4033 = vrot.slane %v3465, %v4032
    %v4034 = vsel %vm3717, %v4033, %v4029
    %v4035 = vlaneseq
    %v4036 = vshrl.u32 %v4035, 7
    %v4037 = vsub.s32 %v59, %v4036
    %v4038 = vrot.slane %v3468, %v4037
    %v4039 = vlaneseq
    %v4040 = vshrl.u32 %v4039, 7
    %v4041 = vsub.s32 %v3614, %v4040
    %v4042 = vrot.slane %v3471, %v4041
    %v4043 = vsel %vm3619, %v4042, %v4038
    %v4044 = vlaneseq
    %v4045 = vshrl.u32 %v4044, 7
    %v4046 = vsub.s32 %v3621, %v4045
    %v4047 = vrot.slane %v3474, %v4046
    %v4048 = vsel %vm3626, %v4047, %v4043
    %v4049 = vlaneseq
    %v4050 = vshrl.u32 %v4049, 7
    %v4051 = vsub.s32 %v3628, %v4050
    %v4052 = vrot.slane %v3477, %v4051
    %v4053 = vsel %vm3633, %v4052, %v4048
    %v4054 = vlaneseq
    %v4055 = vshrl.u32 %v4054, 7
    %v4056 = vsub.s32 %v3635, %v4055
    %v4057 = vrot.slane %v3480, %v4056
    %v4058 = vsel %vm3640, %v4057, %v4053
    %v4059 = vlaneseq
    %v4060 = vshrl.u32 %v4059, 7
    %v4061 = vsub.s32 %v3642, %v4060
    %v4062 = vrot.slane %v3483, %v4061
    %v4063 = vsel %vm3647, %v4062, %v4058
    %v4064 = vlaneseq
    %v4065 = vshrl.u32 %v4064, 7
    %v4066 = vsub.s32 %v3649, %v4065
    %v4067 = vrot.slane %v3486, %v4066
    %v4068 = vsel %vm3654, %v4067, %v4063
    %v4069 = vlaneseq
    %v4070 = vshrl.u32 %v4069, 7
    %v4071 = vsub.s32 %v3656, %v4070
    %v4072 = vrot.slane %v3489, %v4071
    %v4073 = vsel %vm3661, %v4072, %v4068
    %v4074 = vlaneseq
    %v4075 = vshrl.u32 %v4074, 7
    %v4076 = vsub.s32 %v3663, %v4075
    %v4077 = vrot.slane %v3492, %v4076
    %v4078 = vsel %vm3668, %v4077, %v4073
    %v4079 = vlaneseq
    %v4080 = vshrl.u32 %v4079, 7
    %v4081 = vsub.s32 %v3670, %v4080
    %v4082 = vrot.slane %v3495, %v4081
    %v4083 = vsel %vm3675, %v4082, %v4078
    %v4084 = vlaneseq
    %v4085 = vshrl.u32 %v4084, 7
    %v4086 = vsub.s32 %v3677, %v4085
    %v4087 = vrot.slane %v3498, %v4086
    %v4088 = vsel %vm3682, %v4087, %v4083
    %v4089 = vlaneseq
    %v4090 = vshrl.u32 %v4089, 7
    %v4091 = vsub.s32 %v3684, %v4090
    %v4092 = vrot.slane %v3501, %v4091
    %v4093 = vsel %vm3689, %v4092, %v4088
    %v4094 = vlaneseq
    %v4095 = vshrl.u32 %v4094, 7
    %v4096 = vsub.s32 %v3691, %v4095
    %v4097 = vrot.slane %v3504, %v4096
    %v4098 = vsel %vm3696, %v4097, %v4093
    %v4099 = vlaneseq
    %v4100 = vshrl.u32 %v4099, 7
    %v4101 = vsub.s32 %v3698, %v4100
    %v4102 = vrot.slane %v3507, %v4101
    %v4103 = vsel %vm3703, %v4102, %v4098
    %v4104 = vlaneseq
    %v4105 = vshrl.u32 %v4104, 7
    %v4106 = vsub.s32 %v3705, %v4105
    %v4107 = vrot.slane %v3510, %v4106
    %v4108 = vsel %vm3710, %v4107, %v4103
    %v4109 = vlaneseq
    %v4110 = vshrl.u32 %v4109, 7
    %v4111 = vsub.s32 %v3712, %v4110
    %v4112 = vrot.slane %v3513, %v4111
    %v4113 = vsel %vm3717, %v4112, %v4108
    %v4114 = vlaneseq
    %v4115 = vshrl.u32 %v4114, 7
    %v4116 = vsub.s32 %v59, %v4115
    %v4117 = vrot.slane %v3516, %v4116
    %v4118 = vlaneseq
    %v4119 = vshrl.u32 %v4118, 7
    %v4120 = vsub.s32 %v3614, %v4119
    %v4121 = vrot.slane %v3519, %v4120
    %v4122 = vsel %vm3619, %v4121, %v4117
    %v4123 = vlaneseq
    %v4124 = vshrl.u32 %v4123, 7
    %v4125 = vsub.s32 %v3621, %v4124
    %v4126 = vrot.slane %v3522, %v4125
    %v4127 = vsel %vm3626, %v4126, %v4122
    %v4128 = vlaneseq
    %v4129 = vshrl.u32 %v4128, 7
    %v4130 = vsub.s32 %v3628, %v4129
    %v4131 = vrot.slane %v3525, %v4130
    %v4132 = vsel %vm3633, %v4131, %v4127
    %v4133 = vlaneseq
    %v4134 = vshrl.u32 %v4133, 7
    %v4135 = vsub.s32 %v3635, %v4134
    %v4136 = vrot.slane %v3528, %v4135
    %v4137 = vsel %vm3640, %v4136, %v4132
    %v4138 = vlaneseq
    %v4139 = vshrl.u32 %v4138, 7
    %v4140 = vsub.s32 %v3642, %v4139
    %v4141 = vrot.slane %v3531, %v4140
    %v4142 = vsel %vm3647, %v4141, %v4137
    %v4143 = vlaneseq
    %v4144 = vshrl.u32 %v4143, 7
    %v4145 = vsub.s32 %v3649, %v4144
    %v4146 = vrot.slane %v3534, %v4145
    %v4147 = vsel %vm3654, %v4146, %v4142
    %v4148 = vlaneseq
    %v4149 = vshrl.u32 %v4148, 7
    %v4150 = vsub.s32 %v3656, %v4149
    %v4151 = vrot.slane %v3537, %v4150
    %v4152 = vsel %vm3661, %v4151, %v4147
    %v4153 = vlaneseq
    %v4154 = vshrl.u32 %v4153, 7
    %v4155 = vsub.s32 %v3663, %v4154
    %v4156 = vrot.slane %v3540, %v4155
    %v4157 = vsel %vm3668, %v4156, %v4152
    %v4158 = vlaneseq
    %v4159 = vshrl.u32 %v4158, 7
    %v4160 = vsub.s32 %v3670, %v4159
    %v4161 = vrot.slane %v3543, %v4160
    %v4162 = vsel %vm3675, %v4161, %v4157
    %v4163 = vlaneseq
    %v4164 = vshrl.u32 %v4163, 7
    %v4165 = vsub.s32 %v3677, %v4164
    %v4166 = vrot.slane %v3546, %v4165
    %v4167 = vsel %vm3682, %v4166, %v4162
    %v4168 = vlaneseq
    %v4169 = vshrl.u32 %v4168, 7
    %v4170 = vsub.s32 %v3684, %v4169
    %v4171 = vrot.slane %v3549, %v4170
    %v4172 = vsel %vm3689, %v4171, %v4167
    %v4173 = vlaneseq
    %v4174 = vshrl.u32 %v4173, 7
    %v4175 = vsub.s32 %v3691, %v4174
    %v4176 = vrot.slane %v3552, %v4175
    %v4177 = vsel %vm3696, %v4176, %v4172
    %v4178 = vlaneseq
    %v4179 = vshrl.u32 %v4178, 7
    %v4180 = vsub.s32 %v3698, %v4179
    %v4181 = vrot.slane %v3555, %v4180
    %v4182 = vsel %vm3703, %v4181, %v4177
    %v4183 = vlaneseq
    %v4184 = vshrl.u32 %v4183, 7
    %v4185 = vsub.s32 %v3705, %v4184
    %v4186 = vrot.slane %v3558, %v4185
    %v4187 = vsel %vm3710, %v4186, %v4182
    %v4188 = vlaneseq
    %v4189 = vshrl.u32 %v4188, 7
    %v4190 = vsub.s32 %v3712, %v4189
    %v4191 = vrot.slane %v3561, %v4190
    %v4192 = vsel %vm3717, %v4191, %v4187
    %v4193 = vlaneseq
    %v4194 = vshrl.u32 %v4193, 7
    %v4195 = vsub.s32 %v59, %v4194
    %v4196 = vrot.slane %v3564, %v4195
    %v4197 = vlaneseq
    %v4198 = vshrl.u32 %v4197, 7
    %v4199 = vsub.s32 %v3614, %v4198
    %v4200 = vrot.slane %v3567, %v4199
    %v4201 = vsel %vm3619, %v4200, %v4196
    %v4202 = vlaneseq
    %v4203 = vshrl.u32 %v4202, 7
    %v4204 = vsub.s32 %v3621, %v4203
    %v4205 = vrot.slane %v3570, %v4204
    %v4206 = vsel %vm3626, %v4205, %v4201
    %v4207 = vlaneseq
    %v4208 = vshrl.u32 %v4207, 7
    %v4209 = vsub.s32 %v3628, %v4208
    %v4210 = vrot.slane %v3573, %v4209
    %v4211 = vsel %vm3633, %v4210, %v4206
    %v4212 = vlaneseq
    %v4213 = vshrl.u32 %v4212, 7
    %v4214 = vsub.s32 %v3635, %v4213
    %v4215 = vrot.slane %v3576, %v4214
    %v4216 = vsel %vm3640, %v4215, %v4211
    %v4217 = vlaneseq
    %v4218 = vshrl.u32 %v4217, 7
    %v4219 = vsub.s32 %v3642, %v4218
    %v4220 = vrot.slane %v3579, %v4219
    %v4221 = vsel %vm3647, %v4220, %v4216
    %v4222 = vlaneseq
    %v4223 = vshrl.u32 %v4222, 7
    %v4224 = vsub.s32 %v3649, %v4223
    %v4225 = vrot.slane %v3582, %v4224
    %v4226 = vsel %vm3654, %v4225, %v4221
    %v4227 = vlaneseq
    %v4228 = vshrl.u32 %v4227, 7
    %v4229 = vsub.s32 %v3656, %v4228
    %v4230 = vrot.slane %v3585, %v4229
    %v4231 = vsel %vm3661, %v4230, %v4226
    %v4232 = vlaneseq
    %v4233 = vshrl.u32 %v4232, 7
    %v4234 = vsub.s32 %v3663, %v4233
    %v4235 = vrot.slane %v3588, %v4234
    %v4236 = vsel %vm3668, %v4235, %v4231
    %v4237 = vlaneseq
    %v4238 = vshrl.u32 %v4237, 7
    %v4239 = vsub.s32 %v3670, %v4238
    %v4240 = vrot.slane %v3591, %v4239
    %v4241 = vsel %vm3675, %v4240, %v4236
    %v4242 = vlaneseq
    %v4243 = vshrl.u32 %v4242, 7
    %v4244 = vsub.s32 %v3677, %v4243
    %v4245 = vrot.slane %v3594, %v4244
    %v4246 = vsel %vm3682, %v4245, %v4241
    %v4247 = vlaneseq
    %v4248 = vshrl.u32 %v4247, 7
    %v4249 = vsub.s32 %v3684, %v4248
    %v4250 = vrot.slane %v3597, %v4249
    %v4251 = vsel %vm3689, %v4250, %v4246
    %v4252 = vlaneseq
    %v4253 = vshrl.u32 %v4252, 7
    %v4254 = vsub.s32 %v3691, %v4253
    %v4255 = vrot.slane %v3600, %v4254
    %v4256 = vsel %vm3696, %v4255, %v4251
    %v4257 = vlaneseq
    %v4258 = vshrl.u32 %v4257, 7
    %v4259 = vsub.s32 %v3698, %v4258
    %v4260 = vrot.slane %v3603, %v4259
    %v4261 = vsel %vm3703, %v4260, %v4256
    %v4262 = vlaneseq
    %v4263 = vshrl.u32 %v4262, 7
    %v4264 = vsub.s32 %v3705, %v4263
    %v4265 = vrot.slane %v3606, %v4264
    %v4266 = vsel %vm3710, %v4265, %v4261
    %v4267 = vlaneseq
    %v4268 = vshrl.u32 %v4267, 7
    %v4269 = vsub.s32 %v3712, %v4268
    %v4270 = vrot.slane %v3609, %v4269
    %v4271 = vsel %vm3717, %v4270, %v4266
    %vm4272 = vcmask 1041409
    %v4273 = vsel %vm4272, %v3797, %v3718
    %vm4274 = vcmask 1042434
    %v4275 = vsel %vm4274, %v3876, %v4273
    %vm4276 = vcmask 1043459
    %v4277 = vsel %vm4276, %v3955, %v4275
    %vm4278 = vcmask 1044484
    %v4279 = vsel %vm4278, %v4034, %v4277
    %vm4280 = vcmask 1045509
    %v4281 = vsel %vm4280, %v4113, %v4279
    %vm4282 = vcmask 1046534
    %v4283 = vsel %vm4282, %v4192, %v4281
    %vm4284 = vcmask 1047559
    %v4285 = vsel %vm4284, %v4271, %v4283
    %4286 = vst [vmem:[#allocation8] sm:$0xff] %v4285
    %4287 = vset.pattern.permute.xlu0 0
    %4288 = vperm.xlu0 %4287, %v2175
    %v4289 = vpop.permute.xlu0 %4288
    %4290 = vset.pattern.permute.xlu0 0
    %4291 = vperm.xlu0 %4290, %v2176
    %v4292 = vpop.permute.xlu0 %4291
    %4293 = vset.pattern.permute.xlu0 0
    %4294 = vperm.xlu0 %4293, %v2177
    %v4295 = vpop.permute.xlu0 %4294
    %4296 = vset.pattern.permute.xlu0 0
    %4297 = vperm.xlu0 %4296, %v2178
    %v4298 = vpop.permute.xlu0 %4297
    %4299 = vset.pattern.permute.xlu0 0
    %4300 = vperm.xlu0 %4299, %v2179
    %v4301 = vpop.permute.xlu0 %4300
    %4302 = vset.pattern.permute.xlu0 0
    %4303 = vperm.xlu0 %4302, %v2180
    %v4304 = vpop.permute.xlu0 %4303
    %4305 = vset.pattern.permute.xlu0 0
    %4306 = vperm.xlu0 %4305, %v2181
    %v4307 = vpop.permute.xlu0 %4306
    %4308 = vset.pattern.permute.xlu0 0
    %4309 = vperm.xlu0 %4308, %v2182
    %v4310 = vpop.permute.xlu0 %4309
    %4311 = vset.pattern.permute.xlu0 0
    %4312 = vperm.xlu0 %4311, %v2183
    %v4313 = vpop.permute.xlu0 %4312
    %4314 = vset.pattern.permute.xlu0 0
    %4315 = vperm.xlu0 %4314, %v2184
    %v4316 = vpop.permute.xlu0 %4315
    %4317 = vset.pattern.permute.xlu0 0
    %4318 = vperm.xlu0 %4317, %v2185
    %v4319 = vpop.permute.xlu0 %4318
    %4320 = vset.pattern.permute.xlu0 0
    %4321 = vperm.xlu0 %4320, %v2186
    %v4322 = vpop.permute.xlu0 %4321
    %4323 = vset.pattern.permute.xlu0 0
    %4324 = vperm.xlu0 %4323, %v2187
    %v4325 = vpop.permute.xlu0 %4324
    %4326 = vset.pattern.permute.xlu0 0
    %4327 = vperm.xlu0 %4326, %v2188
    %v4328 = vpop.permute.xlu0 %4327
    %4329 = vset.pattern.permute.xlu0 0
    %4330 = vperm.xlu0 %4329, %v2189
    %v4331 = vpop.permute.xlu0 %4330
    %4332 = vset.pattern.permute.xlu0 0
    %4333 = vperm.xlu0 %4332, %v2190
    %v4334 = vpop.permute.xlu0 %4333
    %4335 = vset.pattern.permute.xlu0 0
    %4336 = vperm.xlu0 %4335, %v2191
    %v4337 = vpop.permute.xlu0 %4336
    %4338 = vset.pattern.permute.xlu0 0
    %4339 = vperm.xlu0 %4338, %v2192
    %v4340 = vpop.permute.xlu0 %4339
    %4341 = vset.pattern.permute.xlu0 0
    %4342 = vperm.xlu0 %4341, %v2193
    %v4343 = vpop.permute.xlu0 %4342
    %4344 = vset.pattern.permute.xlu0 0
    %4345 = vperm.xlu0 %4344, %v2194
    %v4346 = vpop.permute.xlu0 %4345
    %4347 = vset.pattern.permute.xlu0 0
    %4348 = vperm.xlu0 %4347, %v2195
    %v4349 = vpop.permute.xlu0 %4348
    %4350 = vset.pattern.permute.xlu0 0
    %4351 = vperm.xlu0 %4350, %v2196
    %v4352 = vpop.permute.xlu0 %4351
    %4353 = vset.pattern.permute.xlu0 0
    %4354 = vperm.xlu0 %4353, %v2197
    %v4355 = vpop.permute.xlu0 %4354
    %4356 = vset.pattern.permute.xlu0 0
    %4357 = vperm.xlu0 %4356, %v2198
    %v4358 = vpop.permute.xlu0 %4357
    %4359 = vset.pattern.permute.xlu0 0
    %4360 = vperm.xlu0 %4359, %v2199
    %v4361 = vpop.permute.xlu0 %4360
    %4362 = vset.pattern.permute.xlu0 0
    %4363 = vperm.xlu0 %4362, %v2200
    %v4364 = vpop.permute.xlu0 %4363
    %4365 = vset.pattern.permute.xlu0 0
    %4366 = vperm.xlu0 %4365, %v2201
    %v4367 = vpop.permute.xlu0 %4366
    %4368 = vset.pattern.permute.xlu0 0
    %4369 = vperm.xlu0 %4368, %v2202
    %v4370 = vpop.permute.xlu0 %4369
    %4371 = vset.pattern.permute.xlu0 0
    %4372 = vperm.xlu0 %4371, %v2203
    %v4373 = vpop.permute.xlu0 %4372
    %4374 = vset.pattern.permute.xlu0 0
    %4375 = vperm.xlu0 %4374, %v2204
    %v4376 = vpop.permute.xlu0 %4375
    %4377 = vset.pattern.permute.xlu0 0
    %4378 = vperm.xlu0 %4377, %v2205
    %v4379 = vpop.permute.xlu0 %4378
    %4380 = vset.pattern.permute.xlu0 0
    %4381 = vperm.xlu0 %4380, %v2206
    %v4382 = vpop.permute.xlu0 %4381
    %4383 = vset.pattern.permute.xlu0 0
    %4384 = vperm.xlu0 %4383, %v2207
    %v4385 = vpop.permute.xlu0 %4384
    %4386 = vset.pattern.permute.xlu0 0
    %4387 = vperm.xlu0 %4386, %v2208
    %v4388 = vpop.permute.xlu0 %4387
    %4389 = vset.pattern.permute.xlu0 0
    %4390 = vperm.xlu0 %4389, %v2209
    %v4391 = vpop.permute.xlu0 %4390
    %4392 = vset.pattern.permute.xlu0 0
    %4393 = vperm.xlu0 %4392, %v2210
    %v4394 = vpop.permute.xlu0 %4393
    %4395 = vset.pattern.permute.xlu0 0
    %4396 = vperm.xlu0 %4395, %v2211
    %v4397 = vpop.permute.xlu0 %4396
    %4398 = vset.pattern.permute.xlu0 0
    %4399 = vperm.xlu0 %4398, %v2212
    %v4400 = vpop.permute.xlu0 %4399
    %4401 = vset.pattern.permute.xlu0 0
    %4402 = vperm.xlu0 %4401, %v2213
    %v4403 = vpop.permute.xlu0 %4402
    %4404 = vset.pattern.permute.xlu0 0
    %4405 = vperm.xlu0 %4404, %v2214
    %v4406 = vpop.permute.xlu0 %4405
    %4407 = vset.pattern.permute.xlu0 0
    %4408 = vperm.xlu0 %4407, %v2215
    %v4409 = vpop.permute.xlu0 %4408
    %4410 = vset.pattern.permute.xlu0 0
    %4411 = vperm.xlu0 %4410, %v2216
    %v4412 = vpop.permute.xlu0 %4411
    %4413 = vset.pattern.permute.xlu0 0
    %4414 = vperm.xlu0 %4413, %v2217
    %v4415 = vpop.permute.xlu0 %4414
    %4416 = vset.pattern.permute.xlu0 0
    %4417 = vperm.xlu0 %4416, %v2218
    %v4418 = vpop.permute.xlu0 %4417
    %4419 = vset.pattern.permute.xlu0 0
    %4420 = vperm.xlu0 %4419, %v2219
    %v4421 = vpop.permute.xlu0 %4420
    %4422 = vset.pattern.permute.xlu0 0
    %4423 = vperm.xlu0 %4422, %v2220
    %v4424 = vpop.permute.xlu0 %4423
    %4425 = vset.pattern.permute.xlu0 0
    %4426 = vperm.xlu0 %4425, %v2221
    %v4427 = vpop.permute.xlu0 %4426
    %4428 = vset.pattern.permute.xlu0 0
    %4429 = vperm.xlu0 %4428, %v2222
    %v4430 = vpop.permute.xlu0 %4429
    %4431 = vset.pattern.permute.xlu0 0
    %4432 = vperm.xlu0 %4431, %v2223
    %v4433 = vpop.permute.xlu0 %4432
    %4434 = vset.pattern.permute.xlu0 0
    %4435 = vperm.xlu0 %4434, %v2224
    %v4436 = vpop.permute.xlu0 %4435
    %4437 = vset.pattern.permute.xlu0 0
    %4438 = vperm.xlu0 %4437, %v2225
    %v4439 = vpop.permute.xlu0 %4438
    %4440 = vset.pattern.permute.xlu0 0
    %4441 = vperm.xlu0 %4440, %v2226
    %v4442 = vpop.permute.xlu0 %4441
    %4443 = vset.pattern.permute.xlu0 0
    %4444 = vperm.xlu0 %4443, %v2227
    %v4445 = vpop.permute.xlu0 %4444
    %4446 = vset.pattern.permute.xlu0 0
    %4447 = vperm.xlu0 %4446, %v2228
    %v4448 = vpop.permute.xlu0 %4447
    %4449 = vset.pattern.permute.xlu0 0
    %4450 = vperm.xlu0 %4449, %v2229
    %v4451 = vpop.permute.xlu0 %4450
    %4452 = vset.pattern.permute.xlu0 0
    %4453 = vperm.xlu0 %4452, %v2230
    %v4454 = vpop.permute.xlu0 %4453
    %4455 = vset.pattern.permute.xlu0 0
    %4456 = vperm.xlu0 %4455, %v2231
    %v4457 = vpop.permute.xlu0 %4456
    %4458 = vset.pattern.permute.xlu0 0
    %4459 = vperm.xlu0 %4458, %v2232
    %v4460 = vpop.permute.xlu0 %4459
    %4461 = vset.pattern.permute.xlu0 0
    %4462 = vperm.xlu0 %4461, %v2233
    %v4463 = vpop.permute.xlu0 %4462
    %4464 = vset.pattern.permute.xlu0 0
    %4465 = vperm.xlu0 %4464, %v2234
    %v4466 = vpop.permute.xlu0 %4465
    %4467 = vset.pattern.permute.xlu0 0
    %4468 = vperm.xlu0 %4467, %v2235
    %v4469 = vpop.permute.xlu0 %4468
    %4470 = vset.pattern.permute.xlu0 0
    %4471 = vperm.xlu0 %4470, %v2236
    %v4472 = vpop.permute.xlu0 %4471
    %4473 = vset.pattern.permute.xlu0 0
    %4474 = vperm.xlu0 %4473, %v2237
    %v4475 = vpop.permute.xlu0 %4474
    %4476 = vset.pattern.permute.xlu0 0
    %4477 = vperm.xlu0 %4476, %v2238
    %v4478 = vpop.permute.xlu0 %4477
    %4479 = vset.pattern.permute.xlu0 0
    %4480 = vperm.xlu0 %4479, %v2239
    %v4481 = vpop.permute.xlu0 %4480
    %4482 = vset.pattern.permute.xlu0 0
    %4483 = vperm.xlu0 %4482, %v2240
    %v4484 = vpop.permute.xlu0 %4483
    %4485 = vset.pattern.permute.xlu0 0
    %4486 = vperm.xlu0 %4485, %v2241
    %v4487 = vpop.permute.xlu0 %4486
    %4488 = vset.pattern.permute.xlu0 0
    %4489 = vperm.xlu0 %4488, %v2242
    %v4490 = vpop.permute.xlu0 %4489
    %4491 = vset.pattern.permute.xlu0 0
    %4492 = vperm.xlu0 %4491, %v2243
    %v4493 = vpop.permute.xlu0 %4492
    %4494 = vset.pattern.permute.xlu0 0
    %4495 = vperm.xlu0 %4494, %v2244
    %v4496 = vpop.permute.xlu0 %4495
    %4497 = vset.pattern.permute.xlu0 0
    %4498 = vperm.xlu0 %4497, %v2245
    %v4499 = vpop.permute.xlu0 %4498
    %4500 = vset.pattern.permute.xlu0 0
    %4501 = vperm.xlu0 %4500, %v2246
    %v4502 = vpop.permute.xlu0 %4501
    %4503 = vset.pattern.permute.xlu0 0
    %4504 = vperm.xlu0 %4503, %v2247
    %v4505 = vpop.permute.xlu0 %4504
    %4506 = vset.pattern.permute.xlu0 0
    %4507 = vperm.xlu0 %4506, %v2248
    %v4508 = vpop.permute.xlu0 %4507
    %4509 = vset.pattern.permute.xlu0 0
    %4510 = vperm.xlu0 %4509, %v2249
    %v4511 = vpop.permute.xlu0 %4510
    %4512 = vset.pattern.permute.xlu0 0
    %4513 = vperm.xlu0 %4512, %v2250
    %v4514 = vpop.permute.xlu0 %4513
    %4515 = vset.pattern.permute.xlu0 0
    %4516 = vperm.xlu0 %4515, %v2251
    %v4517 = vpop.permute.xlu0 %4516
    %4518 = vset.pattern.permute.xlu0 0
    %4519 = vperm.xlu0 %4518, %v2252
    %v4520 = vpop.permute.xlu0 %4519
    %4521 = vset.pattern.permute.xlu0 0
    %4522 = vperm.xlu0 %4521, %v2253
    %v4523 = vpop.permute.xlu0 %4522
    %4524 = vset.pattern.permute.xlu0 0
    %4525 = vperm.xlu0 %4524, %v2254
    %v4526 = vpop.permute.xlu0 %4525
    %4527 = vset.pattern.permute.xlu0 0
    %4528 = vperm.xlu0 %4527, %v2255
    %v4529 = vpop.permute.xlu0 %4528
    %4530 = vset.pattern.permute.xlu0 0
    %4531 = vperm.xlu0 %4530, %v2256
    %v4532 = vpop.permute.xlu0 %4531
    %4533 = vset.pattern.permute.xlu0 0
    %4534 = vperm.xlu0 %4533, %v2257
    %v4535 = vpop.permute.xlu0 %4534
    %4536 = vset.pattern.permute.xlu0 0
    %4537 = vperm.xlu0 %4536, %v2258
    %v4538 = vpop.permute.xlu0 %4537
    %4539 = vset.pattern.permute.xlu0 0
    %4540 = vperm.xlu0 %4539, %v2259
    %v4541 = vpop.permute.xlu0 %4540
    %4542 = vset.pattern.permute.xlu0 0
    %4543 = vperm.xlu0 %4542, %v2260
    %v4544 = vpop.permute.xlu0 %4543
    %4545 = vset.pattern.permute.xlu0 0
    %4546 = vperm.xlu0 %4545, %v2261
    %v4547 = vpop.permute.xlu0 %4546
    %4548 = vset.pattern.permute.xlu0 0
    %4549 = vperm.xlu0 %4548, %v2262
    %v4550 = vpop.permute.xlu0 %4549
    %4551 = vset.pattern.permute.xlu0 0
    %4552 = vperm.xlu0 %4551, %v2263
    %v4553 = vpop.permute.xlu0 %4552
    %4554 = vset.pattern.permute.xlu0 0
    %4555 = vperm.xlu0 %4554, %v2264
    %v4556 = vpop.permute.xlu0 %4555
    %4557 = vset.pattern.permute.xlu0 0
    %4558 = vperm.xlu0 %4557, %v2265
    %v4559 = vpop.permute.xlu0 %4558
    %4560 = vset.pattern.permute.xlu0 0
    %4561 = vperm.xlu0 %4560, %v2266
    %v4562 = vpop.permute.xlu0 %4561
    %4563 = vset.pattern.permute.xlu0 0
    %4564 = vperm.xlu0 %4563, %v2267
    %v4565 = vpop.permute.xlu0 %4564
    %4566 = vset.pattern.permute.xlu0 0
    %4567 = vperm.xlu0 %4566, %v2268
    %v4568 = vpop.permute.xlu0 %4567
    %4569 = vset.pattern.permute.xlu0 0
    %4570 = vperm.xlu0 %4569, %v2269
    %v4571 = vpop.permute.xlu0 %4570
    %4572 = vset.pattern.permute.xlu0 0
    %4573 = vperm.xlu0 %4572, %v2270
    %v4574 = vpop.permute.xlu0 %4573
    %4575 = vset.pattern.permute.xlu0 0
    %4576 = vperm.xlu0 %4575, %v2271
    %v4577 = vpop.permute.xlu0 %4576
    %4578 = vset.pattern.permute.xlu0 0
    %4579 = vperm.xlu0 %4578, %v2272
    %v4580 = vpop.permute.xlu0 %4579
    %4581 = vset.pattern.permute.xlu0 0
    %4582 = vperm.xlu0 %4581, %v2273
    %v4583 = vpop.permute.xlu0 %4582
    %4584 = vset.pattern.permute.xlu0 0
    %4585 = vperm.xlu0 %4584, %v2274
    %v4586 = vpop.permute.xlu0 %4585
    %4587 = vset.pattern.permute.xlu0 0
    %4588 = vperm.xlu0 %4587, %v2275
    %v4589 = vpop.permute.xlu0 %4588
    %4590 = vset.pattern.permute.xlu0 0
    %4591 = vperm.xlu0 %4590, %v2276
    %v4592 = vpop.permute.xlu0 %4591
    %4593 = vset.pattern.permute.xlu0 0
    %4594 = vperm.xlu0 %4593, %v2277
    %v4595 = vpop.permute.xlu0 %4594
    %4596 = vset.pattern.permute.xlu0 0
    %4597 = vperm.xlu0 %4596, %v2278
    %v4598 = vpop.permute.xlu0 %4597
    %4599 = vset.pattern.permute.xlu0 0
    %4600 = vperm.xlu0 %4599, %v2279
    %v4601 = vpop.permute.xlu0 %4600
    %4602 = vset.pattern.permute.xlu0 0
    %4603 = vperm.xlu0 %4602, %v2280
    %v4604 = vpop.permute.xlu0 %4603
    %4605 = vset.pattern.permute.xlu0 0
    %4606 = vperm.xlu0 %4605, %v2281
    %v4607 = vpop.permute.xlu0 %4606
    %4608 = vset.pattern.permute.xlu0 0
    %4609 = vperm.xlu0 %4608, %v2282
    %v4610 = vpop.permute.xlu0 %4609
    %4611 = vset.pattern.permute.xlu0 0
    %4612 = vperm.xlu0 %4611, %v2283
    %v4613 = vpop.permute.xlu0 %4612
    %4614 = vset.pattern.permute.xlu0 0
    %4615 = vperm.xlu0 %4614, %v2284
    %v4616 = vpop.permute.xlu0 %4615
    %4617 = vset.pattern.permute.xlu0 0
    %4618 = vperm.xlu0 %4617, %v2285
    %v4619 = vpop.permute.xlu0 %4618
    %4620 = vset.pattern.permute.xlu0 0
    %4621 = vperm.xlu0 %4620, %v2286
    %v4622 = vpop.permute.xlu0 %4621
    %4623 = vset.pattern.permute.xlu0 0
    %4624 = vperm.xlu0 %4623, %v2287
    %v4625 = vpop.permute.xlu0 %4624
    %4626 = vset.pattern.permute.xlu0 0
    %4627 = vperm.xlu0 %4626, %v2288
    %v4628 = vpop.permute.xlu0 %4627
    %4629 = vset.pattern.permute.xlu0 0
    %4630 = vperm.xlu0 %4629, %v2289
    %v4631 = vpop.permute.xlu0 %4630
    %4632 = vset.pattern.permute.xlu0 0
    %4633 = vperm.xlu0 %4632, %v2290
    %v4634 = vpop.permute.xlu0 %4633
    %4635 = vset.pattern.permute.xlu0 0
    %4636 = vperm.xlu0 %4635, %v2291
    %v4637 = vpop.permute.xlu0 %4636
    %4638 = vset.pattern.permute.xlu0 0
    %4639 = vperm.xlu0 %4638, %v2292
    %v4640 = vpop.permute.xlu0 %4639
    %4641 = vset.pattern.permute.xlu0 0
    %4642 = vperm.xlu0 %4641, %v2293
    %v4643 = vpop.permute.xlu0 %4642
    %4644 = vset.pattern.permute.xlu0 0
    %4645 = vperm.xlu0 %4644, %v2294
    %v4646 = vpop.permute.xlu0 %4645
    %4647 = vset.pattern.permute.xlu0 0
    %4648 = vperm.xlu0 %4647, %v2295
    %v4649 = vpop.permute.xlu0 %4648
    %4650 = vset.pattern.permute.xlu0 0
    %4651 = vperm.xlu0 %4650, %v2296
    %v4652 = vpop.permute.xlu0 %4651
    %4653 = vset.pattern.permute.xlu0 0
    %4654 = vperm.xlu0 %4653, %v2297
    %v4655 = vpop.permute.xlu0 %4654
    %4656 = vset.pattern.permute.xlu0 0
    %4657 = vperm.xlu0 %4656, %v2298
    %v4658 = vpop.permute.xlu0 %4657
    %4659 = vset.pattern.permute.xlu0 0
    %4660 = vperm.xlu0 %4659, %v2299
    %v4661 = vpop.permute.xlu0 %4660
    %4662 = vset.pattern.permute.xlu0 0
    %4663 = vperm.xlu0 %4662, %v2300
    %v4664 = vpop.permute.xlu0 %4663
    %4665 = vset.pattern.permute.xlu0 0
    %4666 = vperm.xlu0 %4665, %v2301
    %v4667 = vpop.permute.xlu0 %4666
    %4668 = vset.pattern.permute.xlu0 0
    %4669 = vperm.xlu0 %4668, %v2302
    %v4670 = vpop.permute.xlu0 %4669
    %v4671 = vlaneseq
    %v4672 = vshrl.u32 %v4671, 7
    %v4673 = vsub.s32 %v59, %v4672
    %v4674 = vrot.slane %v4289, %v4673
    %v4675 = vlaneseq
    %v4676 = vshrl.u32 %v4675, 7
    %v4677 = vsub.s32 %v3614, %v4676
    %v4678 = vrot.slane %v4292, %v4677
    %v4679 = vsel %vm3619, %v4678, %v4674
    %v4680 = vlaneseq
    %v4681 = vshrl.u32 %v4680, 7
    %v4682 = vsub.s32 %v3621, %v4681
    %v4683 = vrot.slane %v4295, %v4682
    %v4684 = vsel %vm3626, %v4683, %v4679
    %v4685 = vlaneseq
    %v4686 = vshrl.u32 %v4685, 7
    %v4687 = vsub.s32 %v3628, %v4686
    %v4688 = vrot.slane %v4298, %v4687
    %v4689 = vsel %vm3633, %v4688, %v4684
    %v4690 = vlaneseq
    %v4691 = vshrl.u32 %v4690, 7
    %v4692 = vsub.s32 %v3635, %v4691
    %v4693 = vrot.slane %v4301, %v4692
    %v4694 = vsel %vm3640, %v4693, %v4689
    %v4695 = vlaneseq
    %v4696 = vshrl.u32 %v4695, 7
    %v4697 = vsub.s32 %v3642, %v4696
    %v4698 = vrot.slane %v4304, %v4697
    %v4699 = vsel %vm3647, %v4698, %v4694
    %v4700 = vlaneseq
    %v4701 = vshrl.u32 %v4700, 7
    %v4702 = vsub.s32 %v3649, %v4701
    %v4703 = vrot.slane %v4307, %v4702
    %v4704 = vsel %vm3654, %v4703, %v4699
    %v4705 = vlaneseq
    %v4706 = vshrl.u32 %v4705, 7
    %v4707 = vsub.s32 %v3656, %v4706
    %v4708 = vrot.slane %v4310, %v4707
    %v4709 = vsel %vm3661, %v4708, %v4704
    %v4710 = vlaneseq
    %v4711 = vshrl.u32 %v4710, 7
    %v4712 = vsub.s32 %v3663, %v4711
    %v4713 = vrot.slane %v4313, %v4712
    %v4714 = vsel %vm3668, %v4713, %v4709
    %v4715 = vlaneseq
    %v4716 = vshrl.u32 %v4715, 7
    %v4717 = vsub.s32 %v3670, %v4716
    %v4718 = vrot.slane %v4316, %v4717
    %v4719 = vsel %vm3675, %v4718, %v4714
    %v4720 = vlaneseq
    %v4721 = vshrl.u32 %v4720, 7
    %v4722 = vsub.s32 %v3677, %v4721
    %v4723 = vrot.slane %v4319, %v4722
    %v4724 = vsel %vm3682, %v4723, %v4719
    %v4725 = vlaneseq
    %v4726 = vshrl.u32 %v4725, 7
    %v4727 = vsub.s32 %v3684, %v4726
    %v4728 = vrot.slane %v4322, %v4727
    %v4729 = vsel %vm3689, %v4728, %v4724
    %v4730 = vlaneseq
    %v4731 = vshrl.u32 %v4730, 7
    %v4732 = vsub.s32 %v3691, %v4731
    %v4733 = vrot.slane %v4325, %v4732
    %v4734 = vsel %vm3696, %v4733, %v4729
    %v4735 = vlaneseq
    %v4736 = vshrl.u32 %v4735, 7
    %v4737 = vsub.s32 %v3698, %v4736
    %v4738 = vrot.slane %v4328, %v4737
    %v4739 = vsel %vm3703, %v4738, %v4734
    %v4740 = vlaneseq
    %v4741 = vshrl.u32 %v4740, 7
    %v4742 = vsub.s32 %v3705, %v4741
    %v4743 = vrot.slane %v4331, %v4742
    %v4744 = vsel %vm3710, %v4743, %v4739
    %v4745 = vlaneseq
    %v4746 = vshrl.u32 %v4745, 7
    %v4747 = vsub.s32 %v3712, %v4746
    %v4748 = vrot.slane %v4334, %v4747
    %v4749 = vsel %vm3717, %v4748, %v4744
    %v4750 = vlaneseq
    %v4751 = vshrl.u32 %v4750, 7
    %v4752 = vsub.s32 %v59, %v4751
    %v4753 = vrot.slane %v4337, %v4752
    %v4754 = vlaneseq
    %v4755 = vshrl.u32 %v4754, 7
    %v4756 = vsub.s32 %v3614, %v4755
    %v4757 = vrot.slane %v4340, %v4756
    %v4758 = vsel %vm3619, %v4757, %v4753
    %v4759 = vlaneseq
    %v4760 = vshrl.u32 %v4759, 7
    %v4761 = vsub.s32 %v3621, %v4760
    %v4762 = vrot.slane %v4343, %v4761
    %v4763 = vsel %vm3626, %v4762, %v4758
    %v4764 = vlaneseq
    %v4765 = vshrl.u32 %v4764, 7
    %v4766 = vsub.s32 %v3628, %v4765
    %v4767 = vrot.slane %v4346, %v4766
    %v4768 = vsel %vm3633, %v4767, %v4763
    %v4769 = vlaneseq
    %v4770 = vshrl.u32 %v4769, 7
    %v4771 = vsub.s32 %v3635, %v4770
    %v4772 = vrot.slane %v4349, %v4771
    %v4773 = vsel %vm3640, %v4772, %v4768
    %v4774 = vlaneseq
    %v4775 = vshrl.u32 %v4774, 7
    %v4776 = vsub.s32 %v3642, %v4775
    %v4777 = vrot.slane %v4352, %v4776
    %v4778 = vsel %vm3647, %v4777, %v4773
    %v4779 = vlaneseq
    %v4780 = vshrl.u32 %v4779, 7
    %v4781 = vsub.s32 %v3649, %v4780
    %v4782 = vrot.slane %v4355, %v4781
    %v4783 = vsel %vm3654, %v4782, %v4778
    %v4784 = vlaneseq
    %v4785 = vshrl.u32 %v4784, 7
    %v4786 = vsub.s32 %v3656, %v4785
    %v4787 = vrot.slane %v4358, %v4786
    %v4788 = vsel %vm3661, %v4787, %v4783
    %v4789 = vlaneseq
    %v4790 = vshrl.u32 %v4789, 7
    %v4791 = vsub.s32 %v3663, %v4790
    %v4792 = vrot.slane %v4361, %v4791
    %v4793 = vsel %vm3668, %v4792, %v4788
    %v4794 = vlaneseq
    %v4795 = vshrl.u32 %v4794, 7
    %v4796 = vsub.s32 %v3670, %v4795
    %v4797 = vrot.slane %v4364, %v4796
    %v4798 = vsel %vm3675, %v4797, %v4793
    %v4799 = vlaneseq
    %v4800 = vshrl.u32 %v4799, 7
    %v4801 = vsub.s32 %v3677, %v4800
    %v4802 = vrot.slane %v4367, %v4801
    %v4803 = vsel %vm3682, %v4802, %v4798
    %v4804 = vlaneseq
    %v4805 = vshrl.u32 %v4804, 7
    %v4806 = vsub.s32 %v3684, %v4805
    %v4807 = vrot.slane %v4370, %v4806
    %v4808 = vsel %vm3689, %v4807, %v4803
    %v4809 = vlaneseq
    %v4810 = vshrl.u32 %v4809, 7
    %v4811 = vsub.s32 %v3691, %v4810
    %v4812 = vrot.slane %v4373, %v4811
    %v4813 = vsel %vm3696, %v4812, %v4808
    %v4814 = vlaneseq
    %v4815 = vshrl.u32 %v4814, 7
    %v4816 = vsub.s32 %v3698, %v4815
    %v4817 = vrot.slane %v4376, %v4816
    %v4818 = vsel %vm3703, %v4817, %v4813
    %v4819 = vlaneseq
    %v4820 = vshrl.u32 %v4819, 7
    %v4821 = vsub.s32 %v3705, %v4820
    %v4822 = vrot.slane %v4379, %v4821
    %v4823 = vsel %vm3710, %v4822, %v4818
    %v4824 = vlaneseq
    %v4825 = vshrl.u32 %v4824, 7
    %v4826 = vsub.s32 %v3712, %v4825
    %v4827 = vrot.slane %v4382, %v4826
    %v4828 = vsel %vm3717, %v4827, %v4823
    %v4829 = vlaneseq
    %v4830 = vshrl.u32 %v4829, 7
    %v4831 = vsub.s32 %v59, %v4830
    %v4832 = vrot.slane %v4385, %v4831
    %v4833 = vlaneseq
    %v4834 = vshrl.u32 %v4833, 7
    %v4835 = vsub.s32 %v3614, %v4834
    %v4836 = vrot.slane %v4388, %v4835
    %v4837 = vsel %vm3619, %v4836, %v4832
    %v4838 = vlaneseq
    %v4839 = vshrl.u32 %v4838, 7
    %v4840 = vsub.s32 %v3621, %v4839
    %v4841 = vrot.slane %v4391, %v4840
    %v4842 = vsel %vm3626, %v4841, %v4837
    %v4843 = vlaneseq
    %v4844 = vshrl.u32 %v4843, 7
    %v4845 = vsub.s32 %v3628, %v4844
    %v4846 = vrot.slane %v4394, %v4845
    %v4847 = vsel %vm3633, %v4846, %v4842
    %v4848 = vlaneseq
    %v4849 = vshrl.u32 %v4848, 7
    %v4850 = vsub.s32 %v3635, %v4849
    %v4851 = vrot.slane %v4397, %v4850
    %v4852 = vsel %vm3640, %v4851, %v4847
    %v4853 = vlaneseq
    %v4854 = vshrl.u32 %v4853, 7
    %v4855 = vsub.s32 %v3642, %v4854
    %v4856 = vrot.slane %v4400, %v4855
    %v4857 = vsel %vm3647, %v4856, %v4852
    %v4858 = vlaneseq
    %v4859 = vshrl.u32 %v4858, 7
    %v4860 = vsub.s32 %v3649, %v4859
    %v4861 = vrot.slane %v4403, %v4860
    %v4862 = vsel %vm3654, %v4861, %v4857
    %v4863 = vlaneseq
    %v4864 = vshrl.u32 %v4863, 7
    %v4865 = vsub.s32 %v3656, %v4864
    %v4866 = vrot.slane %v4406, %v4865
    %v4867 = vsel %vm3661, %v4866, %v4862
    %v4868 = vlaneseq
    %v4869 = vshrl.u32 %v4868, 7
    %v4870 = vsub.s32 %v3663, %v4869
    %v4871 = vrot.slane %v4409, %v4870
    %v4872 = vsel %vm3668, %v4871, %v4867
    %v4873 = vlaneseq
    %v4874 = vshrl.u32 %v4873, 7
    %v4875 = vsub.s32 %v3670, %v4874
    %v4876 = vrot.slane %v4412, %v4875
    %v4877 = vsel %vm3675, %v4876, %v4872
    %v4878 = vlaneseq
    %v4879 = vshrl.u32 %v4878, 7
    %v4880 = vsub.s32 %v3677, %v4879
    %v4881 = vrot.slane %v4415, %v4880
    %v4882 = vsel %vm3682, %v4881, %v4877
    %v4883 = vlaneseq
    %v4884 = vshrl.u32 %v4883, 7
    %v4885 = vsub.s32 %v3684, %v4884
    %v4886 = vrot.slane %v4418, %v4885
    %v4887 = vsel %vm3689, %v4886, %v4882
    %v4888 = vlaneseq
    %v4889 = vshrl.u32 %v4888, 7
    %v4890 = vsub.s32 %v3691, %v4889
    %v4891 = vrot.slane %v4421, %v4890
    %v4892 = vsel %vm3696, %v4891, %v4887
    %v4893 = vlaneseq
    %v4894 = vshrl.u32 %v4893, 7
    %v4895 = vsub.s32 %v3698, %v4894
    %v4896 = vrot.slane %v4424, %v4895
    %v4897 = vsel %vm3703, %v4896, %v4892
    %v4898 = vlaneseq
    %v4899 = vshrl.u32 %v4898, 7
    %v4900 = vsub.s32 %v3705, %v4899
    %v4901 = vrot.slane %v4427, %v4900
    %v4902 = vsel %vm3710, %v4901, %v4897
    %v4903 = vlaneseq
    %v4904 = vshrl.u32 %v4903, 7
    %v4905 = vsub.s32 %v3712, %v4904
    %v4906 = vrot.slane %v4430, %v4905
    %v4907 = vsel %vm3717, %v4906, %v4902
    %v4908 = vlaneseq
    %v4909 = vshrl.u32 %v4908, 7
    %v4910 = vsub.s32 %v59, %v4909
    %v4911 = vrot.slane %v4433, %v4910
    %v4912 = vlaneseq
    %v4913 = vshrl.u32 %v4912, 7
    %v4914 = vsub.s32 %v3614, %v4913
    %v4915 = vrot.slane %v4436, %v4914
    %v4916 = vsel %vm3619, %v4915, %v4911
    %v4917 = vlaneseq
    %v4918 = vshrl.u32 %v4917, 7
    %v4919 = vsub.s32 %v3621, %v4918
    %v4920 = vrot.slane %v4439, %v4919
    %v4921 = vsel %vm3626, %v4920, %v4916
    %v4922 = vlaneseq
    %v4923 = vshrl.u32 %v4922, 7
    %v4924 = vsub.s32 %v3628, %v4923
    %v4925 = vrot.slane %v4442, %v4924
    %v4926 = vsel %vm3633, %v4925, %v4921
    %v4927 = vlaneseq
    %v4928 = vshrl.u32 %v4927, 7
    %v4929 = vsub.s32 %v3635, %v4928
    %v4930 = vrot.slane %v4445, %v4929
    %v4931 = vsel %vm3640, %v4930, %v4926
    %v4932 = vlaneseq
    %v4933 = vshrl.u32 %v4932, 7
    %v4934 = vsub.s32 %v3642, %v4933
    %v4935 = vrot.slane %v4448, %v4934
    %v4936 = vsel %vm3647, %v4935, %v4931
    %v4937 = vlaneseq
    %v4938 = vshrl.u32 %v4937, 7
    %v4939 = vsub.s32 %v3649, %v4938
    %v4940 = vrot.slane %v4451, %v4939
    %v4941 = vsel %vm3654, %v4940, %v4936
    %v4942 = vlaneseq
    %v4943 = vshrl.u32 %v4942, 7
    %v4944 = vsub.s32 %v3656, %v4943
    %v4945 = vrot.slane %v4454, %v4944
    %v4946 = vsel %vm3661, %v4945, %v4941
    %v4947 = vlaneseq
    %v4948 = vshrl.u32 %v4947, 7
    %v4949 = vsub.s32 %v3663, %v4948
    %v4950 = vrot.slane %v4457, %v4949
    %v4951 = vsel %vm3668, %v4950, %v4946
    %v4952 = vlaneseq
    %v4953 = vshrl.u32 %v4952, 7
    %v4954 = vsub.s32 %v3670, %v4953
    %v4955 = vrot.slane %v4460, %v4954
    %v4956 = vsel %vm3675, %v4955, %v4951
    %v4957 = vlaneseq
    %v4958 = vshrl.u32 %v4957, 7
    %v4959 = vsub.s32 %v3677, %v4958
    %v4960 = vrot.slane %v4463, %v4959
    %v4961 = vsel %vm3682, %v4960, %v4956
    %v4962 = vlaneseq
    %v4963 = vshrl.u32 %v4962, 7
    %v4964 = vsub.s32 %v3684, %v4963
    %v4965 = vrot.slane %v4466, %v4964
    %v4966 = vsel %vm3689, %v4965, %v4961
    %v4967 = vlaneseq
    %v4968 = vshrl.u32 %v4967, 7
    %v4969 = vsub.s32 %v3691, %v4968
    %v4970 = vrot.slane %v4469, %v4969
    %v4971 = vsel %vm3696, %v4970, %v4966
    %v4972 = vlaneseq
    %v4973 = vshrl.u32 %v4972, 7
    %v4974 = vsub.s32 %v3698, %v4973
    %v4975 = vrot.slane %v4472, %v4974
    %v4976 = vsel %vm3703, %v4975, %v4971
    %v4977 = vlaneseq
    %v4978 = vshrl.u32 %v4977, 7
    %v4979 = vsub.s32 %v3705, %v4978
    %v4980 = vrot.slane %v4475, %v4979
    %v4981 = vsel %vm3710, %v4980, %v4976
    %v4982 = vlaneseq
    %v4983 = vshrl.u32 %v4982, 7
    %v4984 = vsub.s32 %v3712, %v4983
    %v4985 = vrot.slane %v4478, %v4984
    %v4986 = vsel %vm3717, %v4985, %v4981
    %v4987 = vlaneseq
    %v4988 = vshrl.u32 %v4987, 7
    %v4989 = vsub.s32 %v59, %v4988
    %v4990 = vrot.slane %v4481, %v4989
    %v4991 = vlaneseq
    %v4992 = vshrl.u32 %v4991, 7
    %v4993 = vsub.s32 %v3614, %v4992
    %v4994 = vrot.slane %v4484, %v4993
    %v4995 = vsel %vm3619, %v4994, %v4990
    %v4996 = vlaneseq
    %v4997 = vshrl.u32 %v4996, 7
    %v4998 = vsub.s32 %v3621, %v4997
    %v4999 = vrot.slane %v4487, %v4998
    %v5000 = vsel %vm3626, %v4999, %v4995
    %v5001 = vlaneseq
    %v5002 = vshrl.u32 %v5001, 7
    %v5003 = vsub.s32 %v3628, %v5002
    %v5004 = vrot.slane %v4490, %v5003
    %v5005 = vsel %vm3633, %v5004, %v5000
    %v5006 = vlaneseq
    %v5007 = vshrl.u32 %v5006, 7
    %v5008 = vsub.s32 %v3635, %v5007
    %v5009 = vrot.slane %v4493, %v5008
    %v5010 = vsel %vm3640, %v5009, %v5005
    %v5011 = vlaneseq
    %v5012 = vshrl.u32 %v5011, 7
    %v5013 = vsub.s32 %v3642, %v5012
    %v5014 = vrot.slane %v4496, %v5013
    %v5015 = vsel %vm3647, %v5014, %v5010
    %v5016 = vlaneseq
    %v5017 = vshrl.u32 %v5016, 7
    %v5018 = vsub.s32 %v3649, %v5017
    %v5019 = vrot.slane %v4499, %v5018
    %v5020 = vsel %vm3654, %v5019, %v5015
    %v5021 = vlaneseq
    %v5022 = vshrl.u32 %v5021, 7
    %v5023 = vsub.s32 %v3656, %v5022
    %v5024 = vrot.slane %v4502, %v5023
    %v5025 = vsel %vm3661, %v5024, %v5020
    %v5026 = vlaneseq
    %v5027 = vshrl.u32 %v5026, 7
    %v5028 = vsub.s32 %v3663, %v5027
    %v5029 = vrot.slane %v4505, %v5028
    %v5030 = vsel %vm3668, %v5029, %v5025
    %v5031 = vlaneseq
    %v5032 = vshrl.u32 %v5031, 7
    %v5033 = vsub.s32 %v3670, %v5032
    %v5034 = vrot.slane %v4508, %v5033
    %v5035 = vsel %vm3675, %v5034, %v5030
    %v5036 = vlaneseq
    %v5037 = vshrl.u32 %v5036, 7
    %v5038 = vsub.s32 %v3677, %v5037
    %v5039 = vrot.slane %v4511, %v5038
    %v5040 = vsel %vm3682, %v5039, %v5035
    %v5041 = vlaneseq
    %v5042 = vshrl.u32 %v5041, 7
    %v5043 = vsub.s32 %v3684, %v5042
    %v5044 = vrot.slane %v4514, %v5043
    %v5045 = vsel %vm3689, %v5044, %v5040
    %v5046 = vlaneseq
    %v5047 = vshrl.u32 %v5046, 7
    %v5048 = vsub.s32 %v3691, %v5047
    %v5049 = vrot.slane %v4517, %v5048
    %v5050 = vsel %vm3696, %v5049, %v5045
    %v5051 = vlaneseq
    %v5052 = vshrl.u32 %v5051, 7
    %v5053 = vsub.s32 %v3698, %v5052
    %v5054 = vrot.slane %v4520, %v5053
    %v5055 = vsel %vm3703, %v5054, %v5050
    %v5056 = vlaneseq
    %v5057 = vshrl.u32 %v5056, 7
    %v5058 = vsub.s32 %v3705, %v5057
    %v5059 = vrot.slane %v4523, %v5058
    %v5060 = vsel %vm3710, %v5059, %v5055
    %v5061 = vlaneseq
    %v5062 = vshrl.u32 %v5061, 7
    %v5063 = vsub.s32 %v3712, %v5062
    %v5064 = vrot.slane %v4526, %v5063
    %v5065 = vsel %vm3717, %v5064, %v5060
    %v5066 = vlaneseq
    %v5067 = vshrl.u32 %v5066, 7
    %v5068 = vsub.s32 %v59, %v5067
    %v5069 = vrot.slane %v4529, %v5068
    %v5070 = vlaneseq
    %v5071 = vshrl.u32 %v5070, 7
    %v5072 = vsub.s32 %v3614, %v5071
    %v5073 = vrot.slane %v4532, %v5072
    %v5074 = vsel %vm3619, %v5073, %v5069
    %v5075 = vlaneseq
    %v5076 = vshrl.u32 %v5075, 7
    %v5077 = vsub.s32 %v3621, %v5076
    %v5078 = vrot.slane %v4535, %v5077
    %v5079 = vsel %vm3626, %v5078, %v5074
    %v5080 = vlaneseq
    %v5081 = vshrl.u32 %v5080, 7
    %v5082 = vsub.s32 %v3628, %v5081
    %v5083 = vrot.slane %v4538, %v5082
    %v5084 = vsel %vm3633, %v5083, %v5079
    %v5085 = vlaneseq
    %v5086 = vshrl.u32 %v5085, 7
    %v5087 = vsub.s32 %v3635, %v5086
    %v5088 = vrot.slane %v4541, %v5087
    %v5089 = vsel %vm3640, %v5088, %v5084
    %v5090 = vlaneseq
    %v5091 = vshrl.u32 %v5090, 7
    %v5092 = vsub.s32 %v3642, %v5091
    %v5093 = vrot.slane %v4544, %v5092
    %v5094 = vsel %vm3647, %v5093, %v5089
    %v5095 = vlaneseq
    %v5096 = vshrl.u32 %v5095, 7
    %v5097 = vsub.s32 %v3649, %v5096
    %v5098 = vrot.slane %v4547, %v5097
    %v5099 = vsel %vm3654, %v5098, %v5094
    %v5100 = vlaneseq
    %v5101 = vshrl.u32 %v5100, 7
    %v5102 = vsub.s32 %v3656, %v5101
    %v5103 = vrot.slane %v4550, %v5102
    %v5104 = vsel %vm3661, %v5103, %v5099
    %v5105 = vlaneseq
    %v5106 = vshrl.u32 %v5105, 7
    %v5107 = vsub.s32 %v3663, %v5106
    %v5108 = vrot.slane %v4553, %v5107
    %v5109 = vsel %vm3668, %v5108, %v5104
    %v5110 = vlaneseq
    %v5111 = vshrl.u32 %v5110, 7
    %v5112 = vsub.s32 %v3670, %v5111
    %v5113 = vrot.slane %v4556, %v5112
    %v5114 = vsel %vm3675, %v5113, %v5109
    %v5115 = vlaneseq
    %v5116 = vshrl.u32 %v5115, 7
    %v5117 = vsub.s32 %v3677, %v5116
    %v5118 = vrot.slane %v4559, %v5117
    %v5119 = vsel %vm3682, %v5118, %v5114
    %v5120 = vlaneseq
    %v5121 = vshrl.u32 %v5120, 7
    %v5122 = vsub.s32 %v3684, %v5121
    %v5123 = vrot.slane %v4562, %v5122
    %v5124 = vsel %vm3689, %v5123, %v5119
    %v5125 = vlaneseq
    %v5126 = vshrl.u32 %v5125, 7
    %v5127 = vsub.s32 %v3691, %v5126
    %v5128 = vrot.slane %v4565, %v5127
    %v5129 = vsel %vm3696, %v5128, %v5124
    %v5130 = vlaneseq
    %v5131 = vshrl.u32 %v5130, 7
    %v5132 = vsub.s32 %v3698, %v5131
    %v5133 = vrot.slane %v4568, %v5132
    %v5134 = vsel %vm3703, %v5133, %v5129
    %v5135 = vlaneseq
    %v5136 = vshrl.u32 %v5135, 7
    %v5137 = vsub.s32 %v3705, %v5136
    %v5138 = vrot.slane %v4571, %v5137
    %v5139 = vsel %vm3710, %v5138, %v5134
    %v5140 = vlaneseq
    %v5141 = vshrl.u32 %v5140, 7
    %v5142 = vsub.s32 %v3712, %v5141
    %v5143 = vrot.slane %v4574, %v5142
    %v5144 = vsel %vm3717, %v5143, %v5139
    %v5145 = vlaneseq
    %v5146 = vshrl.u32 %v5145, 7
    %v5147 = vsub.s32 %v59, %v5146
    %v5148 = vrot.slane %v4577, %v5147
    %v5149 = vlaneseq
    %v5150 = vshrl.u32 %v5149, 7
    %v5151 = vsub.s32 %v3614, %v5150
    %v5152 = vrot.slane %v4580, %v5151
    %v5153 = vsel %vm3619, %v5152, %v5148
    %v5154 = vlaneseq
    %v5155 = vshrl.u32 %v5154, 7
    %v5156 = vsub.s32 %v3621, %v5155
    %v5157 = vrot.slane %v4583, %v5156
    %v5158 = vsel %vm3626, %v5157, %v5153
    %v5159 = vlaneseq
    %v5160 = vshrl.u32 %v5159, 7
    %v5161 = vsub.s32 %v3628, %v5160
    %v5162 = vrot.slane %v4586, %v5161
    %v5163 = vsel %vm3633, %v5162, %v5158
    %v5164 = vlaneseq
    %v5165 = vshrl.u32 %v5164, 7
    %v5166 = vsub.s32 %v3635, %v5165
    %v5167 = vrot.slane %v4589, %v5166
    %v5168 = vsel %vm3640, %v5167, %v5163
    %v5169 = vlaneseq
    %v5170 = vshrl.u32 %v5169, 7
    %v5171 = vsub.s32 %v3642, %v5170
    %v5172 = vrot.slane %v4592, %v5171
    %v5173 = vsel %vm3647, %v5172, %v5168
    %v5174 = vlaneseq
    %v5175 = vshrl.u32 %v5174, 7
    %v5176 = vsub.s32 %v3649, %v5175
    %v5177 = vrot.slane %v4595, %v5176
    %v5178 = vsel %vm3654, %v5177, %v5173
    %v5179 = vlaneseq
    %v5180 = vshrl.u32 %v5179, 7
    %v5181 = vsub.s32 %v3656, %v5180
    %v5182 = vrot.slane %v4598, %v5181
    %v5183 = vsel %vm3661, %v5182, %v5178
    %v5184 = vlaneseq
    %v5185 = vshrl.u32 %v5184, 7
    %v5186 = vsub.s32 %v3663, %v5185
    %v5187 = vrot.slane %v4601, %v5186
    %v5188 = vsel %vm3668, %v5187, %v5183
    %v5189 = vlaneseq
    %v5190 = vshrl.u32 %v5189, 7
    %v5191 = vsub.s32 %v3670, %v5190
    %v5192 = vrot.slane %v4604, %v5191
    %v5193 = vsel %vm3675, %v5192, %v5188
    %v5194 = vlaneseq
    %v5195 = vshrl.u32 %v5194, 7
    %v5196 = vsub.s32 %v3677, %v5195
    %v5197 = vrot.slane %v4607, %v5196
    %v5198 = vsel %vm3682, %v5197, %v5193
    %v5199 = vlaneseq
    %v5200 = vshrl.u32 %v5199, 7
    %v5201 = vsub.s32 %v3684, %v5200
    %v5202 = vrot.slane %v4610, %v5201
    %v5203 = vsel %vm3689, %v5202, %v5198
    %v5204 = vlaneseq
    %v5205 = vshrl.u32 %v5204, 7
    %v5206 = vsub.s32 %v3691, %v5205
    %v5207 = vrot.slane %v4613, %v5206
    %v5208 = vsel %vm3696, %v5207, %v5203
    %v5209 = vlaneseq
    %v5210 = vshrl.u32 %v5209, 7
    %v5211 = vsub.s32 %v3698, %v5210
    %v5212 = vrot.slane %v4616, %v5211
    %v5213 = vsel %vm3703, %v5212, %v5208
    %v5214 = vlaneseq
    %v5215 = vshrl.u32 %v5214, 7
    %v5216 = vsub.s32 %v3705, %v5215
    %v5217 = vrot.slane %v4619, %v5216
    %v5218 = vsel %vm3710, %v5217, %v5213
    %v5219 = vlaneseq
    %v5220 = vshrl.u32 %v5219, 7
    %v5221 = vsub.s32 %v3712, %v5220
    %v5222 = vrot.slane %v4622, %v5221
    %v5223 = vsel %vm3717, %v5222, %v5218
    %v5224 = vlaneseq
    %v5225 = vshrl.u32 %v5224, 7
    %v5226 = vsub.s32 %v59, %v5225
    %v5227 = vrot.slane %v4625, %v5226
    %v5228 = vlaneseq
    %v5229 = vshrl.u32 %v5228, 7
    %v5230 = vsub.s32 %v3614, %v5229
    %v5231 = vrot.slane %v4628, %v5230
    %v5232 = vsel %vm3619, %v5231, %v5227
    %v5233 = vlaneseq
    %v5234 = vshrl.u32 %v5233, 7
    %v5235 = vsub.s32 %v3621, %v5234
    %v5236 = vrot.slane %v4631, %v5235
    %v5237 = vsel %vm3626, %v5236, %v5232
    %v5238 = vlaneseq
    %v5239 = vshrl.u32 %v5238, 7
    %v5240 = vsub.s32 %v3628, %v5239
    %v5241 = vrot.slane %v4634, %v5240
    %v5242 = vsel %vm3633, %v5241, %v5237
    %v5243 = vlaneseq
    %v5244 = vshrl.u32 %v5243, 7
    %v5245 = vsub.s32 %v3635, %v5244
    %v5246 = vrot.slane %v4637, %v5245
    %v5247 = vsel %vm3640, %v5246, %v5242
    %v5248 = vlaneseq
    %v5249 = vshrl.u32 %v5248, 7
    %v5250 = vsub.s32 %v3642, %v5249
    %v5251 = vrot.slane %v4640, %v5250
    %v5252 = vsel %vm3647, %v5251, %v5247
    %v5253 = vlaneseq
    %v5254 = vshrl.u32 %v5253, 7
    %v5255 = vsub.s32 %v3649, %v5254
    %v5256 = vrot.slane %v4643, %v5255
    %v5257 = vsel %vm3654, %v5256, %v5252
    %v5258 = vlaneseq
    %v5259 = vshrl.u32 %v5258, 7
    %v5260 = vsub.s32 %v3656, %v5259
    %v5261 = vrot.slane %v4646, %v5260
    %v5262 = vsel %vm3661, %v5261, %v5257
    %v5263 = vlaneseq
    %v5264 = vshrl.u32 %v5263, 7
    %v5265 = vsub.s32 %v3663, %v5264
    %v5266 = vrot.slane %v4649, %v5265
    %v5267 = vsel %vm3668, %v5266, %v5262
    %v5268 = vlaneseq
    %v5269 = vshrl.u32 %v5268, 7
    %v5270 = vsub.s32 %v3670, %v5269
    %v5271 = vrot.slane %v4652, %v5270
    %v5272 = vsel %vm3675, %v5271, %v5267
    %v5273 = vlaneseq
    %v5274 = vshrl.u32 %v5273, 7
    %v5275 = vsub.s32 %v3677, %v5274
    %v5276 = vrot.slane %v4655, %v5275
    %v5277 = vsel %vm3682, %v5276, %v5272
    %v5278 = vlaneseq
    %v5279 = vshrl.u32 %v5278, 7
    %v5280 = vsub.s32 %v3684, %v5279
    %v5281 = vrot.slane %v4658, %v5280
    %v5282 = vsel %vm3689, %v5281, %v5277
    %v5283 = vlaneseq
    %v5284 = vshrl.u32 %v5283, 7
    %v5285 = vsub.s32 %v3691, %v5284
    %v5286 = vrot.slane %v4661, %v5285
    %v5287 = vsel %vm3696, %v5286, %v5282
    %v5288 = vlaneseq
    %v5289 = vshrl.u32 %v5288, 7
    %v5290 = vsub.s32 %v3698, %v5289
    %v5291 = vrot.slane %v4664, %v5290
    %v5292 = vsel %vm3703, %v5291, %v5287
    %v5293 = vlaneseq
    %v5294 = vshrl.u32 %v5293, 7
    %v5295 = vsub.s32 %v3705, %v5294
    %v5296 = vrot.slane %v4667, %v5295
    %v5297 = vsel %vm3710, %v5296, %v5292
    %v5298 = vlaneseq
    %v5299 = vshrl.u32 %v5298, 7
    %v5300 = vsub.s32 %v3712, %v5299
    %v5301 = vrot.slane %v4670, %v5300
    %v5302 = vsel %vm3717, %v5301, %v5297
    %v5303 = vsel %vm4272, %v4828, %v4749
    %v5304 = vsel %vm4274, %v4907, %v5303
    %v5305 = vsel %vm4276, %v4986, %v5304
    %v5306 = vsel %vm4278, %v5065, %v5305
    %v5307 = vsel %vm4280, %v5144, %v5306
    %v5308 = vsel %vm4282, %v5223, %v5307
    %v5309 = vsel %vm4284, %v5302, %v5308
    %5310 = vst [vmem:[#allocation9] sm:$0xff] %v5309
    // Predicated region
    $region26: #{tpu_custom_call.1} parent=1 // pred_check
      _
    $region27: #{tpu_custom_call.1} parent=1 // pred_check_branch
      %5312 = sbr.rel (0) target = $region29
    $region28: #{tpu_custom_call.1} parent=1 // pred_region
      %s5314 = ssub.s32 128, 128
      %5315 = vsyncadd [#allocation4], %s5314
      %s5317 = sshll.u32 [#allocation8], 4
      %s5318 = int_to_ptr.vmem [resolvable:$true] %s5317
      %5320 = dma.vmem_to_hbm [thread:$0]  %s5318, 128, %s3, [#allocation4]
    $region29: #{tpu_custom_call.1} parent=1 // pred_fallthru
      _
    // Predicated region
    $region30: #{tpu_custom_call.1} parent=1 // pred_check
      _
    $region31: #{tpu_custom_call.1} parent=1 // pred_check_branch
      %5322 = sbr.rel (0) target = $region33
    $region32: #{tpu_custom_call.1} parent=1 // pred_region
      %s5324 = ssub.s32 128, 128
      %5325 = vsyncadd [#allocation10], %s5324
      %s5327 = sshll.u32 [#allocation9], 4
      %s5328 = int_to_ptr.vmem [resolvable:$true] %s5327
      %5330 = dma.vmem_to_hbm [thread:$0]  %s5328, 128, %s4, [#allocation10]
    $region33: #{tpu_custom_call.1} parent=1 // pred_fallthru
      _
    // Predicated region
    $region34: #{tpu_custom_call.1} parent=1 // pred_check
      _
    $region35: #{tpu_custom_call.1} parent=1 // pred_check_branch
      %5332 = sbr.rel (0) target = $region37
    $region36: #{tpu_custom_call.1} parent=1 // pred_region
      %5333 = dma.done [#allocation4], 128
    $region37: #{tpu_custom_call.1} parent=1 // pred_fallthru
      _
    // Predicated region
    $region38: #{tpu_custom_call.1} parent=1 // pred_check
      _
    $region39: #{tpu_custom_call.1} parent=1 // pred_check_branch
      %5335 = sbr.rel (0) target = $region41
    $region40: #{tpu_custom_call.1} parent=1 // pred_region
      %5336 = dma.done [#allocation10], 128
    $region41: #{tpu_custom_call.1} parent=1 // pred_fallthru
      _
    %5337 = vsyncpa [#allocation3], 1
    %5338 = vsyncpa [#allocation6], 1
    %5339 = vsyncpa [#allocation4], 1
    %5340 = vsyncpa [#allocation10], 1

</llo_original>
